<compile_context>
chip_gen: v5e
topology: v5e:2x2
jax: 0.10.0
libtpu: 0.0.40
codegen_flags: <defaults>
</compile_context>

<pallas_src>
import functools
import math

import jax
import jax.numpy as jnp
from jax import lax
from jax.experimental import pallas as pl
from jax.experimental.pallas import tpu as pltpu

# ---------------- config (scaled-down ViT-B/16 + ArcFace) ----------------
BATCH = 2
IN_CH = 3
IMG = 16
PATCH = 4
HIDDEN = 32            # ViT-B: 768
NUM_HEADS = 2          # ViT-B: 12
HEAD_DIM = HIDDEN // NUM_HEADS
MLP_DIM = 64           # ViT-B: 3072
NUM_LAYERS = 2         # ViT-B: 12
FEAT_DIM = 64          # backbone.heads: 768 -> 2048, scaled to 32 -> 64
NUM_CLASS = 10
NUM_PATCH = (IMG // PATCH) ** 2
SEQ = NUM_PATCH + 1    # patches + class token
PATCH_K = IN_CH * PATCH * PATCH
ARC_S = 30.0
ARC_M = 0.15
LN_EPS = 1e-6          # torchvision ViT uses LayerNorm(eps=1e-6)


# ---------------- in-kernel helpers (operate on values, not refs) ----------------
def _layernorm(x, g, b):
    mean = jnp.mean(x, axis=-1, keepdims=True)
    var = jnp.mean(jnp.square(x - mean), axis=-1, keepdims=True)
    return (x - mean) * lax.rsqrt(var + LN_EPS) * g + b


def _gelu_exact(x):
    # torchvision nn.GELU() default = exact erf GELU
    return 0.5 * x * (1.0 + lax.erf(x * (1.0 / math.sqrt(2.0))))


# ---------------- fused forward kernel (one grid step == one image) ----------------
def _fused_vit_arcface_kernel(
    # scalar prefetch (SMEM)
    label_ref,
    # inputs (VMEM)
    patches_ref, conv_w_ref, conv_b_ref, cls_ref, pos_ref,
    ln1_g_ref, ln1_b_ref, qkv_w_ref, qkv_b_ref, out_w_ref, out_b_ref,
    ln2_g_ref, ln2_b_ref, fc1_w_ref, fc1_b_ref, fc2_w_ref, fc2_b_ref,
    lnf_g_ref, lnf_b_ref, heads_w_ref, heads_b_ref, arc_wt_ref,
    # outputs
    feat_ref, logit_ref,
    *, s, cos_m, sin_m, th, mm):
    E = HIDDEN
    Dh = HEAD_DIM
    scale = 1.0 / math.sqrt(Dh)

    # --- patch embedding (conv_proj(kernel=p, stride=p) as a linear over flattened patches).
    # Row 0 of patches is a zero row (cls-token slot); its embedding is conv_b, which we
    # replace by the class token via a row-0 mask add. Then add position embedding.
    patches = patches_ref[0]                                                   # (SEQ, Ck)
    tok = jnp.dot(patches, conv_w_ref[...],
                  preferred_element_type=jnp.float32) + conv_b_ref[...]        # (SEQ, E)
    row_idx = lax.broadcasted_iota(jnp.int32, (SEQ, 1), 0)
    is_cls = (row_idx == 0).astype(jnp.float32)                                # (SEQ, 1)
    x = tok + pos_ref[...] + is_cls * (cls_ref[...] - conv_b_ref[...])         # (SEQ, E)

    # --- encoder blocks (torchvision EncoderBlock: x + MHA(LN1(x)); that + MLP(LN2(that)))
    for l in range(NUM_LAYERS):
        # attention sub-block (LN fused with QKV matmul; everything in-register)
        y = _layernorm(x, ln1_g_ref[l], ln1_b_ref[l])
        qkv = jnp.dot(y, qkv_w_ref[l],
                      preferred_element_type=jnp.float32) + qkv_b_ref[l]        # (SEQ, 3E)
        q = qkv[:, 0:E]
        k = qkv[:, E:2 * E]
        v = qkv[:, 2 * E:3 * E]
        out_w = out_w_ref[l]                                                    # (E, E)
        acc = None
        for h in range(NUM_HEADS):
            qh = q[:, h * Dh:(h + 1) * Dh]                                      # (SEQ, Dh)
            kh = k[:, h * Dh:(h + 1) * Dh]
            vh = v[:, h * Dh:(h + 1) * Dh]
            # q @ k^T via dot_general contracting last axes (no materialized transpose)
            sc = lax.dot_general(qh, kh, (((1,), (1,)), ((), ())),
                                 preferred_element_type=jnp.float32) * scale    # (SEQ, SEQ)
            sc = sc - jnp.max(sc, axis=-1, keepdims=True)
            p = jnp.exp(sc)
            p = p / jnp.sum(p, axis=-1, keepdims=True)
            oh = jnp.dot(p, vh, preferred_element_type=jnp.float32)             # (SEQ, Dh)
            # head-concat + out_proj fused as block-matmul accumulation
            contrib = jnp.dot(oh, out_w[h * Dh:(h + 1) * Dh, :],
                              preferred_element_type=jnp.float32)               # (SEQ, E)
            acc = contrib if acc is None else acc + contrib
        x = x + acc + out_b_ref[l]

        # MLP sub-block (LN fused with FC1; exact erf GELU)
        y = _layernorm(x, ln2_g_ref[l], ln2_b_ref[l])
        h1 = _gelu_exact(jnp.dot(y, fc1_w_ref[l],
                                 preferred_element_type=jnp.float32) + fc1_b_ref[l])   # (SEQ, MLP)
        h2 = jnp.dot(h1, fc2_w_ref[l],
                     preferred_element_type=jnp.float32) + fc2_b_ref[l]                # (SEQ, E)
        x = x + h2

    # --- final LN -> class token -> heads Linear (fused)
    y = _layernorm(x, lnf_g_ref[...], lnf_b_ref[...])
    cls_out = y[0:1, :]                                                         # (1, E)
    feat = jnp.dot(cls_out, heads_w_ref[...],
                   preferred_element_type=jnp.float32) + heads_b_ref[...]       # (1, F)
    feat_ref[0] = feat

    # --- ArcMarginProduct (easy_margin=False, training branch), fused in the same kernel
    xn = feat / jnp.maximum(jnp.sqrt(jnp.sum(feat * feat, axis=-1, keepdims=True)), 1e-12)
    w = arc_wt_ref[...]                                                         # (F, C) = weight.T
    wn = w / jnp.maximum(jnp.sqrt(jnp.sum(w * w, axis=0, keepdims=True)), 1e-12)
    cosine = jnp.dot(xn, wn, preferred_element_type=jnp.float32)                # (1, C)
    sine = jnp.sqrt(jnp.maximum(1.0 - cosine * cosine, 0.0))
    phi = cosine * cos_m - sine * sin_m
    phi = jnp.where(cosine > th, phi, cosine - mm)
    lab = label_ref[pl.program_id(0)]                                           # SMEM scalar read
    classes = lax.broadcasted_iota(jnp.int32, cosine.shape, 1)
    one_hot = (classes == lab).astype(jnp.float32)                              # scatter_(1, label, 1)
    logit_ref[0] = (one_hot * phi + (1.0 - one_hot) * cosine) * s


def _make_fused_call(n_batch):
    kern = functools.partial(
        _fused_vit_arcface_kernel,
        s=ARC_S, cos_m=math.cos(ARC_M), sin_m=math.sin(ARC_M),
        th=math.cos(math.pi - ARC_M), mm=math.sin(math.pi - ARC_M) * ARC_M)

    def full2(a, b):
        return pl.BlockSpec((a, b), lambda i, lab: (0, 0))

    def full3(a, b, c):
        return pl.BlockSpec((a, b, c), lambda i, lab: (0, 0, 0))

    grid_spec = pltpu.PrefetchScalarGridSpec(
        num_scalar_prefetch=1,                 # label -> SMEM
        grid=(n_batch,),
        in_specs=[
            pl.BlockSpec((1, SEQ, PATCH_K), lambda i, lab: (i, 0, 0)),  # patches (per image)
            full2(PATCH_K, HIDDEN),                 # conv_w
            full2(1, HIDDEN),                       # conv_b
            full2(1, HIDDEN),                       # cls token
            full2(SEQ, HIDDEN),                     # pos embedding
            full3(NUM_LAYERS, 1, HIDDEN),           # ln1_g
            full3(NUM_LAYERS, 1, HIDDEN),           # ln1_b
            full3(NUM_LAYERS, HIDDEN, 3 * HIDDEN),  # qkv_w
            full3(NUM_LAYERS, 1, 3 * HIDDEN),       # qkv_b
            full3(NUM_LAYERS, HIDDEN, HIDDEN),      # out_w
            full3(NUM_LAYERS, 1, HIDDEN),           # out_b
            full3(NUM_LAYERS, 1, HIDDEN),           # ln2_g
            full3(NUM_LAYERS, 1, HIDDEN),           # ln2_b
            full3(NUM_LAYERS, HIDDEN, MLP_DIM),     # fc1_w
            full3(NUM_LAYERS, 1, MLP_DIM),          # fc1_b
            full3(NUM_LAYERS, MLP_DIM, HIDDEN),     # fc2_w
            full3(NUM_LAYERS, 1, HIDDEN),           # fc2_b
            full2(1, HIDDEN),                       # final ln_g
            full2(1, HIDDEN),                       # final ln_b
            full2(HIDDEN, FEAT_DIM),                # heads_w
            full2(1, FEAT_DIM),                     # heads_b
            full2(FEAT_DIM, NUM_CLASS),             # arc weight, stored transposed (F, C)
        ],
        out_specs=[
            pl.BlockSpec((1, 1, FEAT_DIM), lambda i, lab: (i, 0, 0)),
            pl.BlockSpec((1, 1, NUM_CLASS), lambda i, lab: (i, 0, 0)),
        ],
    )
    return pl.pallas_call(
        kern,
        grid_spec=grid_spec,
        out_shape=(jax.ShapeDtypeStruct((n_batch, 1, FEAT_DIM), jnp.float32),
                   jax.ShapeDtypeStruct((n_batch, 1, NUM_CLASS), jnp.float32)),
        compiler_params=pltpu.CompilerParams(dimension_semantics=("parallel",)),
    )


# ---------------- parameters (deterministic stand-ins for pretrained weights) ----------------
def init_params(key):
    kit = iter(jax.random.split(key, 32))

    def nrm(shape, scale=0.02):
        return scale * jax.random.normal(next(kit), shape, jnp.float32)

    L = NUM_LAYERS
    return {
        "conv_w": nrm((PATCH_K, HIDDEN)),             # conv_proj as linear over (c, ph, pw) patches
        "conv_b": jnp.zeros((1, HIDDEN), jnp.float32),
        "cls_token": nrm((1, HIDDEN)),
        "pos_emb": nrm((SEQ, HIDDEN)),
        "ln1_g": jnp.ones((L, 1, HIDDEN), jnp.float32),
        "ln1_b": jnp.zeros((L, 1, HIDDEN), jnp.float32),
        "qkv_w": nrm((L, HIDDEN, 3 * HIDDEN)),        # MHA in_proj (transposed, [Wq;Wk;Wv] columns)
        "qkv_b": jnp.zeros((L, 1, 3 * HIDDEN), jnp.float32),
        "out_w": nrm((L, HIDDEN, HIDDEN)),            # MHA out_proj (transposed)
        "out_b": jnp.zeros((L, 1, HIDDEN), jnp.float32),
        "ln2_g": jnp.ones((L, 1, HIDDEN), jnp.float32),
        "ln2_b": jnp.zeros((L, 1, HIDDEN), jnp.float32),
        "fc1_w": nrm((L, HIDDEN, MLP_DIM)),
        "fc1_b": jnp.zeros((L, 1, MLP_DIM), jnp.float32),
        "fc2_w": nrm((L, MLP_DIM, HIDDEN)),
        "fc2_b": jnp.zeros((L, 1, HIDDEN), jnp.float32),
        "ln_g": jnp.ones((1, HIDDEN), jnp.float32),   # encoder final LayerNorm
        "ln_b": jnp.zeros((1, HIDDEN), jnp.float32),
        "heads_w": nrm((HIDDEN, FEAT_DIM)),           # backbone.heads: 768->2048 (scaled)
        "heads_b": jnp.zeros((1, FEAT_DIM), jnp.float32),
        # ArcMarginProduct weight (out_features, in_features), xavier-ish scale
        "arc_w": nrm((NUM_CLASS, FEAT_DIM), scale=1.0 / math.sqrt(FEAT_DIM)),
    }


# ---------------- forward (args.softmax=False, training=True branch) ----------------
def transformer_large_forward(x, target, params):
    """Returns (global_feature, global_logit)."""
    N, C, H, W = x.shape
    p = PATCH
    nh, nw = H // p, W // p
    # conv_proj(kernel=p, stride=p) == linear over (c, ph, pw)-flattened patches (layout plumbing
    # done once in XLA); prepend one zero row per image as the class-token slot.
    patches = (x.reshape(N, C, nh, p, nw, p)
                 .transpose(0, 2, 4, 1, 3, 5)
                 .reshape(N, nh * nw, C * p * p))
    patches = jnp.pad(patches, ((0, 0), (1, 0), (0, 0)))            # (N, SEQ, PATCH_K)

    call = _make_fused_call(N)
    feat, logit = call(
        target.astype(jnp.int32),                                   # scalar prefetch -> SMEM
        patches,
        params["conv_w"], params["conv_b"], params["cls_token"], params["pos_emb"],
        params["ln1_g"], params["ln1_b"], params["qkv_w"], params["qkv_b"],
        params["out_w"], params["out_b"], params["ln2_g"], params["ln2_b"],
        params["fc1_w"], params["fc1_b"], params["fc2_w"], params["fc2_b"],
        params["ln_g"], params["ln_b"], params["heads_w"], params["heads_b"],
        params["arc_w"].T,                                          # (F, C): no in-kernel transpose
    )
    return feat.reshape(N, FEAT_DIM), logit.reshape(N, NUM_CLASS)


if __name__ == "__main__":
    key = jax.random.PRNGKey(0)
    kx, kl = jax.random.split(key)
    x = jax.random.normal(kx, (BATCH, IN_CH, IMG, IMG), jnp.float32)   # NCHW, like PyTorch
    target = jax.random.randint(kl, (BATCH,), 0, NUM_CLASS)

    params = init_params(jax.random.PRNGKey(42))

    fwd = jax.jit(transformer_large_forward)
    feat, logit = fwd(x, target, params)
    jax.block_until_ready((feat, logit))

    assert feat.shape == (BATCH, FEAT_DIM)
    assert logit.shape == (BATCH, NUM_CLASS)
    assert bool(jnp.all(jnp.isfinite(feat))) and bool(jnp.all(jnp.isfinite(logit)))
    print("KERNEL_OK")
</pallas_src>

<mosaic_0001>
module attributes {stable_mosaic.version = 11 : i64} {
  func.func @_fused_vit_arcface_kernel(%arg0: i32, %arg1: memref<2xi32, #tpu.memory_space<smem>>, %arg2: memref<1x17x48xf32, #tpu.memory_space<vmem>>, %arg3: memref<48x32xf32, #tpu.memory_space<vmem>>, %arg4: memref<1x32xf32, #tpu.memory_space<vmem>>, %arg5: memref<1x32xf32, #tpu.memory_space<vmem>>, %arg6: memref<17x32xf32, #tpu.memory_space<vmem>>, %arg7: memref<2x1x32xf32, #tpu.memory_space<vmem>>, %arg8: memref<2x1x32xf32, #tpu.memory_space<vmem>>, %arg9: memref<2x32x96xf32, #tpu.memory_space<vmem>>, %arg10: memref<2x1x96xf32, #tpu.memory_space<vmem>>, %arg11: memref<2x32x32xf32, #tpu.memory_space<vmem>>, %arg12: memref<2x1x32xf32, #tpu.memory_space<vmem>>, %arg13: memref<2x1x32xf32, #tpu.memory_space<vmem>>, %arg14: memref<2x1x32xf32, #tpu.memory_space<vmem>>, %arg15: memref<2x32x64xf32, #tpu.memory_space<vmem>>, %arg16: memref<2x1x64xf32, #tpu.memory_space<vmem>>, %arg17: memref<2x64x32xf32, #tpu.memory_space<vmem>>, %arg18: memref<2x1x32xf32, #tpu.memory_space<vmem>>, %arg19: memref<1x32xf32, #tpu.memory_space<vmem>>, %arg20: memref<1x32xf32, #tpu.memory_space<vmem>>, %arg21: memref<32x64xf32, #tpu.memory_space<vmem>>, %arg22: memref<1x64xf32, #tpu.memory_space<vmem>>, %arg23: memref<64x10xf32, #tpu.memory_space<vmem>>, %arg24: memref<1x1x64xf32, #tpu.memory_space<vmem>>, %arg25: memref<1x1x10xf32, #tpu.memory_space<vmem>>) attributes {dimension_semantics = [#tpu.dimension_semantics<parallel>], iteration_bounds = array<i64: 2>, scalar_prefetch = 1 : i64, scratch_operands = 0 : i64, tpu.core_type = #tpu.core_type<tc>, window_params = [{transform_indices = @transform_0, window_bounds = array<i64: 1, 17, 48>}, {pipeline_mode = #tpu.pipeline_mode<synchronous>, transform_indices = @transform_1, window_bounds = array<i64: 48, 32>}, {pipeline_mode = #tpu.pipeline_mode<synchronous>, transform_indices = @transform_2, window_bounds = array<i64: 1, 32>}, {pipeline_mode = #tpu.pipeline_mode<synchronous>, transform_indices = @transform_3, window_bounds = array<i64: 1, 32>}, {pipeline_mode = #tpu.pipeline_mode<synchronous>, transform_indices = @transform_4, window_bounds = array<i64: 17, 32>}, {pipeline_mode = #tpu.pipeline_mode<synchronous>, transform_indices = @transform_5, window_bounds = array<i64: 2, 1, 32>}, {pipeline_mode = #tpu.pipeline_mode<synchronous>, transform_indices = @transform_6, window_bounds = array<i64: 2, 1, 32>}, {pipeline_mode = #tpu.pipeline_mode<synchronous>, transform_indices = @transform_7, window_bounds = array<i64: 2, 32, 96>}, {pipeline_mode = #tpu.pipeline_mode<synchronous>, transform_indices = @transform_8, window_bounds = array<i64: 2, 1, 96>}, {pipeline_mode = #tpu.pipeline_mode<synchronous>, transform_indices = @transform_9, window_bounds = array<i64: 2, 32, 32>}, {pipeline_mode = #tpu.pipeline_mode<synchronous>, transform_indices = @transform_10, window_bounds = array<i64: 2, 1, 32>}, {pipeline_mode = #tpu.pipeline_mode<synchronous>, transform_indices = @transform_11, window_bounds = array<i64: 2, 1, 32>}, {pipeline_mode = #tpu.pipeline_mode<synchronous>, transform_indices = @transform_12, window_bounds = array<i64: 2, 1, 32>}, {pipeline_mode = #tpu.pipeline_mode<synchronous>, transform_indices = @transform_13, window_bounds = array<i64: 2, 32, 64>}, {pipeline_mode = #tpu.pipeline_mode<synchronous>, transform_indices = @transform_14, window_bounds = array<i64: 2, 1, 64>}, {pipeline_mode = #tpu.pipeline_mode<synchronous>, transform_indices = @transform_15, window_bounds = array<i64: 2, 64, 32>}, {pipeline_mode = #tpu.pipeline_mode<synchronous>, transform_indices = @transform_16, window_bounds = array<i64: 2, 1, 32>}, {pipeline_mode = #tpu.pipeline_mode<synchronous>, transform_indices = @transform_17, window_bounds = array<i64: 1, 32>}, {pipeline_mode = #tpu.pipeline_mode<synchronous>, transform_indices = @transform_18, window_bounds = array<i64: 1, 32>}, {pipeline_mode = #tpu.pipeline_mode<synchronous>, transform_indices = @transform_19, window_bounds = array<i64: 32, 64>}, {pipeline_mode = #tpu.pipeline_mode<synchronous>, transform_indices = @transform_20, window_bounds = array<i64: 1, 64>}, {pipeline_mode = #tpu.pipeline_mode<synchronous>, transform_indices = @transform_21, window_bounds = array<i64: 64, 10>}, {transform_indices = @transform_22, window_bounds = array<i64: 1, 1, 64>}, {transform_indices = @transform_23, window_bounds = array<i64: 1, 1, 10>}]} {
    %c0 = arith.constant 0 : index
    %c0_0 = arith.constant 0 : index
    %c0_1 = arith.constant 0 : index
    %0 = vector.load %arg2[%c0, %c0_0, %c0_1] : memref<1x17x48xf32, #tpu.memory_space<vmem>>, vector<1x17x48xf32>
    %1 = vector.shape_cast %0 : vector<1x17x48xf32> to vector<17x48xf32>
    %c0_2 = arith.constant 0 : index
    %c0_3 = arith.constant 0 : index
    %2 = vector.load %arg3[%c0_2, %c0_3] : memref<48x32xf32, #tpu.memory_space<vmem>>, vector<48x32xf32>
    %cst = arith.constant dense<0.000000e+00> : vector<17x32xf32>
    %3 = tpu.matmul %1, %2, %cst {dimension_numbers = #tpu.dot_dimension_numbers<[1], [0], [0], [1], [0, 0, 1, 1], [], []>} : vector<17x48xf32>, vector<48x32xf32>, vector<17x32xf32> -> vector<17x32xf32>
    %c0_4 = arith.constant 0 : index
    %c0_5 = arith.constant 0 : index
    %4 = vector.load %arg4[%c0_4, %c0_5] : memref<1x32xf32, #tpu.memory_space<vmem>>, vector<1x32xf32>
    %5 = vector.broadcast %4 : vector<1x32xf32> to vector<17x32xf32>
    %6 = arith.addf %3, %5 : vector<17x32xf32>
    %7 = tpu.iota {dimensions = array<i32: 0>} : vector<17x1xi32>
    %c0_i32 = arith.constant 0 : i32
    %8 = vector.broadcast %c0_i32 : i32 to vector<17x1xi32>
    %9 = arith.cmpi eq, %7, %8 : vector<17x1xi32>
    %10 = arith.extui %9 : vector<17x1xi1> to vector<17x1xi32>
    %11 = arith.sitofp %10 : vector<17x1xi32> to vector<17x1xf32>
    %c0_6 = arith.constant 0 : index
    %c0_7 = arith.constant 0 : index
    %12 = vector.load %arg6[%c0_6, %c0_7] : memref<17x32xf32, #tpu.memory_space<vmem>>, vector<17x32xf32>
    %13 = arith.addf %6, %12 : vector<17x32xf32>
    %c0_8 = arith.constant 0 : index
    %c0_9 = arith.constant 0 : index
    %14 = vector.load %arg5[%c0_8, %c0_9] : memref<1x32xf32, #tpu.memory_space<vmem>>, vector<1x32xf32>
    %c0_10 = arith.constant 0 : index
    %c0_11 = arith.constant 0 : index
    %15 = vector.load %arg4[%c0_10, %c0_11] : memref<1x32xf32, #tpu.memory_space<vmem>>, vector<1x32xf32>
    %16 = arith.subf %14, %15 : vector<1x32xf32>
    %17 = vector.broadcast %11 : vector<17x1xf32> to vector<17x32xf32>
    %18 = vector.broadcast %16 : vector<1x32xf32> to vector<17x32xf32>
    %19 = arith.mulf %17, %18 : vector<17x32xf32>
    %20 = arith.addf %13, %19 : vector<17x32xf32>
    %c0_12 = arith.constant 0 : index
    %c0_13 = arith.constant 0 : index
    %c0_14 = arith.constant 0 : index
    %21 = vector.load %arg7[%c0_12, %c0_13, %c0_14] : memref<2x1x32xf32, #tpu.memory_space<vmem>>, vector<1x1x32xf32>
    %22 = vector.shape_cast %21 : vector<1x1x32xf32> to vector<1x32xf32>
    %c0_15 = arith.constant 0 : index
    %c0_16 = arith.constant 0 : index
    %c0_17 = arith.constant 0 : index
    %23 = vector.load %arg8[%c0_15, %c0_16, %c0_17] : memref<2x1x32xf32, #tpu.memory_space<vmem>>, vector<1x1x32xf32>
    %24 = vector.shape_cast %23 : vector<1x1x32xf32> to vector<1x32xf32>
    %cst_18 = arith.constant dense<0.000000e+00> : vector<17xf32>
    %25 = vector.multi_reduction <add>, %20, %cst_18 [1] : vector<17x32xf32> to vector<17xf32>
    %26 = vector.shape_cast %25 : vector<17xf32> to vector<17x1xf32>
    %cst_19 = arith.constant 3.200000e+01 : f32
    %27 = vector.broadcast %cst_19 : f32 to vector<17x1xf32>
    %28 = arith.divf %26, %27 : vector<17x1xf32>
    %29 = vector.broadcast %28 : vector<17x1xf32> to vector<17x32xf32>
    %30 = arith.subf %20, %29 : vector<17x32xf32>
    %31 = arith.mulf %30, %30 : vector<17x32xf32>
    %cst_20 = arith.constant dense<0.000000e+00> : vector<17xf32>
    %32 = vector.multi_reduction <add>, %31, %cst_20 [1] : vector<17x32xf32> to vector<17xf32>
    %33 = vector.shape_cast %32 : vector<17xf32> to vector<17x1xf32>
    %cst_21 = arith.constant 3.200000e+01 : f32
    %34 = vector.broadcast %cst_21 : f32 to vector<17x1xf32>
    %35 = arith.divf %33, %34 : vector<17x1xf32>
    %36 = vector.broadcast %28 : vector<17x1xf32> to vector<17x32xf32>
    %37 = arith.subf %20, %36 : vector<17x32xf32>
    %cst_22 = arith.constant 9.99999997E-7 : f32
    %38 = vector.broadcast %cst_22 : f32 to vector<17x1xf32>
    %39 = arith.addf %35, %38 : vector<17x1xf32>
    %40 = math.rsqrt %39 : vector<17x1xf32>
    %41 = vector.broadcast %40 : vector<17x1xf32> to vector<17x32xf32>
    %42 = arith.mulf %37, %41 : vector<17x32xf32>
    %43 = vector.broadcast %22 : vector<1x32xf32> to vector<17x32xf32>
    %44 = arith.mulf %42, %43 : vector<17x32xf32>
    %45 = vector.broadcast %24 : vector<1x32xf32> to vector<17x32xf32>
    %46 = arith.addf %44, %45 : vector<17x32xf32>
    %c0_23 = arith.constant 0 : index
    %c0_24 = arith.constant 0 : index
    %c0_25 = arith.constant 0 : index
    %47 = vector.load %arg9[%c0_23, %c0_24, %c0_25] : memref<2x32x96xf32, #tpu.memory_space<vmem>>, vector<1x32x96xf32>
    %48 = vector.shape_cast %47 : vector<1x32x96xf32> to vector<32x96xf32>
    %cst_26 = arith.constant dense<0.000000e+00> : vector<17x96xf32>
    %49 = tpu.matmul %46, %48, %cst_26 {dimension_numbers = #tpu.dot_dimension_numbers<[1], [0], [0], [1], [0, 0, 1, 1], [], []>} : vector<17x32xf32>, vector<32x96xf32>, vector<17x96xf32> -> vector<17x96xf32>
    %c0_27 = arith.constant 0 : index
    %c0_28 = arith.constant 0 : index
    %c0_29 = arith.constant 0 : index
    %50 = vector.load %arg10[%c0_27, %c0_28, %c0_29] : memref<2x1x96xf32, #tpu.memory_space<vmem>>, vector<1x1x96xf32>
    %51 = vector.shape_cast %50 : vector<1x1x96xf32> to vector<1x96xf32>
    %52 = vector.broadcast %51 : vector<1x96xf32> to vector<17x96xf32>
    %53 = arith.addf %49, %52 : vector<17x96xf32>
    %54 = vector.extract_strided_slice %53 {offsets = [0, 0], sizes = [17, 32], strides = [1, 1]} : vector<17x96xf32> to vector<17x32xf32>
    %55 = vector.extract_strided_slice %53 {offsets = [0, 32], sizes = [17, 32], strides = [1, 1]} : vector<17x96xf32> to vector<17x32xf32>
    %56 = vector.extract_strided_slice %53 {offsets = [0, 64], sizes = [17, 32], strides = [1, 1]} : vector<17x96xf32> to vector<17x32xf32>
    %c0_30 = arith.constant 0 : index
    %c0_31 = arith.constant 0 : index
    %c0_32 = arith.constant 0 : index
    %57 = vector.load %arg11[%c0_30, %c0_31, %c0_32] : memref<2x32x32xf32, #tpu.memory_space<vmem>>, vector<1x32x32xf32>
    %58 = vector.shape_cast %57 : vector<1x32x32xf32> to vector<32x32xf32>
    %59 = vector.extract_strided_slice %54 {offsets = [0, 0], sizes = [17, 16], strides = [1, 1]} : vector<17x32xf32> to vector<17x16xf32>
    %60 = vector.extract_strided_slice %55 {offsets = [0, 0], sizes = [17, 16], strides = [1, 1]} : vector<17x32xf32> to vector<17x16xf32>
    %61 = vector.extract_strided_slice %56 {offsets = [0, 0], sizes = [17, 16], strides = [1, 1]} : vector<17x32xf32> to vector<17x16xf32>
    %cst_33 = arith.constant dense<0.000000e+00> : vector<17x17xf32>
    %62 = tpu.matmul %59, %60, %cst_33 {dimension_numbers = #tpu.dot_dimension_numbers<[1], [1], [0], [0], [0, 0, 1, 0], [], []>} : vector<17x16xf32>, vector<17x16xf32>, vector<17x17xf32> -> vector<17x17xf32>
    %cst_34 = arith.constant 2.500000e-01 : f32
    %63 = vector.broadcast %cst_34 : f32 to vector<17x17xf32>
    %64 = arith.mulf %62, %63 : vector<17x17xf32>
    %cst_35 = arith.constant dense<0xFF800000> : vector<17xf32>
    %65 = vector.multi_reduction <maximumf>, %64, %cst_35 [1] : vector<17x17xf32> to vector<17xf32>
    %66 = vector.shape_cast %65 : vector<17xf32> to vector<17x1xf32>
    %67 = vector.broadcast %66 : vector<17x1xf32> to vector<17x17xf32>
    %68 = arith.subf %64, %67 : vector<17x17xf32>
    %69 = math.exp %68 : vector<17x17xf32>
    %cst_36 = arith.constant dense<0.000000e+00> : vector<17xf32>
    %70 = vector.multi_reduction <add>, %69, %cst_36 [1] : vector<17x17xf32> to vector<17xf32>
    %71 = vector.shape_cast %70 : vector<17xf32> to vector<17x1xf32>
    %72 = vector.broadcast %71 : vector<17x1xf32> to vector<17x17xf32>
    %73 = arith.divf %69, %72 : vector<17x17xf32>
    %cst_37 = arith.constant dense<0.000000e+00> : vector<17x16xf32>
    %74 = tpu.matmul %73, %61, %cst_37 {dimension_numbers = #tpu.dot_dimension_numbers<[1], [0], [0], [1], [0, 0, 1, 1], [], []>} : vector<17x17xf32>, vector<17x16xf32>, vector<17x16xf32> -> vector<17x16xf32>
    %75 = vector.extract_strided_slice %58 {offsets = [0, 0], sizes = [16, 32], strides = [1, 1]} : vector<32x32xf32> to vector<16x32xf32>
    %cst_38 = arith.constant dense<0.000000e+00> : vector<17x32xf32>
    %76 = tpu.matmul %74, %75, %cst_38 {dimension_numbers = #tpu.dot_dimension_numbers<[1], [0], [0], [1], [0, 0, 1, 1], [], []>} : vector<17x16xf32>, vector<16x32xf32>, vector<17x32xf32> -> vector<17x32xf32>
    %77 = vector.extract_strided_slice %54 {offsets = [0, 16], sizes = [17, 16], strides = [1, 1]} : vector<17x32xf32> to vector<17x16xf32>
    %78 = vector.extract_strided_slice %55 {offsets = [0, 16], sizes = [17, 16], strides = [1, 1]} : vector<17x32xf32> to vector<17x16xf32>
    %79 = vector.extract_strided_slice %56 {offsets = [0, 16], sizes = [17, 16], strides = [1, 1]} : vector<17x32xf32> to vector<17x16xf32>
    %cst_39 = arith.constant dense<0.000000e+00> : vector<17x17xf32>
    %80 = tpu.matmul %77, %78, %cst_39 {dimension_numbers = #tpu.dot_dimension_numbers<[1], [1], [0], [0], [0, 0, 1, 0], [], []>} : vector<17x16xf32>, vector<17x16xf32>, vector<17x17xf32> -> vector<17x17xf32>
    %cst_40 = arith.constant 2.500000e-01 : f32
    %81 = vector.broadcast %cst_40 : f32 to vector<17x17xf32>
    %82 = arith.mulf %80, %81 : vector<17x17xf32>
    %cst_41 = arith.constant dense<0xFF800000> : vector<17xf32>
    %83 = vector.multi_reduction <maximumf>, %82, %cst_41 [1] : vector<17x17xf32> to vector<17xf32>
    %84 = vector.shape_cast %83 : vector<17xf32> to vector<17x1xf32>
    %85 = vector.broadcast %84 : vector<17x1xf32> to vector<17x17xf32>
    %86 = arith.subf %82, %85 : vector<17x17xf32>
    %87 = math.exp %86 : vector<17x17xf32>
    %cst_42 = arith.constant dense<0.000000e+00> : vector<17xf32>
    %88 = vector.multi_reduction <add>, %87, %cst_42 [1] : vector<17x17xf32> to vector<17xf32>
    %89 = vector.shape_cast %88 : vector<17xf32> to vector<17x1xf32>
    %90 = vector.broadcast %89 : vector<17x1xf32> to vector<17x17xf32>
    %91 = arith.divf %87, %90 : vector<17x17xf32>
    %cst_43 = arith.constant dense<0.000000e+00> : vector<17x16xf32>
    %92 = tpu.matmul %91, %79, %cst_43 {dimension_numbers = #tpu.dot_dimension_numbers<[1], [0], [0], [1], [0, 0, 1, 1], [], []>} : vector<17x17xf32>, vector<17x16xf32>, vector<17x16xf32> -> vector<17x16xf32>
    %93 = vector.extract_strided_slice %58 {offsets = [16, 0], sizes = [16, 32], strides = [1, 1]} : vector<32x32xf32> to vector<16x32xf32>
    %cst_44 = arith.constant dense<0.000000e+00> : vector<17x32xf32>
    %94 = tpu.matmul %92, %93, %cst_44 {dimension_numbers = #tpu.dot_dimension_numbers<[1], [0], [0], [1], [0, 0, 1, 1], [], []>} : vector<17x16xf32>, vector<16x32xf32>, vector<17x32xf32> -> vector<17x32xf32>
    %95 = arith.addf %76, %94 : vector<17x32xf32>
    %96 = arith.addf %20, %95 : vector<17x32xf32>
    %c0_45 = arith.constant 0 : index
    %c0_46 = arith.constant 0 : index
    %c0_47 = arith.constant 0 : index
    %97 = vector.load %arg12[%c0_45, %c0_46, %c0_47] : memref<2x1x32xf32, #tpu.memory_space<vmem>>, vector<1x1x32xf32>
    %98 = vector.shape_cast %97 : vector<1x1x32xf32> to vector<1x32xf32>
    %99 = vector.broadcast %98 : vector<1x32xf32> to vector<17x32xf32>
    %100 = arith.addf %96, %99 : vector<17x32xf32>
    %c0_48 = arith.constant 0 : index
    %c0_49 = arith.constant 0 : index
    %c0_50 = arith.constant 0 : index
    %101 = vector.load %arg13[%c0_48, %c0_49, %c0_50] : memref<2x1x32xf32, #tpu.memory_space<vmem>>, vector<1x1x32xf32>
    %102 = vector.shape_cast %101 : vector<1x1x32xf32> to vector<1x32xf32>
    %c0_51 = arith.constant 0 : index
    %c0_52 = arith.constant 0 : index
    %c0_53 = arith.constant 0 : index
    %103 = vector.load %arg14[%c0_51, %c0_52, %c0_53] : memref<2x1x32xf32, #tpu.memory_space<vmem>>, vector<1x1x32xf32>
    %104 = vector.shape_cast %103 : vector<1x1x32xf32> to vector<1x32xf32>
    %cst_54 = arith.constant dense<0.000000e+00> : vector<17xf32>
    %105 = vector.multi_reduction <add>, %100, %cst_54 [1] : vector<17x32xf32> to vector<17xf32>
    %106 = vector.shape_cast %105 : vector<17xf32> to vector<17x1xf32>
    %cst_55 = arith.constant 3.200000e+01 : f32
    %107 = vector.broadcast %cst_55 : f32 to vector<17x1xf32>
    %108 = arith.divf %106, %107 : vector<17x1xf32>
    %109 = vector.broadcast %108 : vector<17x1xf32> to vector<17x32xf32>
    %110 = arith.subf %100, %109 : vector<17x32xf32>
    %111 = arith.mulf %110, %110 : vector<17x32xf32>
    %cst_56 = arith.constant dense<0.000000e+00> : vector<17xf32>
    %112 = vector.multi_reduction <add>, %111, %cst_56 [1] : vector<17x32xf32> to vector<17xf32>
    %113 = vector.shape_cast %112 : vector<17xf32> to vector<17x1xf32>
    %cst_57 = arith.constant 3.200000e+01 : f32
    %114 = vector.broadcast %cst_57 : f32 to vector<17x1xf32>
    %115 = arith.divf %113, %114 : vector<17x1xf32>
    %116 = vector.broadcast %108 : vector<17x1xf32> to vector<17x32xf32>
    %117 = arith.subf %100, %116 : vector<17x32xf32>
    %cst_58 = arith.constant 9.99999997E-7 : f32
    %118 = vector.broadcast %cst_58 : f32 to vector<17x1xf32>
    %119 = arith.addf %115, %118 : vector<17x1xf32>
    %120 = math.rsqrt %119 : vector<17x1xf32>
    %121 = vector.broadcast %120 : vector<17x1xf32> to vector<17x32xf32>
    %122 = arith.mulf %117, %121 : vector<17x32xf32>
    %123 = vector.broadcast %102 : vector<1x32xf32> to vector<17x32xf32>
    %124 = arith.mulf %122, %123 : vector<17x32xf32>
    %125 = vector.broadcast %104 : vector<1x32xf32> to vector<17x32xf32>
    %126 = arith.addf %124, %125 : vector<17x32xf32>
    %c0_59 = arith.constant 0 : index
    %c0_60 = arith.constant 0 : index
    %c0_61 = arith.constant 0 : index
    %127 = vector.load %arg15[%c0_59, %c0_60, %c0_61] : memref<2x32x64xf32, #tpu.memory_space<vmem>>, vector<1x32x64xf32>
    %128 = vector.shape_cast %127 : vector<1x32x64xf32> to vector<32x64xf32>
    %cst_62 = arith.constant dense<0.000000e+00> : vector<17x64xf32>
    %129 = tpu.matmul %126, %128, %cst_62 {dimension_numbers = #tpu.dot_dimension_numbers<[1], [0], [0], [1], [0, 0, 1, 1], [], []>} : vector<17x32xf32>, vector<32x64xf32>, vector<17x64xf32> -> vector<17x64xf32>
    %c0_63 = arith.constant 0 : index
    %c0_64 = arith.constant 0 : index
    %c0_65 = arith.constant 0 : index
    %130 = vector.load %arg16[%c0_63, %c0_64, %c0_65] : memref<2x1x64xf32, #tpu.memory_space<vmem>>, vector<1x1x64xf32>
    %131 = vector.shape_cast %130 : vector<1x1x64xf32> to vector<1x64xf32>
    %132 = vector.broadcast %131 : vector<1x64xf32> to vector<17x64xf32>
    %133 = arith.addf %129, %132 : vector<17x64xf32>
    %cst_66 = arith.constant 5.000000e-01 : f32
    %134 = vector.broadcast %cst_66 : f32 to vector<17x64xf32>
    %135 = arith.mulf %134, %133 : vector<17x64xf32>
    %cst_67 = arith.constant 0.707106769 : f32
    %136 = vector.broadcast %cst_67 : f32 to vector<17x64xf32>
    %137 = arith.mulf %133, %136 : vector<17x64xf32>
    %138 = math.erf %137 : vector<17x64xf32>
    %cst_68 = arith.constant 1.000000e+00 : f32
    %139 = vector.broadcast %cst_68 : f32 to vector<17x64xf32>
    %140 = arith.addf %139, %138 : vector<17x64xf32>
    %141 = arith.mulf %135, %140 : vector<17x64xf32>
    %c0_69 = arith.constant 0 : index
    %c0_70 = arith.constant 0 : index
    %c0_71 = arith.constant 0 : index
    %142 = vector.load %arg17[%c0_69, %c0_70, %c0_71] : memref<2x64x32xf32, #tpu.memory_space<vmem>>, vector<1x64x32xf32>
    %143 = vector.shape_cast %142 : vector<1x64x32xf32> to vector<64x32xf32>
    %cst_72 = arith.constant dense<0.000000e+00> : vector<17x32xf32>
    %144 = tpu.matmul %141, %143, %cst_72 {dimension_numbers = #tpu.dot_dimension_numbers<[1], [0], [0], [1], [0, 0, 1, 1], [], []>} : vector<17x64xf32>, vector<64x32xf32>, vector<17x32xf32> -> vector<17x32xf32>
    %c0_73 = arith.constant 0 : index
    %c0_74 = arith.constant 0 : index
    %c0_75 = arith.constant 0 : index
    %145 = vector.load %arg18[%c0_73, %c0_74, %c0_75] : memref<2x1x32xf32, #tpu.memory_space<vmem>>, vector<1x1x32xf32>
    %146 = vector.shape_cast %145 : vector<1x1x32xf32> to vector<1x32xf32>
    %147 = vector.broadcast %146 : vector<1x32xf32> to vector<17x32xf32>
    %148 = arith.addf %144, %147 : vector<17x32xf32>
    %149 = arith.addf %100, %148 : vector<17x32xf32>
    %c1 = arith.constant 1 : index
    %c0_76 = arith.constant 0 : index
    %c0_77 = arith.constant 0 : index
    %150 = vector.load %arg7[%c1, %c0_76, %c0_77] : memref<2x1x32xf32, #tpu.memory_space<vmem>>, vector<1x1x32xf32>
    %151 = vector.shape_cast %150 : vector<1x1x32xf32> to vector<1x32xf32>
    %c1_78 = arith.constant 1 : index
    %c0_79 = arith.constant 0 : index
    %c0_80 = arith.constant 0 : index
    %152 = vector.load %arg8[%c1_78, %c0_79, %c0_80] : memref<2x1x32xf32, #tpu.memory_space<vmem>>, vector<1x1x32xf32>
    %153 = vector.shape_cast %152 : vector<1x1x32xf32> to vector<1x32xf32>
    %cst_81 = arith.constant dense<0.000000e+00> : vector<17xf32>
    %154 = vector.multi_reduction <add>, %149, %cst_81 [1] : vector<17x32xf32> to vector<17xf32>
    %155 = vector.shape_cast %154 : vector<17xf32> to vector<17x1xf32>
    %cst_82 = arith.constant 3.200000e+01 : f32
    %156 = vector.broadcast %cst_82 : f32 to vector<17x1xf32>
    %157 = arith.divf %155, %156 : vector<17x1xf32>
    %158 = vector.broadcast %157 : vector<17x1xf32> to vector<17x32xf32>
    %159 = arith.subf %149, %158 : vector<17x32xf32>
    %160 = arith.mulf %159, %159 : vector<17x32xf32>
    %cst_83 = arith.constant dense<0.000000e+00> : vector<17xf32>
    %161 = vector.multi_reduction <add>, %160, %cst_83 [1] : vector<17x32xf32> to vector<17xf32>
    %162 = vector.shape_cast %161 : vector<17xf32> to vector<17x1xf32>
    %cst_84 = arith.constant 3.200000e+01 : f32
    %163 = vector.broadcast %cst_84 : f32 to vector<17x1xf32>
    %164 = arith.divf %162, %163 : vector<17x1xf32>
    %165 = vector.broadcast %157 : vector<17x1xf32> to vector<17x32xf32>
    %166 = arith.subf %149, %165 : vector<17x32xf32>
    %cst_85 = arith.constant 9.99999997E-7 : f32
    %167 = vector.broadcast %cst_85 : f32 to vector<17x1xf32>
    %168 = arith.addf %164, %167 : vector<17x1xf32>
    %169 = math.rsqrt %168 : vector<17x1xf32>
    %170 = vector.broadcast %169 : vector<17x1xf32> to vector<17x32xf32>
    %171 = arith.mulf %166, %170 : vector<17x32xf32>
    %172 = vector.broadcast %151 : vector<1x32xf32> to vector<17x32xf32>
    %173 = arith.mulf %171, %172 : vector<17x32xf32>
    %174 = vector.broadcast %153 : vector<1x32xf32> to vector<17x32xf32>
    %175 = arith.addf %173, %174 : vector<17x32xf32>
    %c1_86 = arith.constant 1 : index
    %c0_87 = arith.constant 0 : index
    %c0_88 = arith.constant 0 : index
    %176 = vector.load %arg9[%c1_86, %c0_87, %c0_88] : memref<2x32x96xf32, #tpu.memory_space<vmem>>, vector<1x32x96xf32>
    %177 = vector.shape_cast %176 : vector<1x32x96xf32> to vector<32x96xf32>
    %cst_89 = arith.constant dense<0.000000e+00> : vector<17x96xf32>
    %178 = tpu.matmul %175, %177, %cst_89 {dimension_numbers = #tpu.dot_dimension_numbers<[1], [0], [0], [1], [0, 0, 1, 1], [], []>} : vector<17x32xf32>, vector<32x96xf32>, vector<17x96xf32> -> vector<17x96xf32>
    %c1_90 = arith.constant 1 : index
    %c0_91 = arith.constant 0 : index
    %c0_92 = arith.constant 0 : index
    %179 = vector.load %arg10[%c1_90, %c0_91, %c0_92] : memref<2x1x96xf32, #tpu.memory_space<vmem>>, vector<1x1x96xf32>
    %180 = vector.shape_cast %179 : vector<1x1x96xf32> to vector<1x96xf32>
    %181 = vector.broadcast %180 : vector<1x96xf32> to vector<17x96xf32>
    %182 = arith.addf %178, %181 : vector<17x96xf32>
    %183 = vector.extract_strided_slice %182 {offsets = [0, 0], sizes = [17, 32], strides = [1, 1]} : vector<17x96xf32> to vector<17x32xf32>
    %184 = vector.extract_strided_slice %182 {offsets = [0, 32], sizes = [17, 32], strides = [1, 1]} : vector<17x96xf32> to vector<17x32xf32>
    %185 = vector.extract_strided_slice %182 {offsets = [0, 64], sizes = [17, 32], strides = [1, 1]} : vector<17x96xf32> to vector<17x32xf32>
    %c1_93 = arith.constant 1 : index
    %c0_94 = arith.constant 0 : index
    %c0_95 = arith.constant 0 : index
    %186 = vector.load %arg11[%c1_93, %c0_94, %c0_95] : memref<2x32x32xf32, #tpu.memory_space<vmem>>, vector<1x32x32xf32>
    %187 = vector.shape_cast %186 : vector<1x32x32xf32> to vector<32x32xf32>
    %188 = vector.extract_strided_slice %183 {offsets = [0, 0], sizes = [17, 16], strides = [1, 1]} : vector<17x32xf32> to vector<17x16xf32>
    %189 = vector.extract_strided_slice %184 {offsets = [0, 0], sizes = [17, 16], strides = [1, 1]} : vector<17x32xf32> to vector<17x16xf32>
    %190 = vector.extract_strided_slice %185 {offsets = [0, 0], sizes = [17, 16], strides = [1, 1]} : vector<17x32xf32> to vector<17x16xf32>
    %cst_96 = arith.constant dense<0.000000e+00> : vector<17x17xf32>
    %191 = tpu.matmul %188, %189, %cst_96 {dimension_numbers = #tpu.dot_dimension_numbers<[1], [1], [0], [0], [0, 0, 1, 0], [], []>} : vector<17x16xf32>, vector<17x16xf32>, vector<17x17xf32> -> vector<17x17xf32>
    %cst_97 = arith.constant 2.500000e-01 : f32
    %192 = vector.broadcast %cst_97 : f32 to vector<17x17xf32>
    %193 = arith.mulf %191, %192 : vector<17x17xf32>
    %cst_98 = arith.constant dense<0xFF800000> : vector<17xf32>
    %194 = vector.multi_reduction <maximumf>, %193, %cst_98 [1] : vector<17x17xf32> to vector<17xf32>
    %195 = vector.shape_cast %194 : vector<17xf32> to vector<17x1xf32>
    %196 = vector.broadcast %195 : vector<17x1xf32> to vector<17x17xf32>
    %197 = arith.subf %193, %196 : vector<17x17xf32>
    %198 = math.exp %197 : vector<17x17xf32>
    %cst_99 = arith.constant dense<0.000000e+00> : vector<17xf32>
    %199 = vector.multi_reduction <add>, %198, %cst_99 [1] : vector<17x17xf32> to vector<17xf32>
    %200 = vector.shape_cast %199 : vector<17xf32> to vector<17x1xf32>
    %201 = vector.broadcast %200 : vector<17x1xf32> to vector<17x17xf32>
    %202 = arith.divf %198, %201 : vector<17x17xf32>
    %cst_100 = arith.constant dense<0.000000e+00> : vector<17x16xf32>
    %203 = tpu.matmul %202, %190, %cst_100 {dimension_numbers = #tpu.dot_dimension_numbers<[1], [0], [0], [1], [0, 0, 1, 1], [], []>} : vector<17x17xf32>, vector<17x16xf32>, vector<17x16xf32> -> vector<17x16xf32>
    %204 = vector.extract_strided_slice %187 {offsets = [0, 0], sizes = [16, 32], strides = [1, 1]} : vector<32x32xf32> to vector<16x32xf32>
    %cst_101 = arith.constant dense<0.000000e+00> : vector<17x32xf32>
    %205 = tpu.matmul %203, %204, %cst_101 {dimension_numbers = #tpu.dot_dimension_numbers<[1], [0], [0], [1], [0, 0, 1, 1], [], []>} : vector<17x16xf32>, vector<16x32xf32>, vector<17x32xf32> -> vector<17x32xf32>
    %206 = vector.extract_strided_slice %183 {offsets = [0, 16], sizes = [17, 16], strides = [1, 1]} : vector<17x32xf32> to vector<17x16xf32>
    %207 = vector.extract_strided_slice %184 {offsets = [0, 16], sizes = [17, 16], strides = [1, 1]} : vector<17x32xf32> to vector<17x16xf32>
    %208 = vector.extract_strided_slice %185 {offsets = [0, 16], sizes = [17, 16], strides = [1, 1]} : vector<17x32xf32> to vector<17x16xf32>
    %cst_102 = arith.constant dense<0.000000e+00> : vector<17x17xf32>
    %209 = tpu.matmul %206, %207, %cst_102 {dimension_numbers = #tpu.dot_dimension_numbers<[1], [1], [0], [0], [0, 0, 1, 0], [], []>} : vector<17x16xf32>, vector<17x16xf32>, vector<17x17xf32> -> vector<17x17xf32>
    %cst_103 = arith.constant 2.500000e-01 : f32
    %210 = vector.broadcast %cst_103 : f32 to vector<17x17xf32>
    %211 = arith.mulf %209, %210 : vector<17x17xf32>
    %cst_104 = arith.constant dense<0xFF800000> : vector<17xf32>
    %212 = vector.multi_reduction <maximumf>, %211, %cst_104 [1] : vector<17x17xf32> to vector<17xf32>
    %213 = vector.shape_cast %212 : vector<17xf32> to vector<17x1xf32>
    %214 = vector.broadcast %213 : vector<17x1xf32> to vector<17x17xf32>
    %215 = arith.subf %211, %214 : vector<17x17xf32>
    %216 = math.exp %215 : vector<17x17xf32>
    %cst_105 = arith.constant dense<0.000000e+00> : vector<17xf32>
    %217 = vector.multi_reduction <add>, %216, %cst_105 [1] : vector<17x17xf32> to vector<17xf32>
    %218 = vector.shape_cast %217 : vector<17xf32> to vector<17x1xf32>
    %219 = vector.broadcast %218 : vector<17x1xf32> to vector<17x17xf32>
    %220 = arith.divf %216, %219 : vector<17x17xf32>
    %cst_106 = arith.constant dense<0.000000e+00> : vector<17x16xf32>
    %221 = tpu.matmul %220, %208, %cst_106 {dimension_numbers = #tpu.dot_dimension_numbers<[1], [0], [0], [1], [0, 0, 1, 1], [], []>} : vector<17x17xf32>, vector<17x16xf32>, vector<17x16xf32> -> vector<17x16xf32>
    %222 = vector.extract_strided_slice %187 {offsets = [16, 0], sizes = [16, 32], strides = [1, 1]} : vector<32x32xf32> to vector<16x32xf32>
    %cst_107 = arith.constant dense<0.000000e+00> : vector<17x32xf32>
    %223 = tpu.matmul %221, %222, %cst_107 {dimension_numbers = #tpu.dot_dimension_numbers<[1], [0], [0], [1], [0, 0, 1, 1], [], []>} : vector<17x16xf32>, vector<16x32xf32>, vector<17x32xf32> -> vector<17x32xf32>
    %224 = arith.addf %205, %223 : vector<17x32xf32>
    %225 = arith.addf %149, %224 : vector<17x32xf32>
    %c1_108 = arith.constant 1 : index
    %c0_109 = arith.constant 0 : index
    %c0_110 = arith.constant 0 : index
    %226 = vector.load %arg12[%c1_108, %c0_109, %c0_110] : memref<2x1x32xf32, #tpu.memory_space<vmem>>, vector<1x1x32xf32>
    %227 = vector.shape_cast %226 : vector<1x1x32xf32> to vector<1x32xf32>
    %228 = vector.broadcast %227 : vector<1x32xf32> to vector<17x32xf32>
    %229 = arith.addf %225, %228 : vector<17x32xf32>
    %c1_111 = arith.constant 1 : index
    %c0_112 = arith.constant 0 : index
    %c0_113 = arith.constant 0 : index
    %230 = vector.load %arg13[%c1_111, %c0_112, %c0_113] : memref<2x1x32xf32, #tpu.memory_space<vmem>>, vector<1x1x32xf32>
    %231 = vector.shape_cast %230 : vector<1x1x32xf32> to vector<1x32xf32>
    %c1_114 = arith.constant 1 : index
    %c0_115 = arith.constant 0 : index
    %c0_116 = arith.constant 0 : index
    %232 = vector.load %arg14[%c1_114, %c0_115, %c0_116] : memref<2x1x32xf32, #tpu.memory_space<vmem>>, vector<1x1x32xf32>
    %233 = vector.shape_cast %232 : vector<1x1x32xf32> to vector<1x32xf32>
    %cst_117 = arith.constant dense<0.000000e+00> : vector<17xf32>
    %234 = vector.multi_reduction <add>, %229, %cst_117 [1] : vector<17x32xf32> to vector<17xf32>
    %235 = vector.shape_cast %234 : vector<17xf32> to vector<17x1xf32>
    %cst_118 = arith.constant 3.200000e+01 : f32
    %236 = vector.broadcast %cst_118 : f32 to vector<17x1xf32>
    %237 = arith.divf %235, %236 : vector<17x1xf32>
    %238 = vector.broadcast %237 : vector<17x1xf32> to vector<17x32xf32>
    %239 = arith.subf %229, %238 : vector<17x32xf32>
    %240 = arith.mulf %239, %239 : vector<17x32xf32>
    %cst_119 = arith.constant dense<0.000000e+00> : vector<17xf32>
    %241 = vector.multi_reduction <add>, %240, %cst_119 [1] : vector<17x32xf32> to vector<17xf32>
    %242 = vector.shape_cast %241 : vector<17xf32> to vector<17x1xf32>
    %cst_120 = arith.constant 3.200000e+01 : f32
    %243 = vector.broadcast %cst_120 : f32 to vector<17x1xf32>
    %244 = arith.divf %242, %243 : vector<17x1xf32>
    %245 = vector.broadcast %237 : vector<17x1xf32> to vector<17x32xf32>
    %246 = arith.subf %229, %245 : vector<17x32xf32>
    %cst_121 = arith.constant 9.99999997E-7 : f32
    %247 = vector.broadcast %cst_121 : f32 to vector<17x1xf32>
    %248 = arith.addf %244, %247 : vector<17x1xf32>
    %249 = math.rsqrt %248 : vector<17x1xf32>
    %250 = vector.broadcast %249 : vector<17x1xf32> to vector<17x32xf32>
    %251 = arith.mulf %246, %250 : vector<17x32xf32>
    %252 = vector.broadcast %231 : vector<1x32xf32> to vector<17x32xf32>
    %253 = arith.mulf %251, %252 : vector<17x32xf32>
    %254 = vector.broadcast %233 : vector<1x32xf32> to vector<17x32xf32>
    %255 = arith.addf %253, %254 : vector<17x32xf32>
    %c1_122 = arith.constant 1 : index
    %c0_123 = arith.constant 0 : index
    %c0_124 = arith.constant 0 : index
    %256 = vector.load %arg15[%c1_122, %c0_123, %c0_124] : memref<2x32x64xf32, #tpu.memory_space<vmem>>, vector<1x32x64xf32>
    %257 = vector.shape_cast %256 : vector<1x32x64xf32> to vector<32x64xf32>
    %cst_125 = arith.constant dense<0.000000e+00> : vector<17x64xf32>
    %258 = tpu.matmul %255, %257, %cst_125 {dimension_numbers = #tpu.dot_dimension_numbers<[1], [0], [0], [1], [0, 0, 1, 1], [], []>} : vector<17x32xf32>, vector<32x64xf32>, vector<17x64xf32> -> vector<17x64xf32>
    %c1_126 = arith.constant 1 : index
    %c0_127 = arith.constant 0 : index
    %c0_128 = arith.constant 0 : index
    %259 = vector.load %arg16[%c1_126, %c0_127, %c0_128] : memref<2x1x64xf32, #tpu.memory_space<vmem>>, vector<1x1x64xf32>
    %260 = vector.shape_cast %259 : vector<1x1x64xf32> to vector<1x64xf32>
    %261 = vector.broadcast %260 : vector<1x64xf32> to vector<17x64xf32>
    %262 = arith.addf %258, %261 : vector<17x64xf32>
    %cst_129 = arith.constant 5.000000e-01 : f32
    %263 = vector.broadcast %cst_129 : f32 to vector<17x64xf32>
    %264 = arith.mulf %263, %262 : vector<17x64xf32>
    %cst_130 = arith.constant 0.707106769 : f32
    %265 = vector.broadcast %cst_130 : f32 to vector<17x64xf32>
    %266 = arith.mulf %262, %265 : vector<17x64xf32>
    %267 = math.erf %266 : vector<17x64xf32>
    %cst_131 = arith.constant 1.000000e+00 : f32
    %268 = vector.broadcast %cst_131 : f32 to vector<17x64xf32>
    %269 = arith.addf %268, %267 : vector<17x64xf32>
    %270 = arith.mulf %264, %269 : vector<17x64xf32>
    %c1_132 = arith.constant 1 : index
    %c0_133 = arith.constant 0 : index
    %c0_134 = arith.constant 0 : index
    %271 = vector.load %arg17[%c1_132, %c0_133, %c0_134] : memref<2x64x32xf32, #tpu.memory_space<vmem>>, vector<1x64x32xf32>
    %272 = vector.shape_cast %271 : vector<1x64x32xf32> to vector<64x32xf32>
    %cst_135 = arith.constant dense<0.000000e+00> : vector<17x32xf32>
    %273 = tpu.matmul %270, %272, %cst_135 {dimension_numbers = #tpu.dot_dimension_numbers<[1], [0], [0], [1], [0, 0, 1, 1], [], []>} : vector<17x64xf32>, vector<64x32xf32>, vector<17x32xf32> -> vector<17x32xf32>
    %c1_136 = arith.constant 1 : index
    %c0_137 = arith.constant 0 : index
    %c0_138 = arith.constant 0 : index
    %274 = vector.load %arg18[%c1_136, %c0_137, %c0_138] : memref<2x1x32xf32, #tpu.memory_space<vmem>>, vector<1x1x32xf32>
    %275 = vector.shape_cast %274 : vector<1x1x32xf32> to vector<1x32xf32>
    %276 = vector.broadcast %275 : vector<1x32xf32> to vector<17x32xf32>
    %277 = arith.addf %273, %276 : vector<17x32xf32>
    %278 = arith.addf %229, %277 : vector<17x32xf32>
    %c0_139 = arith.constant 0 : index
    %c0_140 = arith.constant 0 : index
    %279 = vector.load %arg19[%c0_139, %c0_140] : memref<1x32xf32, #tpu.memory_space<vmem>>, vector<1x32xf32>
    %c0_141 = arith.constant 0 : index
    %c0_142 = arith.constant 0 : index
    %280 = vector.load %arg20[%c0_141, %c0_142] : memref<1x32xf32, #tpu.memory_space<vmem>>, vector<1x32xf32>
    %cst_143 = arith.constant dense<0.000000e+00> : vector<17xf32>
    %281 = vector.multi_reduction <add>, %278, %cst_143 [1] : vector<17x32xf32> to vector<17xf32>
    %282 = vector.shape_cast %281 : vector<17xf32> to vector<17x1xf32>
    %cst_144 = arith.constant 3.200000e+01 : f32
    %283 = vector.broadcast %cst_144 : f32 to vector<17x1xf32>
    %284 = arith.divf %282, %283 : vector<17x1xf32>
    %285 = vector.broadcast %284 : vector<17x1xf32> to vector<17x32xf32>
    %286 = arith.subf %278, %285 : vector<17x32xf32>
    %287 = arith.mulf %286, %286 : vector<17x32xf32>
    %cst_145 = arith.constant dense<0.000000e+00> : vector<17xf32>
    %288 = vector.multi_reduction <add>, %287, %cst_145 [1] : vector<17x32xf32> to vector<17xf32>
    %289 = vector.shape_cast %288 : vector<17xf32> to vector<17x1xf32>
    %cst_146 = arith.constant 3.200000e+01 : f32
    %290 = vector.broadcast %cst_146 : f32 to vector<17x1xf32>
    %291 = arith.divf %289, %290 : vector<17x1xf32>
    %292 = vector.broadcast %284 : vector<17x1xf32> to vector<17x32xf32>
    %293 = arith.subf %278, %292 : vector<17x32xf32>
    %cst_147 = arith.constant 9.99999997E-7 : f32
    %294 = vector.broadcast %cst_147 : f32 to vector<17x1xf32>
    %295 = arith.addf %291, %294 : vector<17x1xf32>
    %296 = math.rsqrt %295 : vector<17x1xf32>
    %297 = vector.broadcast %296 : vector<17x1xf32> to vector<17x32xf32>
    %298 = arith.mulf %293, %297 : vector<17x32xf32>
    %299 = vector.broadcast %279 : vector<1x32xf32> to vector<17x32xf32>
    %300 = arith.mulf %298, %299 : vector<17x32xf32>
    %301 = vector.broadcast %280 : vector<1x32xf32> to vector<17x32xf32>
    %302 = arith.addf %300, %301 : vector<17x32xf32>
    %303 = vector.extract_strided_slice %302 {offsets = [0, 0], sizes = [1, 32], strides = [1, 1]} : vector<17x32xf32> to vector<1x32xf32>
    %c0_148 = arith.constant 0 : index
    %c0_149 = arith.constant 0 : index
    %304 = vector.load %arg21[%c0_148, %c0_149] : memref<32x64xf32, #tpu.memory_space<vmem>>, vector<32x64xf32>
    %cst_150 = arith.constant dense<0.000000e+00> : vector<1x64xf32>
    %305 = tpu.matmul %303, %304, %cst_150 {dimension_numbers = #tpu.dot_dimension_numbers<[1], [0], [0], [1], [0, 0, 1, 1], [], []>} : vector<1x32xf32>, vector<32x64xf32>, vector<1x64xf32> -> vector<1x64xf32>
    %c0_151 = arith.constant 0 : index
    %c0_152 = arith.constant 0 : index
    %306 = vector.load %arg22[%c0_151, %c0_152] : memref<1x64xf32, #tpu.memory_space<vmem>>, vector<1x64xf32>
    %307 = arith.addf %305, %306 : vector<1x64xf32>
    %c0_153 = arith.constant 0 : index
    %c0_154 = arith.constant 0 : index
    %c0_155 = arith.constant 0 : index
    %308 = vector.load %arg24[%c0_153, %c0_154, %c0_155] : memref<1x1x64xf32, #tpu.memory_space<vmem>>, vector<1x1x64xf32>
    %309 = vector.shape_cast %308 : vector<1x1x64xf32> to vector<1x64xf32>
    %310 = vector.shape_cast %307 : vector<1x64xf32> to vector<1x1x64xf32>
    tpu.vector_store %arg24[%c0_153, %c0_154, %c0_155], %310 {strides = array<i32>} : memref<1x1x64xf32, #tpu.memory_space<vmem>>, vector<1x1x64xf32>,
    %311 = arith.mulf %307, %307 : vector<1x64xf32>
    %cst_156 = arith.constant dense<0.000000e+00> : vector<1xf32>
    %312 = vector.multi_reduction <add>, %311, %cst_156 [1] : vector<1x64xf32> to vector<1xf32>
    %313 = vector.shape_cast %312 : vector<1xf32> to vector<1x1xf32>
    %314 = math.sqrt %313 : vector<1x1xf32>
    %cst_157 = arith.constant 9.99999996E-13 : f32
    %315 = vector.broadcast %cst_157 : f32 to vector<1x1xf32>
    %316 = arith.maximumf %314, %315 : vector<1x1xf32>
    %317 = vector.broadcast %316 : vector<1x1xf32> to vector<1x64xf32>
    %318 = arith.divf %307, %317 : vector<1x64xf32>
    %c0_158 = arith.constant 0 : index
    %c0_159 = arith.constant 0 : index
    %319 = vector.load %arg23[%c0_158, %c0_159] : memref<64x10xf32, #tpu.memory_space<vmem>>, vector<64x10xf32>
    %320 = arith.mulf %319, %319 : vector<64x10xf32>
    %cst_160 = arith.constant dense<0.000000e+00> : vector<10xf32>
    %321 = vector.multi_reduction <add>, %320, %cst_160 [0] : vector<64x10xf32> to vector<10xf32>
    %322 = vector.shape_cast %321 : vector<10xf32> to vector<1x10xf32>
    %323 = math.sqrt %322 : vector<1x10xf32>
    %cst_161 = arith.constant 9.99999996E-13 : f32
    %324 = vector.broadcast %cst_161 : f32 to vector<1x10xf32>
    %325 = arith.maximumf %323, %324 : vector<1x10xf32>
    %326 = vector.broadcast %325 : vector<1x10xf32> to vector<64x10xf32>
    %327 = arith.divf %319, %326 : vector<64x10xf32>
    %cst_162 = arith.constant dense<0.000000e+00> : vector<1x10xf32>
    %328 = tpu.matmul %318, %327, %cst_162 {dimension_numbers = #tpu.dot_dimension_numbers<[1], [0], [0], [1], [0, 0, 1, 1], [], []>} : vector<1x64xf32>, vector<64x10xf32>, vector<1x10xf32> -> vector<1x10xf32>
    %329 = arith.mulf %328, %328 : vector<1x10xf32>
    %cst_163 = arith.constant 1.000000e+00 : f32
    %330 = vector.broadcast %cst_163 : f32 to vector<1x10xf32>
    %331 = arith.subf %330, %329 : vector<1x10xf32>
    %cst_164 = arith.constant 0.000000e+00 : f32
    %332 = vector.broadcast %cst_164 : f32 to vector<1x10xf32>
    %333 = arith.maximumf %331, %332 : vector<1x10xf32>
    %334 = math.sqrt %333 : vector<1x10xf32>
    %cst_165 = arith.constant 0.98877108 : f32
    %335 = vector.broadcast %cst_165 : f32 to vector<1x10xf32>
    %336 = arith.mulf %328, %335 : vector<1x10xf32>
    %cst_166 = arith.constant 0.149438128 : f32
    %337 = vector.broadcast %cst_166 : f32 to vector<1x10xf32>
    %338 = arith.mulf %334, %337 : vector<1x10xf32>
    %339 = arith.subf %336, %338 : vector<1x10xf32>
    %cst_167 = arith.constant -0.98877108 : f32
    %340 = vector.broadcast %cst_167 : f32 to vector<1x10xf32>
    %341 = arith.cmpf ogt, %328, %340 : vector<1x10xf32>
    %cst_168 = arith.constant 0.0224157199 : f32
    %342 = vector.broadcast %cst_168 : f32 to vector<1x10xf32>
    %343 = arith.subf %328, %342 : vector<1x10xf32>
    %344 = arith.select %341, %339, %343 : vector<1x10xi1>, vector<1x10xf32>
    %345 = arith.index_cast %arg0 : i32 to index
    %346 = memref.load %arg1[%345] : memref<2xi32, #tpu.memory_space<smem>>
    %347 = tpu.iota {dimensions = array<i32: 1>} : vector<1x10xi32>
    %348 = vector.broadcast %346 : i32 to vector<1x10xi32>
    %349 = arith.cmpi eq, %347, %348 : vector<1x10xi32>
    %350 = arith.extui %349 : vector<1x10xi1> to vector<1x10xi32>
    %351 = arith.sitofp %350 : vector<1x10xi32> to vector<1x10xf32>
    %352 = arith.mulf %351, %344 : vector<1x10xf32>
    %cst_169 = arith.constant 1.000000e+00 : f32
    %353 = vector.broadcast %cst_169 : f32 to vector<1x10xf32>
    %354 = arith.subf %353, %351 : vector<1x10xf32>
    %355 = arith.mulf %354, %328 : vector<1x10xf32>
    %356 = arith.addf %352, %355 : vector<1x10xf32>
    %cst_170 = arith.constant 3.000000e+01 : f32
    %357 = vector.broadcast %cst_170 : f32 to vector<1x10xf32>
    %358 = arith.mulf %356, %357 : vector<1x10xf32>
    %c0_171 = arith.constant 0 : index
    %c0_172 = arith.constant 0 : index
    %c0_173 = arith.constant 0 : index
    %359 = vector.load %arg25[%c0_171, %c0_172, %c0_173] : memref<1x1x10xf32, #tpu.memory_space<vmem>>, vector<1x1x10xf32>
    %360 = vector.shape_cast %359 : vector<1x1x10xf32> to vector<1x10xf32>
    %361 = vector.shape_cast %358 : vector<1x10xf32> to vector<1x1x10xf32>
    tpu.vector_store %arg25[%c0_171, %c0_172, %c0_173], %361 {strides = array<i32>} : memref<1x1x10xf32, #tpu.memory_space<vmem>>, vector<1x1x10xf32>,
    return
  }
  func.func @transform_0(%arg0: i32, %arg1: memref<2xi32, #tpu.memory_space<smem>>) -> (i32, i32, i32) {
    %c0_i32 = arith.constant 0 : i32
    %c0_i32_0 = arith.constant 0 : i32
    %c0_i32_1 = arith.constant 0 : i32
    return %arg0, %c0_i32, %c0_i32_0 : i32, i32, i32
  }
  func.func @transform_1(%arg0: i32, %arg1: memref<2xi32, #tpu.memory_space<smem>>) -> (i32, i32) {
    %c0_i32 = arith.constant 0 : i32
    %c0_i32_0 = arith.constant 0 : i32
    %c0_i32_1 = arith.constant 0 : i32
    return %c0_i32, %c0_i32_0 : i32, i32
  }
  func.func @transform_2(%arg0: i32, %arg1: memref<2xi32, #tpu.memory_space<smem>>) -> (i32, i32) {
    %c0_i32 = arith.constant 0 : i32
    %c0_i32_0 = arith.constant 0 : i32
    %c0_i32_1 = arith.constant 0 : i32
    return %c0_i32, %c0_i32_0 : i32, i32
  }
  func.func @transform_3(%arg0: i32, %arg1: memref<2xi32, #tpu.memory_space<smem>>) -> (i32, i32) {
    %c0_i32 = arith.constant 0 : i32
    %c0_i32_0 = arith.constant 0 : i32
    %c0_i32_1 = arith.constant 0 : i32
    return %c0_i32, %c0_i32_0 : i32, i32
  }
  func.func @transform_4(%arg0: i32, %arg1: memref<2xi32, #tpu.memory_space<smem>>) -> (i32, i32) {
    %c0_i32 = arith.constant 0 : i32
    %c0_i32_0 = arith.constant 0 : i32
    %c0_i32_1 = arith.constant 0 : i32
    return %c0_i32, %c0_i32_0 : i32, i32
  }
  func.func @transform_5(%arg0: i32, %arg1: memref<2xi32, #tpu.memory_space<smem>>) -> (i32, i32, i32) {
    %c0_i32 = arith.constant 0 : i32
    %c0_i32_0 = arith.constant 0 : i32
    %c0_i32_1 = arith.constant 0 : i32
    %c0_i32_2 = arith.constant 0 : i32
    return %c0_i32, %c0_i32_0, %c0_i32_1 : i32, i32, i32
  }
  func.func @transform_6(%arg0: i32, %arg1: memref<2xi32, #tpu.memory_space<smem>>) -> (i32, i32, i32) {
    %c0_i32 = arith.constant 0 : i32
    %c0_i32_0 = arith.constant 0 : i32
    %c0_i32_1 = arith.constant 0 : i32
    %c0_i32_2 = arith.constant 0 : i32
    return %c0_i32, %c0_i32_0, %c0_i32_1 : i32, i32, i32
  }
  func.func @transform_7(%arg0: i32, %arg1: memref<2xi32, #tpu.memory_space<smem>>) -> (i32, i32, i32) {
    %c0_i32 = arith.constant 0 : i32
    %c0_i32_0 = arith.constant 0 : i32
    %c0_i32_1 = arith.constant 0 : i32
    %c0_i32_2 = arith.constant 0 : i32
    return %c0_i32, %c0_i32_0, %c0_i32_1 : i32, i32, i32
  }
  func.func @transform_8(%arg0: i32, %arg1: memref<2xi32, #tpu.memory_space<smem>>) -> (i32, i32, i32) {
    %c0_i32 = arith.constant 0 : i32
    %c0_i32_0 = arith.constant 0 : i32
    %c0_i32_1 = arith.constant 0 : i32
    %c0_i32_2 = arith.constant 0 : i32
    return %c0_i32, %c0_i32_0, %c0_i32_1 : i32, i32, i32
  }
  func.func @transform_9(%arg0: i32, %arg1: memref<2xi32, #tpu.memory_space<smem>>) -> (i32, i32, i32) {
    %c0_i32 = arith.constant 0 : i32
    %c0_i32_0 = arith.constant 0 : i32
    %c0_i32_1 = arith.constant 0 : i32
    %c0_i32_2 = arith.constant 0 : i32
    return %c0_i32, %c0_i32_0, %c0_i32_1 : i32, i32, i32
  }
  func.func @transform_10(%arg0: i32, %arg1: memref<2xi32, #tpu.memory_space<smem>>) -> (i32, i32, i32) {
    %c0_i32 = arith.constant 0 : i32
    %c0_i32_0 = arith.constant 0 : i32
    %c0_i32_1 = arith.constant 0 : i32
    %c0_i32_2 = arith.constant 0 : i32
    return %c0_i32, %c0_i32_0, %c0_i32_1 : i32, i32, i32
  }
  func.func @transform_11(%arg0: i32, %arg1: memref<2xi32, #tpu.memory_space<smem>>) -> (i32, i32, i32) {
    %c0_i32 = arith.constant 0 : i32
    %c0_i32_0 = arith.constant 0 : i32
    %c0_i32_1 = arith.constant 0 : i32
    %c0_i32_2 = arith.constant 0 : i32
    return %c0_i32, %c0_i32_0, %c0_i32_1 : i32, i32, i32
  }
  func.func @transform_12(%arg0: i32, %arg1: memref<2xi32, #tpu.memory_space<smem>>) -> (i32, i32, i32) {
    %c0_i32 = arith.constant 0 : i32
    %c0_i32_0 = arith.constant 0 : i32
    %c0_i32_1 = arith.constant 0 : i32
    %c0_i32_2 = arith.constant 0 : i32
    return %c0_i32, %c0_i32_0, %c0_i32_1 : i32, i32, i32
  }
  func.func @transform_13(%arg0: i32, %arg1: memref<2xi32, #tpu.memory_space<smem>>) -> (i32, i32, i32) {
    %c0_i32 = arith.constant 0 : i32
    %c0_i32_0 = arith.constant 0 : i32
    %c0_i32_1 = arith.constant 0 : i32
    %c0_i32_2 = arith.constant 0 : i32
    return %c0_i32, %c0_i32_0, %c0_i32_1 : i32, i32, i32
  }
  func.func @transform_14(%arg0: i32, %arg1: memref<2xi32, #tpu.memory_space<smem>>) -> (i32, i32, i32) {
    %c0_i32 = arith.constant 0 : i32
    %c0_i32_0 = arith.constant 0 : i32
    %c0_i32_1 = arith.constant 0 : i32
    %c0_i32_2 = arith.constant 0 : i32
    return %c0_i32, %c0_i32_0, %c0_i32_1 : i32, i32, i32
  }
  func.func @transform_15(%arg0: i32, %arg1: memref<2xi32, #tpu.memory_space<smem>>) -> (i32, i32, i32) {
    %c0_i32 = arith.constant 0 : i32
    %c0_i32_0 = arith.constant 0 : i32
    %c0_i32_1 = arith.constant 0 : i32
    %c0_i32_2 = arith.constant 0 : i32
    return %c0_i32, %c0_i32_0, %c0_i32_1 : i32, i32, i32
  }
  func.func @transform_16(%arg0: i32, %arg1: memref<2xi32, #tpu.memory_space<smem>>) -> (i32, i32, i32) {
    %c0_i32 = arith.constant 0 : i32
    %c0_i32_0 = arith.constant 0 : i32
    %c0_i32_1 = arith.constant 0 : i32
    %c0_i32_2 = arith.constant 0 : i32
    return %c0_i32, %c0_i32_0, %c0_i32_1 : i32, i32, i32
  }
  func.func @transform_17(%arg0: i32, %arg1: memref<2xi32, #tpu.memory_space<smem>>) -> (i32, i32) {
    %c0_i32 = arith.constant 0 : i32
    %c0_i32_0 = arith.constant 0 : i32
    %c0_i32_1 = arith.constant 0 : i32
    return %c0_i32, %c0_i32_0 : i32, i32
  }
  func.func @transform_18(%arg0: i32, %arg1: memref<2xi32, #tpu.memory_space<smem>>) -> (i32, i32) {
    %c0_i32 = arith.constant 0 : i32
    %c0_i32_0 = arith.constant 0 : i32
    %c0_i32_1 = arith.constant 0 : i32
    return %c0_i32, %c0_i32_0 : i32, i32
  }
  func.func @transform_19(%arg0: i32, %arg1: memref<2xi32, #tpu.memory_space<smem>>) -> (i32, i32) {
    %c0_i32 = arith.constant 0 : i32
    %c0_i32_0 = arith.constant 0 : i32
    %c0_i32_1 = arith.constant 0 : i32
    return %c0_i32, %c0_i32_0 : i32, i32
  }
  func.func @transform_20(%arg0: i32, %arg1: memref<2xi32, #tpu.memory_space<smem>>) -> (i32, i32) {
    %c0_i32 = arith.constant 0 : i32
    %c0_i32_0 = arith.constant 0 : i32
    %c0_i32_1 = arith.constant 0 : i32
    return %c0_i32, %c0_i32_0 : i32, i32
  }
  func.func @transform_21(%arg0: i32, %arg1: memref<2xi32, #tpu.memory_space<smem>>) -> (i32, i32) {
    %c0_i32 = arith.constant 0 : i32
    %c0_i32_0 = arith.constant 0 : i32
    %c0_i32_1 = arith.constant 0 : i32
    return %c0_i32, %c0_i32_0 : i32, i32
  }
  func.func @transform_22(%arg0: i32, %arg1: memref<2xi32, #tpu.memory_space<smem>>) -> (i32, i32, i32) {
    %c0_i32 = arith.constant 0 : i32
    %c0_i32_0 = arith.constant 0 : i32
    %c0_i32_1 = arith.constant 0 : i32
    return %arg0, %c0_i32, %c0_i32_0 : i32, i32, i32
  }
  func.func @transform_23(%arg0: i32, %arg1: memref<2xi32, #tpu.memory_space<smem>>) -> (i32, i32, i32) {
    %c0_i32 = arith.constant 0 : i32
    %c0_i32_0 = arith.constant 0 : i32
    %c0_i32_1 = arith.constant 0 : i32
    return %arg0, %c0_i32, %c0_i32_0 : i32, i32, i32
  }
}

</mosaic_0001>

<llo_original>
// kernel: transformer_large_forward.1
$region0: #{transformer_large_forward.1}
  #allocation0 [shape = 'u32[]', space=smem, size = 0x4, offset = 0x4, fixed_abs, tag = 'smem constant byte address 0x4 - core index']
  #allocation1 [shape = 'u32[72,128]{1,0:T(1,128)}', space=vmem, size = 0x9000, scoped, tag = 'internal scratch']
  #allocation2 [shape = 's32[1]{0}', space=sflag, size = 0x4, scoped, tag = 'scoped memory for transformer_large_forward.1']
  #allocation3 [shape = 'u8[512]{0}', space=smem, size = 0x200, scoped, tag = 'prefetched SMEM operand 0']
  %s0 = inlined_call_operand.vmem [shape: s32[2], index: 0, kind: input, shape index: {}]
  %s1 = inlined_call_operand.vmem [shape: f32[2,17,48], index: 1, kind: input, shape index: {}]
  %s2 = inlined_call_operand.vmem [shape: f32[48,32], index: 2, kind: input, shape index: {}]
  %s3 = inlined_call_operand.vmem [shape: f32[1,32], index: 3, kind: input, shape index: {}]
  %s4 = inlined_call_operand.vmem [shape: f32[1,32], index: 4, kind: input, shape index: {}]
  %s5 = inlined_call_operand.vmem [shape: f32[17,32], index: 5, kind: input, shape index: {}]
  %s6 = inlined_call_operand.vmem [shape: f32[2,1,32], index: 6, kind: input, shape index: {}]
  %s7 = inlined_call_operand.vmem [shape: f32[2,1,32], index: 7, kind: input, shape index: {}]
  %s8 = inlined_call_operand.vmem [shape: f32[2,32,96], index: 8, kind: input, shape index: {}]
  %s9 = inlined_call_operand.vmem [shape: f32[2,1,96], index: 9, kind: input, shape index: {}]
  %s10 = inlined_call_operand.vmem [shape: f32[2,32,32], index: 10, kind: input, shape index: {}]
  %s11 = inlined_call_operand.vmem [shape: f32[2,1,32], index: 11, kind: input, shape index: {}]
  %s12 = inlined_call_operand.vmem [shape: f32[2,1,32], index: 12, kind: input, shape index: {}]
  %s13 = inlined_call_operand.vmem [shape: f32[2,1,32], index: 13, kind: input, shape index: {}]
  %s14 = inlined_call_operand.vmem [shape: f32[2,32,64], index: 14, kind: input, shape index: {}]
  %s15 = inlined_call_operand.vmem [shape: f32[2,1,64], index: 15, kind: input, shape index: {}]
  %s16 = inlined_call_operand.vmem [shape: f32[2,64,32], index: 16, kind: input, shape index: {}]
  %s17 = inlined_call_operand.vmem [shape: f32[2,1,32], index: 17, kind: input, shape index: {}]
  %s18 = inlined_call_operand.vmem [shape: f32[1,32], index: 18, kind: input, shape index: {}]
  %s19 = inlined_call_operand.vmem [shape: f32[1,32], index: 19, kind: input, shape index: {}]
  %s20 = inlined_call_operand.vmem [shape: f32[32,64], index: 20, kind: input, shape index: {}]
  %s21 = inlined_call_operand.vmem [shape: f32[1,64], index: 21, kind: input, shape index: {}]
  %s22 = inlined_call_operand.vmem [shape: f32[64,10], index: 22, kind: input, shape index: {}]
  %s23 = inlined_call_operand.hbm [shape: f32[2,1,64], index: 23, kind: output, shape index: {0}]
  %s24 = inlined_call_operand.hbm [shape: f32[2,1,10], index: 24, kind: output, shape index: {1}]
  %25 = xla_tuple %s23, %s24
  %s26 = sld [smem:[#allocation0]]
  $region129: #{transformer_large_forward.1} parent=0
    _
  %s28 = ssub.s32 1, %s26
  %s29 = scalar_select 0, %s28, %s26
  %s31 = sshll.u32 %s0, 4
  %s32 = int_to_ptr.vmem [resolvable:$true] %s31
  %34 = dma.vmem_to_smem %s32, 16, [#allocation3], [#allocation2]
  %36 = dma.done [#allocation2], 16
  %37 = sfence
  $region1: #{transformer_large_forward.1} parent=0
    #allocation4 [shape = 'u8[1024]{0}', space=vmem, size = 0x400, scoped, tag = 'output window, operand 0']
    #allocation5 [shape = 's32[2]{0}', space=sflag, size = 0x8, scoped, tag = 'scoped memory for transformer_large_forward.1']
    #allocation6 [shape = 'u8[1024]{0}', space=vmem, size = 0x400, scoped, tag = 'output window, operand 1']
    #allocation7 [shape = 's32[2]{0}', space=sflag, size = 0x8, scoped, tag = 'scoped memory for transformer_large_forward.1']
    %38 = vsyncpa [#allocation5], 0
    %s39 = scalar_lea.sflag [#allocation5], 1
    %40 = vsyncpa %s39, 0
    %41 = vsyncpa [#allocation7], 0
    %s42 = scalar_lea.sflag [#allocation7], 1
    %43 = vsyncpa %s42, 0
    loop: start=0, step=1, limit=4
    $region2: #{transformer_large_forward.1} parent=1 // loop_pre_header
      _
    $region3: #{transformer_large_forward.1} parent=1 // loop_header
      %s45 = sphi 0, %s49
      %p46 = scmp.ge.s32.totalorder %s45, 4
      %s55 = sphi 0, %s57
      %s58 = sphi 0, %s55
      %s59 = sphi 0, %s58
      %s75 = sphi 0, %s59
      %s79 = sphi 0, %s79
      %s81 = sphi 0, %s79
      %s82 = sphi 0, %s81
      %s96 = sphi 0, %s82
      %s100 = sphi 0, %s100
      %s102 = sphi 0, %s100
      %s103 = sphi 0, %s102
      %s117 = sphi 0, %s103
      %s121 = sphi 0, %s121
      %s123 = sphi 0, %s121
      %s124 = sphi 0, %s123
      %s138 = sphi 0, %s124
      %s142 = sphi 0, %s142
      %s144 = sphi 0, %s142
      %s145 = sphi 0, %s144
      %s159 = sphi 0, %s145
      %s163 = sphi 0, %s163
      %s165 = sphi 0, %s163
      %s166 = sphi 0, %s165
      %s180 = sphi 0, %s166
      %s184 = sphi 0, %s184
      %s186 = sphi 0, %s184
      %s187 = sphi 0, %s186
      %s201 = sphi 0, %s187
      %s205 = sphi 0, %s205
      %s207 = sphi 0, %s205
      %s208 = sphi 0, %s207
      %s222 = sphi 0, %s208
      %s226 = sphi 0, %s226
      %s228 = sphi 0, %s226
      %s229 = sphi 0, %s228
      %s243 = sphi 0, %s229
      %s247 = sphi 0, %s247
      %s249 = sphi 0, %s247
      %s250 = sphi 0, %s249
      %s264 = sphi 0, %s250
      %s268 = sphi 0, %s268
      %s270 = sphi 0, %s268
      %s271 = sphi 0, %s270
      %s285 = sphi 0, %s271
      %s289 = sphi 0, %s289
      %s291 = sphi 0, %s289
      %s292 = sphi 0, %s291
      %s306 = sphi 0, %s292
      %s310 = sphi 0, %s310
      %s312 = sphi 0, %s310
      %s313 = sphi 0, %s312
      %s327 = sphi 0, %s313
      %s331 = sphi 0, %s331
      %s333 = sphi 0, %s331
      %s334 = sphi 0, %s333
      %s348 = sphi 0, %s334
      %s352 = sphi 0, %s352
      %s354 = sphi 0, %s352
      %s355 = sphi 0, %s354
      %s369 = sphi 0, %s355
      %s373 = sphi 0, %s373
      %s375 = sphi 0, %s373
      %s376 = sphi 0, %s375
      %s390 = sphi 0, %s376
      %s394 = sphi 0, %s394
      %s396 = sphi 0, %s394
      %s397 = sphi 0, %s396
      %s411 = sphi 0, %s397
      %s415 = sphi 0, %s415
      %s417 = sphi 0, %s415
      %s418 = sphi 0, %s417
      %s432 = sphi 0, %s418
      %s436 = sphi 0, %s436
      %s438 = sphi 0, %s436
      %s439 = sphi 0, %s438
      %s453 = sphi 0, %s439
      %s457 = sphi 0, %s457
      %s459 = sphi 0, %s457
      %s460 = sphi 0, %s459
      %s474 = sphi 0, %s460
      %s478 = sphi 0, %s478
      %s480 = sphi 0, %s478
      %s481 = sphi 0, %s480
      %s495 = sphi 0, %s481
      %s499 = sphi 0, %s499
      %s501 = sphi 0, %s499
      %s502 = sphi 0, %s501
      %s516 = sphi 0, %s502
      %s522 = sphi 0, %s524
      %s525 = sphi 0, %s522
      %s526 = sphi 0, %s525
      %s542 = sphi 0, %s526
      %s548 = sphi 0, %s550
      %s551 = sphi 0, %s548
      %s552 = sphi 0, %s551
      %s568 = sphi 0, %s552
    $region4: #{transformer_large_forward.1} parent=1 // loop_header_branch
      %48 = sbr.rel (%p46) target = $region8
    $region5: #{transformer_large_forward.1} parent=1 // loop_body
      %s50 = ssub.s32 %s45, 1
      %s51 = ssub.s32 %s45, 2
      %s52 = sadd.s32 %s45, 1
      %s53 = ssub.s32 %s45, %s52
      %p54 = scmp.eq.s32.totalorder %s53, 0
      %s56 = sadd.s32 %s55, 1
      %s57 = scalar_select %p54, %s55, %s56
      %p60 = pneg %p54
      %p61 = scmp.eq.s32.totalorder %s45, 1
      %p62 = por %p60, %p61
      %p63 = scmp.ne.s32.totalorder %s55, %s58
      %p64 = scmp.eq.s32.totalorder %s45, 0
      %p65 = por %p63, %p64
      %p66 = scmp.ne.s32.totalorder %s55, %s58
      %p67 = scmp.eq.s32.totalorder %s50, 1
      %p68 = por %p66, %p67
      %p69 = scmp.ne.s32.totalorder %s58, %s59
      %p70 = scmp.eq.s32.totalorder %s50, 0
      %p71 = por %p69, %p70
      %p72 = scmp.ne.s32.totalorder %s58, %s59
      %p73 = scmp.eq.s32.totalorder %s51, 1
      %p74 = por %p72, %p73
      %p76 = scmp.ne.s32.totalorder %s59, %s75
      %p77 = scmp.eq.s32.totalorder %s51, 0
      %p78 = por %p76, %p77
      %s80 = sadd.s32 %s79, 1
      %p83 = scmp.eq.s32.totalorder %s45, 1
      %p84 = scmp.ne.s32.totalorder %s79, %s81
      %p85 = scmp.eq.s32.totalorder %s45, 0
      %p86 = por %p84, %p85
      %p87 = scmp.ne.s32.totalorder %s79, %s81
      %p88 = scmp.eq.s32.totalorder %s50, 1
      %p89 = por %p87, %p88
      %p90 = scmp.ne.s32.totalorder %s81, %s82
      %p91 = scmp.eq.s32.totalorder %s50, 0
      %p92 = por %p90, %p91
      %p93 = scmp.ne.s32.totalorder %s81, %s82
      %p94 = scmp.eq.s32.totalorder %s51, 1
      %p95 = por %p93, %p94
      %p97 = scmp.ne.s32.totalorder %s82, %s96
      %p98 = scmp.eq.s32.totalorder %s51, 0
      %p99 = por %p97, %p98
      %s101 = sadd.s32 %s100, 1
      %p104 = scmp.eq.s32.totalorder %s45, 1
      %p105 = scmp.ne.s32.totalorder %s100, %s102
      %p106 = scmp.eq.s32.totalorder %s45, 0
      %p107 = por %p105, %p106
      %p108 = scmp.ne.s32.totalorder %s100, %s102
      %p109 = scmp.eq.s32.totalorder %s50, 1
      %p110 = por %p108, %p109
      %p111 = scmp.ne.s32.totalorder %s102, %s103
      %p112 = scmp.eq.s32.totalorder %s50, 0
      %p113 = por %p111, %p112
      %p114 = scmp.ne.s32.totalorder %s102, %s103
      %p115 = scmp.eq.s32.totalorder %s51, 1
      %p116 = por %p114, %p115
      %p118 = scmp.ne.s32.totalorder %s103, %s117
      %p119 = scmp.eq.s32.totalorder %s51, 0
      %p120 = por %p118, %p119
      %s122 = sadd.s32 %s121, 1
      %p125 = scmp.eq.s32.totalorder %s45, 1
      %p126 = scmp.ne.s32.totalorder %s121, %s123
      %p127 = scmp.eq.s32.totalorder %s45, 0
      %p128 = por %p126, %p127
      %p129 = scmp.ne.s32.totalorder %s121, %s123
      %p130 = scmp.eq.s32.totalorder %s50, 1
      %p131 = por %p129, %p130
      %p132 = scmp.ne.s32.totalorder %s123, %s124
      %p133 = scmp.eq.s32.totalorder %s50, 0
      %p134 = por %p132, %p133
      %p135 = scmp.ne.s32.totalorder %s123, %s124
      %p136 = scmp.eq.s32.totalorder %s51, 1
      %p137 = por %p135, %p136
      %p139 = scmp.ne.s32.totalorder %s124, %s138
      %p140 = scmp.eq.s32.totalorder %s51, 0
      %p141 = por %p139, %p140
      %s143 = sadd.s32 %s142, 1
      %p146 = scmp.eq.s32.totalorder %s45, 1
      %p147 = scmp.ne.s32.totalorder %s142, %s144
      %p148 = scmp.eq.s32.totalorder %s45, 0
      %p149 = por %p147, %p148
      %p150 = scmp.ne.s32.totalorder %s142, %s144
      %p151 = scmp.eq.s32.totalorder %s50, 1
      %p152 = por %p150, %p151
      %p153 = scmp.ne.s32.totalorder %s144, %s145
      %p154 = scmp.eq.s32.totalorder %s50, 0
      %p155 = por %p153, %p154
      %p156 = scmp.ne.s32.totalorder %s144, %s145
      %p157 = scmp.eq.s32.totalorder %s51, 1
      %p158 = por %p156, %p157
      %p160 = scmp.ne.s32.totalorder %s145, %s159
      %p161 = scmp.eq.s32.totalorder %s51, 0
      %p162 = por %p160, %p161
      %s164 = sadd.s32 %s163, 1
      %p167 = scmp.eq.s32.totalorder %s45, 1
      %p168 = scmp.ne.s32.totalorder %s163, %s165
      %p169 = scmp.eq.s32.totalorder %s45, 0
      %p170 = por %p168, %p169
      %p171 = scmp.ne.s32.totalorder %s163, %s165
      %p172 = scmp.eq.s32.totalorder %s50, 1
      %p173 = por %p171, %p172
      %p174 = scmp.ne.s32.totalorder %s165, %s166
      %p175 = scmp.eq.s32.totalorder %s50, 0
      %p176 = por %p174, %p175
      %p177 = scmp.ne.s32.totalorder %s165, %s166
      %p178 = scmp.eq.s32.totalorder %s51, 1
      %p179 = por %p177, %p178
      %p181 = scmp.ne.s32.totalorder %s166, %s180
      %p182 = scmp.eq.s32.totalorder %s51, 0
      %p183 = por %p181, %p182
      %s185 = sadd.s32 %s184, 1
      %p188 = scmp.eq.s32.totalorder %s45, 1
      %p189 = scmp.ne.s32.totalorder %s184, %s186
      %p190 = scmp.eq.s32.totalorder %s45, 0
      %p191 = por %p189, %p190
      %p192 = scmp.ne.s32.totalorder %s184, %s186
      %p193 = scmp.eq.s32.totalorder %s50, 1
      %p194 = por %p192, %p193
      %p195 = scmp.ne.s32.totalorder %s186, %s187
      %p196 = scmp.eq.s32.totalorder %s50, 0
      %p197 = por %p195, %p196
      %p198 = scmp.ne.s32.totalorder %s186, %s187
      %p199 = scmp.eq.s32.totalorder %s51, 1
      %p200 = por %p198, %p199
      %p202 = scmp.ne.s32.totalorder %s187, %s201
      %p203 = scmp.eq.s32.totalorder %s51, 0
      %p204 = por %p202, %p203
      %s206 = sadd.s32 %s205, 1
      %p209 = scmp.eq.s32.totalorder %s45, 1
      %p210 = scmp.ne.s32.totalorder %s205, %s207
      %p211 = scmp.eq.s32.totalorder %s45, 0
      %p212 = por %p210, %p211
      %p213 = scmp.ne.s32.totalorder %s205, %s207
      %p214 = scmp.eq.s32.totalorder %s50, 1
      %p215 = por %p213, %p214
      %p216 = scmp.ne.s32.totalorder %s207, %s208
      %p217 = scmp.eq.s32.totalorder %s50, 0
      %p218 = por %p216, %p217
      %p219 = scmp.ne.s32.totalorder %s207, %s208
      %p220 = scmp.eq.s32.totalorder %s51, 1
      %p221 = por %p219, %p220
      %p223 = scmp.ne.s32.totalorder %s208, %s222
      %p224 = scmp.eq.s32.totalorder %s51, 0
      %p225 = por %p223, %p224
      %s227 = sadd.s32 %s226, 1
      %p230 = scmp.eq.s32.totalorder %s45, 1
      %p231 = scmp.ne.s32.totalorder %s226, %s228
      %p232 = scmp.eq.s32.totalorder %s45, 0
      %p233 = por %p231, %p232
      %p234 = scmp.ne.s32.totalorder %s226, %s228
      %p235 = scmp.eq.s32.totalorder %s50, 1
      %p236 = por %p234, %p235
      %p237 = scmp.ne.s32.totalorder %s228, %s229
      %p238 = scmp.eq.s32.totalorder %s50, 0
      %p239 = por %p237, %p238
      %p240 = scmp.ne.s32.totalorder %s228, %s229
      %p241 = scmp.eq.s32.totalorder %s51, 1
      %p242 = por %p240, %p241
      %p244 = scmp.ne.s32.totalorder %s229, %s243
      %p245 = scmp.eq.s32.totalorder %s51, 0
      %p246 = por %p244, %p245
      %s248 = sadd.s32 %s247, 1
      %p251 = scmp.eq.s32.totalorder %s45, 1
      %p252 = scmp.ne.s32.totalorder %s247, %s249
      %p253 = scmp.eq.s32.totalorder %s45, 0
      %p254 = por %p252, %p253
      %p255 = scmp.ne.s32.totalorder %s247, %s249
      %p256 = scmp.eq.s32.totalorder %s50, 1
      %p257 = por %p255, %p256
      %p258 = scmp.ne.s32.totalorder %s249, %s250
      %p259 = scmp.eq.s32.totalorder %s50, 0
      %p260 = por %p258, %p259
      %p261 = scmp.ne.s32.totalorder %s249, %s250
      %p262 = scmp.eq.s32.totalorder %s51, 1
      %p263 = por %p261, %p262
      %p265 = scmp.ne.s32.totalorder %s250, %s264
      %p266 = scmp.eq.s32.totalorder %s51, 0
      %p267 = por %p265, %p266
      %s269 = sadd.s32 %s268, 1
      %p272 = scmp.eq.s32.totalorder %s45, 1
      %p273 = scmp.ne.s32.totalorder %s268, %s270
      %p274 = scmp.eq.s32.totalorder %s45, 0
      %p275 = por %p273, %p274
      %p276 = scmp.ne.s32.totalorder %s268, %s270
      %p277 = scmp.eq.s32.totalorder %s50, 1
      %p278 = por %p276, %p277
      %p279 = scmp.ne.s32.totalorder %s270, %s271
      %p280 = scmp.eq.s32.totalorder %s50, 0
      %p281 = por %p279, %p280
      %p282 = scmp.ne.s32.totalorder %s270, %s271
      %p283 = scmp.eq.s32.totalorder %s51, 1
      %p284 = por %p282, %p283
      %p286 = scmp.ne.s32.totalorder %s271, %s285
      %p287 = scmp.eq.s32.totalorder %s51, 0
      %p288 = por %p286, %p287
      %s290 = sadd.s32 %s289, 1
      %p293 = scmp.eq.s32.totalorder %s45, 1
      %p294 = scmp.ne.s32.totalorder %s289, %s291
      %p295 = scmp.eq.s32.totalorder %s45, 0
      %p296 = por %p294, %p295
      %p297 = scmp.ne.s32.totalorder %s289, %s291
      %p298 = scmp.eq.s32.totalorder %s50, 1
      %p299 = por %p297, %p298
      %p300 = scmp.ne.s32.totalorder %s291, %s292
      %p301 = scmp.eq.s32.totalorder %s50, 0
      %p302 = por %p300, %p301
      %p303 = scmp.ne.s32.totalorder %s291, %s292
      %p304 = scmp.eq.s32.totalorder %s51, 1
      %p305 = por %p303, %p304
      %p307 = scmp.ne.s32.totalorder %s292, %s306
      %p308 = scmp.eq.s32.totalorder %s51, 0
      %p309 = por %p307, %p308
      %s311 = sadd.s32 %s310, 1
      %p314 = scmp.eq.s32.totalorder %s45, 1
      %p315 = scmp.ne.s32.totalorder %s310, %s312
      %p316 = scmp.eq.s32.totalorder %s45, 0
      %p317 = por %p315, %p316
      %p318 = scmp.ne.s32.totalorder %s310, %s312
      %p319 = scmp.eq.s32.totalorder %s50, 1
      %p320 = por %p318, %p319
      %p321 = scmp.ne.s32.totalorder %s312, %s313
      %p322 = scmp.eq.s32.totalorder %s50, 0
      %p323 = por %p321, %p322
      %p324 = scmp.ne.s32.totalorder %s312, %s313
      %p325 = scmp.eq.s32.totalorder %s51, 1
      %p326 = por %p324, %p325
      %p328 = scmp.ne.s32.totalorder %s313, %s327
      %p329 = scmp.eq.s32.totalorder %s51, 0
      %p330 = por %p328, %p329
      %s332 = sadd.s32 %s331, 1
      %p335 = scmp.eq.s32.totalorder %s45, 1
      %p336 = scmp.ne.s32.totalorder %s331, %s333
      %p337 = scmp.eq.s32.totalorder %s45, 0
      %p338 = por %p336, %p337
      %p339 = scmp.ne.s32.totalorder %s331, %s333
      %p340 = scmp.eq.s32.totalorder %s50, 1
      %p341 = por %p339, %p340
      %p342 = scmp.ne.s32.totalorder %s333, %s334
      %p343 = scmp.eq.s32.totalorder %s50, 0
      %p344 = por %p342, %p343
      %p345 = scmp.ne.s32.totalorder %s333, %s334
      %p346 = scmp.eq.s32.totalorder %s51, 1
      %p347 = por %p345, %p346
      %p349 = scmp.ne.s32.totalorder %s334, %s348
      %p350 = scmp.eq.s32.totalorder %s51, 0
      %p351 = por %p349, %p350
      %s353 = sadd.s32 %s352, 1
      %p356 = scmp.eq.s32.totalorder %s45, 1
      %p357 = scmp.ne.s32.totalorder %s352, %s354
      %p358 = scmp.eq.s32.totalorder %s45, 0
      %p359 = por %p357, %p358
      %p360 = scmp.ne.s32.totalorder %s352, %s354
      %p361 = scmp.eq.s32.totalorder %s50, 1
      %p362 = por %p360, %p361
      %p363 = scmp.ne.s32.totalorder %s354, %s355
      %p364 = scmp.eq.s32.totalorder %s50, 0
      %p365 = por %p363, %p364
      %p366 = scmp.ne.s32.totalorder %s354, %s355
      %p367 = scmp.eq.s32.totalorder %s51, 1
      %p368 = por %p366, %p367
      %p370 = scmp.ne.s32.totalorder %s355, %s369
      %p371 = scmp.eq.s32.totalorder %s51, 0
      %p372 = por %p370, %p371
      %s374 = sadd.s32 %s373, 1
      %p377 = scmp.eq.s32.totalorder %s45, 1
      %p378 = scmp.ne.s32.totalorder %s373, %s375
      %p379 = scmp.eq.s32.totalorder %s45, 0
      %p380 = por %p378, %p379
      %p381 = scmp.ne.s32.totalorder %s373, %s375
      %p382 = scmp.eq.s32.totalorder %s50, 1
      %p383 = por %p381, %p382
      %p384 = scmp.ne.s32.totalorder %s375, %s376
      %p385 = scmp.eq.s32.totalorder %s50, 0
      %p386 = por %p384, %p385
      %p387 = scmp.ne.s32.totalorder %s375, %s376
      %p388 = scmp.eq.s32.totalorder %s51, 1
      %p389 = por %p387, %p388
      %p391 = scmp.ne.s32.totalorder %s376, %s390
      %p392 = scmp.eq.s32.totalorder %s51, 0
      %p393 = por %p391, %p392
      %s395 = sadd.s32 %s394, 1
      %p398 = scmp.eq.s32.totalorder %s45, 1
      %p399 = scmp.ne.s32.totalorder %s394, %s396
      %p400 = scmp.eq.s32.totalorder %s45, 0
      %p401 = por %p399, %p400
      %p402 = scmp.ne.s32.totalorder %s394, %s396
      %p403 = scmp.eq.s32.totalorder %s50, 1
      %p404 = por %p402, %p403
      %p405 = scmp.ne.s32.totalorder %s396, %s397
      %p406 = scmp.eq.s32.totalorder %s50, 0
      %p407 = por %p405, %p406
      %p408 = scmp.ne.s32.totalorder %s396, %s397
      %p409 = scmp.eq.s32.totalorder %s51, 1
      %p410 = por %p408, %p409
      %p412 = scmp.ne.s32.totalorder %s397, %s411
      %p413 = scmp.eq.s32.totalorder %s51, 0
      %p414 = por %p412, %p413
      %s416 = sadd.s32 %s415, 1
      %p419 = scmp.eq.s32.totalorder %s45, 1
      %p420 = scmp.ne.s32.totalorder %s415, %s417
      %p421 = scmp.eq.s32.totalorder %s45, 0
      %p422 = por %p420, %p421
      %p423 = scmp.ne.s32.totalorder %s415, %s417
      %p424 = scmp.eq.s32.totalorder %s50, 1
      %p425 = por %p423, %p424
      %p426 = scmp.ne.s32.totalorder %s417, %s418
      %p427 = scmp.eq.s32.totalorder %s50, 0
      %p428 = por %p426, %p427
      %p429 = scmp.ne.s32.totalorder %s417, %s418
      %p430 = scmp.eq.s32.totalorder %s51, 1
      %p431 = por %p429, %p430
      %p433 = scmp.ne.s32.totalorder %s418, %s432
      %p434 = scmp.eq.s32.totalorder %s51, 0
      %p435 = por %p433, %p434
      %s437 = sadd.s32 %s436, 1
      %p440 = scmp.eq.s32.totalorder %s45, 1
      %p441 = scmp.ne.s32.totalorder %s436, %s438
      %p442 = scmp.eq.s32.totalorder %s45, 0
      %p443 = por %p441, %p442
      %p444 = scmp.ne.s32.totalorder %s436, %s438
      %p445 = scmp.eq.s32.totalorder %s50, 1
      %p446 = por %p444, %p445
      %p447 = scmp.ne.s32.totalorder %s438, %s439
      %p448 = scmp.eq.s32.totalorder %s50, 0
      %p449 = por %p447, %p448
      %p450 = scmp.ne.s32.totalorder %s438, %s439
      %p451 = scmp.eq.s32.totalorder %s51, 1
      %p452 = por %p450, %p451
      %p454 = scmp.ne.s32.totalorder %s439, %s453
      %p455 = scmp.eq.s32.totalorder %s51, 0
      %p456 = por %p454, %p455
      %s458 = sadd.s32 %s457, 1
      %p461 = scmp.eq.s32.totalorder %s45, 1
      %p462 = scmp.ne.s32.totalorder %s457, %s459
      %p463 = scmp.eq.s32.totalorder %s45, 0
      %p464 = por %p462, %p463
      %p465 = scmp.ne.s32.totalorder %s457, %s459
      %p466 = scmp.eq.s32.totalorder %s50, 1
      %p467 = por %p465, %p466
      %p468 = scmp.ne.s32.totalorder %s459, %s460
      %p469 = scmp.eq.s32.totalorder %s50, 0
      %p470 = por %p468, %p469
      %p471 = scmp.ne.s32.totalorder %s459, %s460
      %p472 = scmp.eq.s32.totalorder %s51, 1
      %p473 = por %p471, %p472
      %p475 = scmp.ne.s32.totalorder %s460, %s474
      %p476 = scmp.eq.s32.totalorder %s51, 0
      %p477 = por %p475, %p476
      %s479 = sadd.s32 %s478, 1
      %p482 = scmp.eq.s32.totalorder %s45, 1
      %p483 = scmp.ne.s32.totalorder %s478, %s480
      %p484 = scmp.eq.s32.totalorder %s45, 0
      %p485 = por %p483, %p484
      %p486 = scmp.ne.s32.totalorder %s478, %s480
      %p487 = scmp.eq.s32.totalorder %s50, 1
      %p488 = por %p486, %p487
      %p489 = scmp.ne.s32.totalorder %s480, %s481
      %p490 = scmp.eq.s32.totalorder %s50, 0
      %p491 = por %p489, %p490
      %p492 = scmp.ne.s32.totalorder %s480, %s481
      %p493 = scmp.eq.s32.totalorder %s51, 1
      %p494 = por %p492, %p493
      %p496 = scmp.ne.s32.totalorder %s481, %s495
      %p497 = scmp.eq.s32.totalorder %s51, 0
      %p498 = por %p496, %p497
      %s500 = sadd.s32 %s499, 1
      %p503 = scmp.eq.s32.totalorder %s45, 1
      %p504 = scmp.ne.s32.totalorder %s499, %s501
      %p505 = scmp.eq.s32.totalorder %s45, 0
      %p506 = por %p504, %p505
      %p507 = scmp.ne.s32.totalorder %s499, %s501
      %p508 = scmp.eq.s32.totalorder %s50, 1
      %p509 = por %p507, %p508
      %p510 = scmp.ne.s32.totalorder %s501, %s502
      %p511 = scmp.eq.s32.totalorder %s50, 0
      %p512 = por %p510, %p511
      %p513 = scmp.ne.s32.totalorder %s501, %s502
      %p514 = scmp.eq.s32.totalorder %s51, 1
      %p515 = por %p513, %p514
      %p517 = scmp.ne.s32.totalorder %s502, %s516
      %p518 = scmp.eq.s32.totalorder %s51, 0
      %p519 = por %p517, %p518
      %s520 = ssub.s32 %s45, %s52
      %p521 = scmp.eq.s32.totalorder %s520, 0
      %s523 = sadd.s32 %s522, 1
      %s524 = scalar_select %p521, %s522, %s523
      %p527 = pneg %p521
      %p528 = scmp.eq.s32.totalorder %s45, 1
      %p529 = por %p527, %p528
      %p530 = scmp.ne.s32.totalorder %s522, %s525
      %p531 = scmp.eq.s32.totalorder %s45, 0
      %p532 = por %p530, %p531
      %p533 = scmp.ne.s32.totalorder %s522, %s525
      %p534 = scmp.eq.s32.totalorder %s50, 1
      %p535 = por %p533, %p534
      %p536 = scmp.ne.s32.totalorder %s525, %s526
      %p537 = scmp.eq.s32.totalorder %s50, 0
      %p538 = por %p536, %p537
      %p539 = scmp.ne.s32.totalorder %s525, %s526
      %p540 = scmp.eq.s32.totalorder %s51, 1
      %p541 = por %p539, %p540
      %p543 = scmp.ne.s32.totalorder %s526, %s542
      %p544 = scmp.eq.s32.totalorder %s51, 0
      %p545 = por %p543, %p544
      %s546 = ssub.s32 %s45, %s52
      %p547 = scmp.eq.s32.totalorder %s546, 0
      %s549 = sadd.s32 %s548, 1
      %s550 = scalar_select %p547, %s548, %s549
      %p553 = pneg %p547
      %p554 = scmp.eq.s32.totalorder %s45, 1
      %p555 = por %p553, %p554
      %p556 = scmp.ne.s32.totalorder %s548, %s551
      %p557 = scmp.eq.s32.totalorder %s45, 0
      %p558 = por %p556, %p557
      %p559 = scmp.ne.s32.totalorder %s548, %s551
      %p560 = scmp.eq.s32.totalorder %s50, 1
      %p561 = por %p559, %p560
      %p562 = scmp.ne.s32.totalorder %s551, %s552
      %p563 = scmp.eq.s32.totalorder %s50, 0
      %p564 = por %p562, %p563
      %p565 = scmp.ne.s32.totalorder %s551, %s552
      %p566 = scmp.eq.s32.totalorder %s51, 1
      %p567 = por %p565, %p566
      %p569 = scmp.ne.s32.totalorder %s552, %s568
      %p570 = scmp.eq.s32.totalorder %s51, 0
      %p571 = por %p569, %p570
      %p572 = scmp.le.s32.totalorder 1, %s45
      %p573 = scmp.lt.s32.totalorder %s45, 3
      %p574 = pnand %p572, %p573
      %p575 = pneg %p574
      // Predicated region
      $region9: #{transformer_large_forward.1} parent=5 // pred_check
        _
      $region10: #{transformer_large_forward.1} parent=5 // pred_check_branch
        %577 = sbr.rel (%p574) target = $region12
      $region11: #{transformer_large_forward.1} parent=5 // pred_region
        %s578 = ssub.s32 %s45, 1
        // Predicated region
        $region13: #{transformer_large_forward.1} parent=11 // pred_check
          %p579 = pneg %p92
        $region14: #{transformer_large_forward.1} parent=11 // pred_check_branch
          %581 = sbr.rel (%p579) target = $region16
        $region15: #{transformer_large_forward.1} parent=11 // pred_region
          _
        $region16: #{transformer_large_forward.1} parent=11 // pred_fallthru
          _
        // Predicated region
        $region17: #{transformer_large_forward.1} parent=11 // pred_check
          %p582 = pneg %p113
        $region18: #{transformer_large_forward.1} parent=11 // pred_check_branch
          %584 = sbr.rel (%p582) target = $region20
        $region19: #{transformer_large_forward.1} parent=11 // pred_region
          _
        $region20: #{transformer_large_forward.1} parent=11 // pred_fallthru
          _
        // Predicated region
        $region21: #{transformer_large_forward.1} parent=11 // pred_check
          %p585 = pneg %p134
        $region22: #{transformer_large_forward.1} parent=11 // pred_check_branch
          %587 = sbr.rel (%p585) target = $region24
        $region23: #{transformer_large_forward.1} parent=11 // pred_region
          _
        $region24: #{transformer_large_forward.1} parent=11 // pred_fallthru
          _
        // Predicated region
        $region25: #{transformer_large_forward.1} parent=11 // pred_check
          %p588 = pneg %p155
        $region26: #{transformer_large_forward.1} parent=11 // pred_check_branch
          %590 = sbr.rel (%p588) target = $region28
        $region27: #{transformer_large_forward.1} parent=11 // pred_region
          _
        $region28: #{transformer_large_forward.1} parent=11 // pred_fallthru
          _
        // Predicated region
        $region29: #{transformer_large_forward.1} parent=11 // pred_check
          %p591 = pneg %p176
        $region30: #{transformer_large_forward.1} parent=11 // pred_check_branch
          %593 = sbr.rel (%p591) target = $region32
        $region31: #{transformer_large_forward.1} parent=11 // pred_region
          _
        $region32: #{transformer_large_forward.1} parent=11 // pred_fallthru
          _
        // Predicated region
        $region33: #{transformer_large_forward.1} parent=11 // pred_check
          %p594 = pneg %p197
        $region34: #{transformer_large_forward.1} parent=11 // pred_check_branch
          %596 = sbr.rel (%p594) target = $region36
        $region35: #{transformer_large_forward.1} parent=11 // pred_region
          _
        $region36: #{transformer_large_forward.1} parent=11 // pred_fallthru
          _
        // Predicated region
        $region37: #{transformer_large_forward.1} parent=11 // pred_check
          %p597 = pneg %p218
        $region38: #{transformer_large_forward.1} parent=11 // pred_check_branch
          %599 = sbr.rel (%p597) target = $region40
        $region39: #{transformer_large_forward.1} parent=11 // pred_region
          _
        $region40: #{transformer_large_forward.1} parent=11 // pred_fallthru
          _
        // Predicated region
        $region41: #{transformer_large_forward.1} parent=11 // pred_check
          %p600 = pneg %p239
        $region42: #{transformer_large_forward.1} parent=11 // pred_check_branch
          %602 = sbr.rel (%p600) target = $region44
        $region43: #{transformer_large_forward.1} parent=11 // pred_region
          _
        $region44: #{transformer_large_forward.1} parent=11 // pred_fallthru
          _
        // Predicated region
        $region45: #{transformer_large_forward.1} parent=11 // pred_check
          %p603 = pneg %p260
        $region46: #{transformer_large_forward.1} parent=11 // pred_check_branch
          %605 = sbr.rel (%p603) target = $region48
        $region47: #{transformer_large_forward.1} parent=11 // pred_region
          _
        $region48: #{transformer_large_forward.1} parent=11 // pred_fallthru
          _
        // Predicated region
        $region49: #{transformer_large_forward.1} parent=11 // pred_check
          %p606 = pneg %p281
        $region50: #{transformer_large_forward.1} parent=11 // pred_check_branch
          %608 = sbr.rel (%p606) target = $region52
        $region51: #{transformer_large_forward.1} parent=11 // pred_region
          _
        $region52: #{transformer_large_forward.1} parent=11 // pred_fallthru
          _
        // Predicated region
        $region53: #{transformer_large_forward.1} parent=11 // pred_check
          %p609 = pneg %p302
        $region54: #{transformer_large_forward.1} parent=11 // pred_check_branch
          %611 = sbr.rel (%p609) target = $region56
        $region55: #{transformer_large_forward.1} parent=11 // pred_region
          _
        $region56: #{transformer_large_forward.1} parent=11 // pred_fallthru
          _
        // Predicated region
        $region57: #{transformer_large_forward.1} parent=11 // pred_check
          %p612 = pneg %p323
        $region58: #{transformer_large_forward.1} parent=11 // pred_check_branch
          %614 = sbr.rel (%p612) target = $region60
        $region59: #{transformer_large_forward.1} parent=11 // pred_region
          _
        $region60: #{transformer_large_forward.1} parent=11 // pred_fallthru
          _
        // Predicated region
        $region61: #{transformer_large_forward.1} parent=11 // pred_check
          %p615 = pneg %p344
        $region62: #{transformer_large_forward.1} parent=11 // pred_check_branch
          %617 = sbr.rel (%p615) target = $region64
        $region63: #{transformer_large_forward.1} parent=11 // pred_region
          _
        $region64: #{transformer_large_forward.1} parent=11 // pred_fallthru
          _
        // Predicated region
        $region65: #{transformer_large_forward.1} parent=11 // pred_check
          %p618 = pneg %p365
        $region66: #{transformer_large_forward.1} parent=11 // pred_check_branch
          %620 = sbr.rel (%p618) target = $region68
        $region67: #{transformer_large_forward.1} parent=11 // pred_region
          _
        $region68: #{transformer_large_forward.1} parent=11 // pred_fallthru
          _
        // Predicated region
        $region69: #{transformer_large_forward.1} parent=11 // pred_check
          %p621 = pneg %p386
        $region70: #{transformer_large_forward.1} parent=11 // pred_check_branch
          %623 = sbr.rel (%p621) target = $region72
        $region71: #{transformer_large_forward.1} parent=11 // pred_region
          _
        $region72: #{transformer_large_forward.1} parent=11 // pred_fallthru
          _
        // Predicated region
        $region73: #{transformer_large_forward.1} parent=11 // pred_check
          %p624 = pneg %p407
        $region74: #{transformer_large_forward.1} parent=11 // pred_check_branch
          %626 = sbr.rel (%p624) target = $region76
        $region75: #{transformer_large_forward.1} parent=11 // pred_region
          _
        $region76: #{transformer_large_forward.1} parent=11 // pred_fallthru
          _
        // Predicated region
        $region77: #{transformer_large_forward.1} parent=11 // pred_check
          %p627 = pneg %p428
        $region78: #{transformer_large_forward.1} parent=11 // pred_check_branch
          %629 = sbr.rel (%p627) target = $region80
        $region79: #{transformer_large_forward.1} parent=11 // pred_region
          _
        $region80: #{transformer_large_forward.1} parent=11 // pred_fallthru
          _
        // Predicated region
        $region81: #{transformer_large_forward.1} parent=11 // pred_check
          %p630 = pneg %p449
        $region82: #{transformer_large_forward.1} parent=11 // pred_check_branch
          %632 = sbr.rel (%p630) target = $region84
        $region83: #{transformer_large_forward.1} parent=11 // pred_region
          _
        $region84: #{transformer_large_forward.1} parent=11 // pred_fallthru
          _
        // Predicated region
        $region85: #{transformer_large_forward.1} parent=11 // pred_check
          %p633 = pneg %p470
        $region86: #{transformer_large_forward.1} parent=11 // pred_check_branch
          %635 = sbr.rel (%p633) target = $region88
        $region87: #{transformer_large_forward.1} parent=11 // pred_region
          _
        $region88: #{transformer_large_forward.1} parent=11 // pred_fallthru
          _
        // Predicated region
        $region89: #{transformer_large_forward.1} parent=11 // pred_check
          %p636 = pneg %p491
        $region90: #{transformer_large_forward.1} parent=11 // pred_check_branch
          %638 = sbr.rel (%p636) target = $region92
        $region91: #{transformer_large_forward.1} parent=11 // pred_region
          _
        $region92: #{transformer_large_forward.1} parent=11 // pred_fallthru
          _
        // Predicated region
        $region93: #{transformer_large_forward.1} parent=11 // pred_check
          %p639 = pneg %p512
        $region94: #{transformer_large_forward.1} parent=11 // pred_check_branch
          %641 = sbr.rel (%p639) target = $region96
        $region95: #{transformer_large_forward.1} parent=11 // pred_region
          _
        $region96: #{transformer_large_forward.1} parent=11 // pred_fallthru
          _
      $region12: #{transformer_large_forward.1} parent=5 // pred_fallthru
        _
      %p642 = scmp.lt.s32.totalorder %s45, 2
      // Predicated region
      $region97: #{transformer_large_forward.1} parent=5 // pred_check
        %p643 = pneg %p642
      $region98: #{transformer_large_forward.1} parent=5 // pred_check_branch
        %645 = sbr.rel (%p643) target = $region100
      $region99: #{transformer_large_forward.1} parent=5 // pred_region
        // Predicated region
        $region101: #{transformer_large_forward.1} parent=99 // pred_check
          %p646 = pneg %p65
        $region102: #{transformer_large_forward.1} parent=99 // pred_check_branch
          %648 = sbr.rel (%p646) target = $region104
        $region103: #{transformer_large_forward.1} parent=99 // pred_region
          %p649 = scmp.lt.s32.totalorder %s45, 1
          %s650 = scalar_select %p649, %s45, 1
          %s651 = smul.addr %s650, 3
          %s652 = smul.addr %s651, 8
          %s653 = scalar_lea.vmem %s1, %s652
        $region104: #{transformer_large_forward.1} parent=99 // pred_fallthru
          _
      $region100: #{transformer_large_forward.1} parent=5 // pred_fallthru
        _
      %p654 = scmp.le.s32.totalorder 1, %s45
      %p655 = scmp.lt.s32.totalorder %s45, 3
      %p656 = pnand %p654, %p655
      %p657 = pneg %p656
      // Predicated region
      $region105: #{transformer_large_forward.1} parent=5 // pred_check
        _
      $region106: #{transformer_large_forward.1} parent=5 // pred_check_branch
        %659 = sbr.rel (%p656) target = $region108
      $region107: #{transformer_large_forward.1} parent=5 // pred_region
        %s660 = ssub.s32 %s45, 1
        %p661 = scmp.lt.s32.totalorder %s50, 1
        %s662 = scalar_select %p661, %s50, 1
        %s663 = smul.addr %s662, 3
        %s664 = smul.addr %s663, 8
        %s665 = scalar_lea.vmem %s1, %s664
        %p666 = pneg %p71
        %p667 = pneg %p68
        %p668 = pneg %p92
        %p669 = pneg %p89
        %p670 = pneg %p113
        %p671 = pneg %p110
        %p672 = pneg %p134
        %p673 = pneg %p131
        %p674 = pneg %p155
        %p675 = pneg %p152
        %p676 = pneg %p176
        %p677 = pneg %p173
        %p678 = pneg %p197
        %p679 = pneg %p194
        %p680 = pneg %p218
        %p681 = pneg %p215
        %p682 = pneg %p239
        %p683 = pneg %p236
        %p684 = pneg %p260
        %p685 = pneg %p257
        %p686 = pneg %p281
        %p687 = pneg %p278
        %p688 = pneg %p302
        %p689 = pneg %p299
        %p690 = pneg %p323
        %p691 = pneg %p320
        %p692 = pneg %p344
        %p693 = pneg %p341
        %p694 = pneg %p365
        %p695 = pneg %p362
        %p696 = pneg %p386
        %p697 = pneg %p383
        %p698 = pneg %p407
        %p699 = pneg %p404
        %p700 = pneg %p428
        %p701 = pneg %p425
        %p702 = pneg %p449
        %p703 = pneg %p446
        %p704 = pneg %p470
        %p705 = pneg %p467
        %p706 = pneg %p491
        %p707 = pneg %p488
        %p708 = pneg %p512
        %p709 = pneg %p509
        %p710 = pneg %p538
        %p711 = pneg %p535
        %s712 = sand.u32 %s525, 1
        %s713 = scalar_lea.sflag [#allocation5], %s712
        %s714 = sand.u32 %s525, 1
        %s715 = scalar_lea.vmem [#allocation4], %s714
        %p716 = pneg %p564
        %p717 = pneg %p561
        %s718 = sand.u32 %s551, 1
        %s719 = scalar_lea.sflag [#allocation7], %s718
        %s720 = sand.u32 %s551, 1
        %s721 = scalar_lea.vmem [#allocation6], %s720
        %p722 = scmp.lt.s32.totalorder %s50, 1
        %s723 = scalar_select %p722, %s50, 1
        %s724 = smul.addr %s723, 3
        %s725 = smul.addr %s724, 8
        %s726 = scalar_lea.vmem %s1, %s725
        %v727 = vld [vmem:[%s726] sm:$0xff]
        %v728 = vld [vmem:[%s726 + $0x8] sm:$0xff]
        %v729 = vld [vmem:[%s726 + $0x10] sm:$0x1]
        %v730 = vld [vmem:[%s2] sm:$0xff]
        %v731 = vld [vmem:[%s2 + $0x8] sm:$0xff]
        %v732 = vld [vmem:[%s2 + $0x10] sm:$0xff]
        %v733 = vld [vmem:[%s2 + $0x18] sm:$0xff]
        %v734 = vld [vmem:[%s2 + $0x20] sm:$0xff]
        %v735 = vld [vmem:[%s2 + $0x28] sm:$0xff]
        %v736 = vld [vmem:[%s3] sm:$0x1]
        %v738 = vperm.slane %v736, 0
        %vm740 = vcmask 392192
        %v742 = vsel %vm740, %v727, 0
        %v745 = vsel %vm740, %v728, 0
        %v748 = vsel %vm740, %v729, 0
        %750 = vmatpush.msra.mxu0 0.0
        %751 = vmatpush.msra.mxu0 0.0
        %752 = vmatpush.msra.mxu0 0.0
        %753 = vmatpush.msra.mxu0 0.0
        %754 = vmatpush.msra.mxu0 0.0
        %755 = vmatpush.msra.mxu0 0.0
        %756 = vmatpush.msra.mxu0 0.0
        %757 = vmatpush.msra.mxu0 0.0
        %758 = vmatpush.msra.mxu0 0.0
        %759 = vmatpush.msra.mxu0 0.0
        %760 = vmatpush.msra.mxu0 %v735
        %761 = vmatpush.msra.mxu0 %v734
        %762 = vmatpush.msra.mxu0 %v733
        %763 = vmatpush.msra.mxu0 %v732
        %764 = vmatpush.msra.mxu0 %v731
        %765 = vmatpush.msra.mxu0 %v730
        %766 = vmatmul.f32.gmra.mxu0 %v742
        %v767 = vpop.f32.mrf.mxu0
        %v768 = vadd.f32 %v738, %v767
        %769 = vmatmul.f32.gmra.mxu0 %v745
        %v770 = vpop.f32.mrf.mxu0
        %v771 = vadd.f32 %v738, %v770
        %772 = vmatmul.f32.gmra.mxu0 %v748
        %v773 = vpop.f32.mrf.mxu0
        %v774 = vadd.f32 %v738, %v773
        %775 = vdwg.mxu0
        %v776 = vlaneseq
        %v777 = vshrl.u32 %v776, 7
        %v778 = vadd.s32 %v777, 8
        %v779 = vadd.s32 %v777, 16
        %vm780 = vcmp.eq.s32.totalorder %v777, 0
        %vm781 = vcmp.eq.s32.totalorder %v778, 0
        %vm782 = vcmp.eq.s32.totalorder %v779, 0
        %v783 = vsel %vm780, 1, 0
        %v784 = vsel %vm781, 1, 0
        %v785 = vsel %vm782, 1, 0
        %v786 = vcvt.s32.f32 %v783
        %v787 = vcvt.s32.f32 %v784
        %v788 = vcvt.s32.f32 %v785
        %v789 = vld [vmem:[%s5] sm:$0xff]
        %v790 = vld [vmem:[%s5 + $0x8] sm:$0xff]
        %v791 = vld [vmem:[%s5 + $0x10] sm:$0x1]
        %v792 = vadd.f32 %v768, %v789
        %v793 = vadd.f32 %v771, %v790
        %v794 = vadd.f32 %v774, %v791
        %v795 = vld [vmem:[%s4] sm:$0x1]
        %v796 = vsub.f32 %v795, %v736
        %v798 = vperm.slane %v796, 0
        %v800 = vmul.f32 %v786, %v798
        %v801 = vmul.f32 %v787, %v798
        %v802 = vmul.f32 %v788, %v798
        %v803 = vadd.f32 %v792, %v800
        %v804 = vadd.f32 %v793, %v801
        %v805 = vadd.f32 %v794, %v802
        %v806 = vld [vmem:[%s6] sm:$0x1]
        %v807 = vld [vmem:[%s7] sm:$0x1]
        %vm808 = vcmask 261120
        %v809 = vsel %vm808, %v803, 0.0
        %810 = vadd.xlane.f32.xlu0 %v809
        %v811 = vpop.xlane.xlu0 %810
        %v812 = vsel %vm808, %v804, 0.0
        %813 = vadd.xlane.f32.xlu0 %v812
        %v814 = vpop.xlane.xlu0 %813
        %vm815 = vcmask 253952
        %v816 = vsel %vm815, %v805, 0.0
        %817 = vadd.xlane.f32.xlu0 %v816
        %v818 = vpop.xlane.xlu0 %817
        %v819 = vrcp.pop 32.0
        %v820 = vmul.f32 32.0, %v819
        %v821 = vsub.f32 1.0, %v820
        %v822 = vmul.f32 %v819, %v821
        %v823 = vadd.f32 %v819, %v822
        %vm824 = vweird.f32 %v819
        %v825 = vsel %vm824, %v819, %v823
        %v826 = vmul.f32 %v811, %v825
        %v827 = vmul.f32 %v814, %v825
        %v828 = vmul.f32 %v818, %v825
        %v829 = vsub.f32 %v803, %v826
        %v830 = vsub.f32 %v804, %v827
        %v831 = vsub.f32 %v805, %v828
        %v832 = vmul.f32 %v829, %v829
        %v833 = vmul.f32 %v830, %v830
        %v834 = vmul.f32 %v831, %v831
        %v835 = vsel %vm808, %v832, 0.0
        %836 = vadd.xlane.f32.xlu0 %v835
        %v837 = vpop.xlane.xlu0 %836
        %v838 = vsel %vm808, %v833, 0.0
        %839 = vadd.xlane.f32.xlu0 %v838
        %v840 = vpop.xlane.xlu0 %839
        %v841 = vsel %vm815, %v834, 0.0
        %842 = vadd.xlane.f32.xlu0 %v841
        %v843 = vpop.xlane.xlu0 %842
        %v844 = vmul.f32 %v837, %v825
        %v845 = vmul.f32 %v840, %v825
        %v846 = vmul.f32 %v843, %v825
        %v847 = vadd.f32 %v844, 1e-06
        %v848 = vadd.f32 %v845, 1e-06
        %v849 = vadd.f32 %v846, 1e-06
        %v850 = vrsqrt.pop %v847
        %v851 = vmul.f32 %v850, %v847
        %v852 = vmul.f32 %v851, %v850
        %v853 = vmul.f32 0.5, %v852
        %v854 = vsub.f32 1.5, %v853
        %v855 = vmul.f32 %v850, %v854
        %vm856 = vweird.f32 %v847
        %vm857 = vweird.f32 %v850
        %vm858 = vmor %vm856, %vm857
        %v859 = vsel %vm858, %v850, %v855
        %v860 = vrsqrt.pop %v848
        %v861 = vmul.f32 %v860, %v848
        %v862 = vmul.f32 %v861, %v860
        %v863 = vmul.f32 0.5, %v862
        %v864 = vsub.f32 1.5, %v863
        %v865 = vmul.f32 %v860, %v864
        %vm866 = vweird.f32 %v848
        %vm867 = vweird.f32 %v860
        %vm868 = vmor %vm866, %vm867
        %v869 = vsel %vm868, %v860, %v865
        %v870 = vrsqrt.pop %v849
        %v871 = vmul.f32 %v870, %v849
        %v872 = vmul.f32 %v871, %v870
        %v873 = vmul.f32 0.5, %v872
        %v874 = vsub.f32 1.5, %v873
        %v875 = vmul.f32 %v870, %v874
        %vm876 = vweird.f32 %v849
        %vm877 = vweird.f32 %v870
        %vm878 = vmor %vm876, %vm877
        %v879 = vsel %vm878, %v870, %v875
        %v880 = vmul.f32 %v829, %v859
        %v881 = vmul.f32 %v830, %v869
        %v882 = vmul.f32 %v831, %v879
        %v884 = vperm.slane %v806, 0
        %v886 = vmul.f32 %v880, %v884
        %v887 = vmul.f32 %v881, %v884
        %v888 = vmul.f32 %v882, %v884
        %v890 = vperm.slane %v807, 0
        %v892 = vadd.f32 %v886, %v890
        %v893 = vadd.f32 %v887, %v890
        %v894 = vadd.f32 %v888, %v890
        %v895 = vld [vmem:[%s8] sm:$0xff]
        %v896 = vld [vmem:[%s8 + $0x8] sm:$0xff]
        %v897 = vld [vmem:[%s8 + $0x10] sm:$0xff]
        %v898 = vld [vmem:[%s8 + $0x18] sm:$0xff]
        %v899 = vld [vmem:[%s9] sm:$0x1]
        %v901 = vperm.slane %v899, 0
        %v904 = vsel %vm808, %v892, 0
        %v907 = vsel %vm808, %v893, 0
        %v910 = vsel %vm808, %v894, 0
        %912 = vmatpush.msra.mxu0 0.0
        %913 = vmatpush.msra.mxu0 0.0
        %914 = vmatpush.msra.mxu0 0.0
        %915 = vmatpush.msra.mxu0 0.0
        %916 = vmatpush.msra.mxu0 0.0
        %917 = vmatpush.msra.mxu0 0.0
        %918 = vmatpush.msra.mxu0 0.0
        %919 = vmatpush.msra.mxu0 0.0
        %920 = vmatpush.msra.mxu0 0.0
        %921 = vmatpush.msra.mxu0 0.0
        %922 = vmatpush.msra.mxu0 0.0
        %923 = vmatpush.msra.mxu0 0.0
        %924 = vmatpush.msra.mxu0 %v898
        %925 = vmatpush.msra.mxu0 %v897
        %926 = vmatpush.msra.mxu0 %v896
        %927 = vmatpush.msra.mxu0 %v895
        %928 = vmatmul.f32.gmra.mxu0 %v904
        %v929 = vpop.f32.mrf.mxu0
        %v930 = vadd.f32 %v901, %v929
        %931 = vmatmul.f32.gmra.mxu0 %v907
        %v932 = vpop.f32.mrf.mxu0
        %v933 = vadd.f32 %v901, %v932
        %934 = vmatmul.f32.gmra.mxu0 %v910
        %v935 = vpop.f32.mrf.mxu0
        %v936 = vadd.f32 %v901, %v935
        %937 = vdwg.mxu0
        %v938 = vld [vmem:[%s10] sm:$0xff]
        %v939 = vld [vmem:[%s10 + $0x8] sm:$0xff]
        %v940 = vld [vmem:[%s10 + $0x10] sm:$0xff]
        %v941 = vld [vmem:[%s10 + $0x18] sm:$0xff]
        %945 = vrot.lane.b32.xlu0 %v930, 96
        %v946 = vpop.permute.xlu0 %945
        %947 = vrot.lane.b32.xlu0 %v933, 96
        %v948 = vpop.permute.xlu0 %947
        %949 = vrot.lane.b32.xlu0 %v936, 96
        %v950 = vpop.permute.xlu0 %949
        %vm951 = vcmask 130048
        %v952 = vsel %vm951, %v930, 0
        %v954 = vsel %vm951, %v933, 0
        %v956 = vsel %vm951, %v936, 0
        %v958 = vsel %vm951, %v946, 0
        %v960 = vsel %vm951, %v948, 0
        %v962 = vsel %vm951, %v950, 0
        %964 = vmatpush.xpose.msra.mxu0 0.0
        %965 = vmatpush.xpose.msra.mxu0 0.0
        %966 = vmatpush.xpose.msra.mxu0 0.0
        %967 = vmatpush.xpose.msra.mxu0 0.0
        %968 = vmatpush.xpose.msra.mxu0 0.0
        %969 = vmatpush.xpose.msra.mxu0 0.0
        %970 = vmatpush.xpose.msra.mxu0 0.0
        %971 = vmatpush.xpose.msra.mxu0 0.0
        %972 = vmatpush.xpose.msra.mxu0 0.0
        %973 = vmatpush.xpose.msra.mxu0 0.0
        %974 = vmatpush.xpose.msra.mxu0 0.0
        %975 = vmatpush.xpose.msra.mxu0 0.0
        %976 = vmatpush.xpose.msra.mxu0 0.0
        %977 = vmatpush.xpose.msra.mxu0 %v962
        %978 = vmatpush.xpose.msra.mxu0 %v960
        %979 = vmatpush.xpose.msra.mxu0 %v958
        %980 = vmatmul.f32.gmra.mxu0 %v952
        %v981 = vpop.f32.mrf.mxu0
        %v982 = vadd.f32 0.0, %v981
        %983 = vmatmul.f32.gmra.mxu0 %v954
        %v984 = vpop.f32.mrf.mxu0
        %v985 = vadd.f32 0.0, %v984
        %986 = vmatmul.f32.gmra.mxu0 %v956
        %v987 = vpop.f32.mrf.mxu0
        %v988 = vadd.f32 0.0, %v987
        %989 = vdwg.mxu0
        %v990 = vmul.f32 %v982, 0.25
        %v991 = vmul.f32 %v985, 0.25
        %v992 = vmul.f32 %v988, 0.25
        %vm993 = vcmask 138240
        %v994 = vsel %vm993, %v990, -inf
        %995 = vmax.xlane.f32.xlu0 %v994
        %v996 = vpop.xlane.xlu0 %995
        %v997 = vsel %vm993, %v991, -inf
        %998 = vmax.xlane.f32.xlu0 %v997
        %v999 = vpop.xlane.xlu0 %998
        %vm1000 = vcmask 131072
        %v1001 = vsel %vm1000, %v992, -inf
        %1002 = vmax.xlane.f32.xlu0 %v1001
        %v1003 = vpop.xlane.xlu0 %1002
        %v1004 = vsub.f32 %v990, %v996
        %v1005 = vsub.f32 %v991, %v999
        %v1006 = vsub.f32 %v992, %v1003
        %v1007 = vmul.f32 %v1004, 1.442695
        %v1008 = vpow.pop %v1007
        %v1009 = vmul.f32 %v1005, 1.442695
        %v1010 = vpow.pop %v1009
        %v1011 = vmul.f32 %v1006, 1.442695
        %v1012 = vpow.pop %v1011
        %v1013 = vsel %vm993, %v1008, 0.0
        %1014 = vadd.xlane.f32.xlu0 %v1013
        %v1015 = vpop.xlane.xlu0 %1014
        %v1016 = vsel %vm993, %v1010, 0.0
        %1017 = vadd.xlane.f32.xlu0 %v1016
        %v1018 = vpop.xlane.xlu0 %1017
        %v1019 = vsel %vm1000, %v1012, 0.0
        %1020 = vadd.xlane.f32.xlu0 %v1019
        %v1021 = vpop.xlane.xlu0 %1020
        %v1022 = vrcp.pop %v1015
        %v1023 = vmul.f32 %v1015, %v1022
        %v1024 = vsub.f32 1.0, %v1023
        %v1025 = vmul.f32 %v1022, %v1024
        %v1026 = vadd.f32 %v1022, %v1025
        %vm1027 = vweird.f32 %v1015
        %vm1028 = vweird.f32 %v1022
        %vm1029 = vmor %vm1027, %vm1028
        %v1030 = vsel %vm1029, %v1022, %v1026
        %v1031 = vand.u32 2147483647, %v1015
        %vm1032 = vcmp.eq.f32.partialorder %v1031, 8.507059e+37
        %v1033 = vand.u32 %v1015, 2147483648
        %v1034 = vor.u32 1.1754944e-38, %v1033
        %v1035 = vsel %vm1032, %v1034, %v1030
        %v1036 = vmul.f32 %v1008, %v1035
        %v1037 = vrcp.pop %v1018
        %v1038 = vmul.f32 %v1018, %v1037
        %v1039 = vsub.f32 1.0, %v1038
        %v1040 = vmul.f32 %v1037, %v1039
        %v1041 = vadd.f32 %v1037, %v1040
        %vm1042 = vweird.f32 %v1018
        %vm1043 = vweird.f32 %v1037
        %vm1044 = vmor %vm1042, %vm1043
        %v1045 = vsel %vm1044, %v1037, %v1041
        %v1046 = vand.u32 2147483647, %v1018
        %vm1047 = vcmp.eq.f32.partialorder %v1046, 8.507059e+37
        %v1048 = vand.u32 %v1018, 2147483648
        %v1049 = vor.u32 1.1754944e-38, %v1048
        %v1050 = vsel %vm1047, %v1049, %v1045
        %v1051 = vmul.f32 %v1010, %v1050
        %v1052 = vrcp.pop %v1021
        %v1053 = vmul.f32 %v1021, %v1052
        %v1054 = vsub.f32 1.0, %v1053
        %v1055 = vmul.f32 %v1052, %v1054
        %v1056 = vadd.f32 %v1052, %v1055
        %vm1057 = vweird.f32 %v1021
        %vm1058 = vweird.f32 %v1052
        %vm1059 = vmor %vm1057, %vm1058
        %v1060 = vsel %vm1059, %v1052, %v1056
        %v1061 = vand.u32 2147483647, %v1021
        %vm1062 = vcmp.eq.f32.partialorder %v1061, 8.507059e+37
        %v1063 = vand.u32 %v1021, 2147483648
        %v1064 = vor.u32 1.1754944e-38, %v1063
        %v1065 = vsel %vm1062, %v1064, %v1060
        %v1066 = vmul.f32 %v1012, %v1065
        %1067 = vrot.lane.b32.xlu0 %v930, 64
        %v1068 = vpop.permute.xlu0 %1067
        %1069 = vrot.lane.b32.xlu0 %v933, 64
        %v1070 = vpop.permute.xlu0 %1069
        %1071 = vrot.lane.b32.xlu0 %v936, 64
        %v1072 = vpop.permute.xlu0 %1071
        %v1076 = vsel %vm993, %v1036, 0
        %v1079 = vsel %vm993, %v1051, 0
        %v1082 = vsel %vm993, %v1066, 0
        %vm1084 = vcmask 1040384
        %v1085 = vsel %vm1084, %v1072, 0
        %1087 = vmatpush.msra.mxu0 0.0
        %1088 = vmatpush.msra.mxu0 0.0
        %1089 = vmatpush.msra.mxu0 0.0
        %1090 = vmatpush.msra.mxu0 0.0
        %1091 = vmatpush.msra.mxu0 0.0
        %1092 = vmatpush.msra.mxu0 0.0
        %1093 = vmatpush.msra.mxu0 0.0
        %1094 = vmatpush.msra.mxu0 0.0
        %1095 = vmatpush.msra.mxu0 0.0
        %1096 = vmatpush.msra.mxu0 0.0
        %1097 = vmatpush.msra.mxu0 0.0
        %1098 = vmatpush.msra.mxu0 0.0
        %1099 = vmatpush.msra.mxu0 0.0
        %1100 = vmatpush.msra.mxu0 %v1085
        %1101 = vmatpush.msra.mxu0 %v1070
        %1102 = vmatpush.msra.mxu0 %v1068
        %1103 = vmatmul.f32.gmra.mxu0 %v1076
        %v1104 = vpop.f32.mrf.mxu0
        %v1105 = vadd.f32 0.0, %v1104
        %1106 = vmatmul.f32.gmra.mxu0 %v1079
        %v1107 = vpop.f32.mrf.mxu0
        %v1108 = vadd.f32 0.0, %v1107
        %1109 = vmatmul.f32.gmra.mxu0 %v1082
        %v1110 = vpop.f32.mrf.mxu0
        %v1111 = vadd.f32 0.0, %v1110
        %1112 = vdwg.mxu0
        %1113 = vrot.lane.b32.xlu0 %v930, 112
        %v1114 = vpop.permute.xlu0 %1113
        %1115 = vrot.lane.b32.xlu0 %v933, 112
        %v1116 = vpop.permute.xlu0 %1115
        %1117 = vrot.lane.b32.xlu0 %v936, 112
        %v1118 = vpop.permute.xlu0 %1117
        %1119 = vrot.lane.b32.xlu0 %v930, 80
        %v1120 = vpop.permute.xlu0 %1119
        %1121 = vrot.lane.b32.xlu0 %v933, 80
        %v1122 = vpop.permute.xlu0 %1121
        %1123 = vrot.lane.b32.xlu0 %v936, 80
        %v1124 = vpop.permute.xlu0 %1123
        %v1125 = vsel %vm951, %v1114, 0
        %v1127 = vsel %vm951, %v1116, 0
        %v1129 = vsel %vm951, %v1118, 0
        %v1131 = vsel %vm951, %v1120, 0
        %v1133 = vsel %vm951, %v1122, 0
        %v1135 = vsel %vm951, %v1124, 0
        %1137 = vmatpush.xpose.msra.mxu0 0.0
        %1138 = vmatpush.xpose.msra.mxu0 0.0
        %1139 = vmatpush.xpose.msra.mxu0 0.0
        %1140 = vmatpush.xpose.msra.mxu0 0.0
        %1141 = vmatpush.xpose.msra.mxu0 0.0
        %1142 = vmatpush.xpose.msra.mxu0 0.0
        %1143 = vmatpush.xpose.msra.mxu0 0.0
        %1144 = vmatpush.xpose.msra.mxu0 0.0
        %1145 = vmatpush.xpose.msra.mxu0 0.0
        %1146 = vmatpush.xpose.msra.mxu0 0.0
        %1147 = vmatpush.xpose.msra.mxu0 0.0
        %1148 = vmatpush.xpose.msra.mxu0 0.0
        %1149 = vmatpush.xpose.msra.mxu0 0.0
        %1150 = vmatpush.xpose.msra.mxu0 %v1135
        %1151 = vmatpush.xpose.msra.mxu0 %v1133
        %1152 = vmatpush.xpose.msra.mxu0 %v1131
        %1153 = vmatmul.f32.gmra.mxu0 %v1125
        %v1154 = vpop.f32.mrf.mxu0
        %v1155 = vadd.f32 0.0, %v1154
        %1156 = vmatmul.f32.gmra.mxu0 %v1127
        %v1157 = vpop.f32.mrf.mxu0
        %v1158 = vadd.f32 0.0, %v1157
        %1159 = vmatmul.f32.gmra.mxu0 %v1129
        %v1160 = vpop.f32.mrf.mxu0
        %v1161 = vadd.f32 0.0, %v1160
        %1162 = vdwg.mxu0
        %v1163 = vmul.f32 %v1155, 0.25
        %v1164 = vmul.f32 %v1158, 0.25
        %v1165 = vmul.f32 %v1161, 0.25
        %v1166 = vsel %vm993, %v1163, -inf
        %1167 = vmax.xlane.f32.xlu0 %v1166
        %v1168 = vpop.xlane.xlu0 %1167
        %v1169 = vsel %vm993, %v1164, -inf
        %1170 = vmax.xlane.f32.xlu0 %v1169
        %v1171 = vpop.xlane.xlu0 %1170
        %v1172 = vsel %vm1000, %v1165, -inf
        %1173 = vmax.xlane.f32.xlu0 %v1172
        %v1174 = vpop.xlane.xlu0 %1173
        %v1175 = vsub.f32 %v1163, %v1168
        %v1176 = vsub.f32 %v1164, %v1171
        %v1177 = vsub.f32 %v1165, %v1174
        %v1178 = vmul.f32 %v1175, 1.442695
        %v1179 = vpow.pop %v1178
        %v1180 = vmul.f32 %v1176, 1.442695
        %v1181 = vpow.pop %v1180
        %v1182 = vmul.f32 %v1177, 1.442695
        %v1183 = vpow.pop %v1182
        %v1184 = vsel %vm993, %v1179, 0.0
        %1185 = vadd.xlane.f32.xlu0 %v1184
        %v1186 = vpop.xlane.xlu0 %1185
        %v1187 = vsel %vm993, %v1181, 0.0
        %1188 = vadd.xlane.f32.xlu0 %v1187
        %v1189 = vpop.xlane.xlu0 %1188
        %v1190 = vsel %vm1000, %v1183, 0.0
        %1191 = vadd.xlane.f32.xlu0 %v1190
        %v1192 = vpop.xlane.xlu0 %1191
        %v1193 = vrcp.pop %v1186
        %v1194 = vmul.f32 %v1186, %v1193
        %v1195 = vsub.f32 1.0, %v1194
        %v1196 = vmul.f32 %v1193, %v1195
        %v1197 = vadd.f32 %v1193, %v1196
        %vm1198 = vweird.f32 %v1186
        %vm1199 = vweird.f32 %v1193
        %vm1200 = vmor %vm1198, %vm1199
        %v1201 = vsel %vm1200, %v1193, %v1197
        %v1202 = vand.u32 2147483647, %v1186
        %vm1203 = vcmp.eq.f32.partialorder %v1202, 8.507059e+37
        %v1204 = vand.u32 %v1186, 2147483648
        %v1205 = vor.u32 1.1754944e-38, %v1204
        %v1206 = vsel %vm1203, %v1205, %v1201
        %v1207 = vmul.f32 %v1179, %v1206
        %v1208 = vrcp.pop %v1189
        %v1209 = vmul.f32 %v1189, %v1208
        %v1210 = vsub.f32 1.0, %v1209
        %v1211 = vmul.f32 %v1208, %v1210
        %v1212 = vadd.f32 %v1208, %v1211
        %vm1213 = vweird.f32 %v1189
        %vm1214 = vweird.f32 %v1208
        %vm1215 = vmor %vm1213, %vm1214
        %v1216 = vsel %vm1215, %v1208, %v1212
        %v1217 = vand.u32 2147483647, %v1189
        %vm1218 = vcmp.eq.f32.partialorder %v1217, 8.507059e+37
        %v1219 = vand.u32 %v1189, 2147483648
        %v1220 = vor.u32 1.1754944e-38, %v1219
        %v1221 = vsel %vm1218, %v1220, %v1216
        %v1222 = vmul.f32 %v1181, %v1221
        %v1223 = vrcp.pop %v1192
        %v1224 = vmul.f32 %v1192, %v1223
        %v1225 = vsub.f32 1.0, %v1224
        %v1226 = vmul.f32 %v1223, %v1225
        %v1227 = vadd.f32 %v1223, %v1226
        %vm1228 = vweird.f32 %v1192
        %vm1229 = vweird.f32 %v1223
        %vm1230 = vmor %vm1228, %vm1229
        %v1231 = vsel %vm1230, %v1223, %v1227
        %v1232 = vand.u32 2147483647, %v1192
        %vm1233 = vcmp.eq.f32.partialorder %v1232, 8.507059e+37
        %v1234 = vand.u32 %v1192, 2147483648
        %v1235 = vor.u32 1.1754944e-38, %v1234
        %v1236 = vsel %vm1233, %v1235, %v1231
        %v1237 = vmul.f32 %v1183, %v1236
        %1238 = vrot.lane.b32.xlu0 %v930, 48
        %v1239 = vpop.permute.xlu0 %1238
        %1240 = vrot.lane.b32.xlu0 %v933, 48
        %v1241 = vpop.permute.xlu0 %1240
        %1242 = vrot.lane.b32.xlu0 %v936, 48
        %v1243 = vpop.permute.xlu0 %1242
        %v1247 = vsel %vm993, %v1207, 0
        %v1250 = vsel %vm993, %v1222, 0
        %v1253 = vsel %vm993, %v1237, 0
        %v1255 = vsel %vm1084, %v1243, 0
        %1257 = vmatpush.msra.mxu0 0.0
        %1258 = vmatpush.msra.mxu0 0.0
        %1259 = vmatpush.msra.mxu0 0.0
        %1260 = vmatpush.msra.mxu0 0.0
        %1261 = vmatpush.msra.mxu0 0.0
        %1262 = vmatpush.msra.mxu0 0.0
        %1263 = vmatpush.msra.mxu0 0.0
        %1264 = vmatpush.msra.mxu0 0.0
        %1265 = vmatpush.msra.mxu0 0.0
        %1266 = vmatpush.msra.mxu0 0.0
        %1267 = vmatpush.msra.mxu0 0.0
        %1268 = vmatpush.msra.mxu0 0.0
        %1269 = vmatpush.msra.mxu0 0.0
        %1270 = vmatpush.msra.mxu0 %v1255
        %1271 = vmatpush.msra.mxu0 %v1241
        %1272 = vmatpush.msra.mxu0 %v1239
        %1273 = vmatmul.f32.gmra.mxu0 %v1247
        %v1274 = vpop.f32.mrf.mxu0
        %v1275 = vadd.f32 0.0, %v1274
        %1276 = vmatmul.f32.gmra.mxu0 %v1250
        %v1277 = vpop.f32.mrf.mxu0
        %v1278 = vadd.f32 0.0, %v1277
        %1279 = vmatmul.f32.gmra.mxu0 %v1253
        %v1280 = vpop.f32.mrf.mxu0
        %v1281 = vadd.f32 0.0, %v1280
        %1282 = vdwg.mxu0
        %v1284 = vsel %vm951, %v1275, 0
        %v1287 = vsel %vm951, %v1278, 0
        %v1290 = vsel %vm951, %v1281, 0
        %1292 = vmatpush.msra.mxu0 0.0
        %1293 = vmatpush.msra.mxu0 0.0
        %1294 = vmatpush.msra.mxu0 0.0
        %1295 = vmatpush.msra.mxu0 0.0
        %1296 = vmatpush.msra.mxu0 0.0
        %1297 = vmatpush.msra.mxu0 0.0
        %1298 = vmatpush.msra.mxu0 0.0
        %1299 = vmatpush.msra.mxu0 0.0
        %1300 = vmatpush.msra.mxu0 0.0
        %1301 = vmatpush.msra.mxu0 0.0
        %1302 = vmatpush.msra.mxu0 0.0
        %1303 = vmatpush.msra.mxu0 0.0
        %1304 = vmatpush.msra.mxu0 0.0
        %1305 = vmatpush.msra.mxu0 0.0
        %1306 = vmatpush.msra.mxu0 %v941
        %1307 = vmatpush.msra.mxu0 %v940
        %1308 = vmatmul.f32.gmra.mxu0 %v1284
        %v1309 = vpop.f32.mrf.mxu0
        %v1310 = vadd.f32 0.0, %v1309
        %1311 = vmatmul.f32.gmra.mxu0 %v1287
        %v1312 = vpop.f32.mrf.mxu0
        %v1313 = vadd.f32 0.0, %v1312
        %1314 = vmatmul.f32.gmra.mxu0 %v1290
        %v1315 = vpop.f32.mrf.mxu0
        %v1316 = vadd.f32 0.0, %v1315
        %1317 = vdwg.mxu0
        %v1319 = vsel %vm951, %v1105, 0
        %v1322 = vsel %vm951, %v1108, 0
        %v1325 = vsel %vm951, %v1111, 0
        %1327 = vmatpush.msra.mxu0 0.0
        %1328 = vmatpush.msra.mxu0 0.0
        %1329 = vmatpush.msra.mxu0 0.0
        %1330 = vmatpush.msra.mxu0 0.0
        %1331 = vmatpush.msra.mxu0 0.0
        %1332 = vmatpush.msra.mxu0 0.0
        %1333 = vmatpush.msra.mxu0 0.0
        %1334 = vmatpush.msra.mxu0 0.0
        %1335 = vmatpush.msra.mxu0 0.0
        %1336 = vmatpush.msra.mxu0 0.0
        %1337 = vmatpush.msra.mxu0 0.0
        %1338 = vmatpush.msra.mxu0 0.0
        %1339 = vmatpush.msra.mxu0 0.0
        %1340 = vmatpush.msra.mxu0 0.0
        %1341 = vmatpush.msra.mxu0 %v939
        %1342 = vmatpush.msra.mxu0 %v938
        %1343 = vmatmul.f32.gmra.mxu0 %v1319
        %v1344 = vpop.f32.mrf.mxu0
        %v1345 = vadd.f32 %v1310, %v1344
        %1346 = vmatmul.f32.gmra.mxu0 %v1322
        %v1347 = vpop.f32.mrf.mxu0
        %v1348 = vadd.f32 %v1313, %v1347
        %1349 = vmatmul.f32.gmra.mxu0 %v1325
        %v1350 = vpop.f32.mrf.mxu0
        %v1351 = vadd.f32 %v1316, %v1350
        %1352 = vdwg.mxu0
        %v1353 = vadd.f32 %v803, %v1345
        %v1354 = vadd.f32 %v804, %v1348
        %v1355 = vadd.f32 %v805, %v1351
        %v1356 = vld [vmem:[%s11] sm:$0x1]
        %v1358 = vperm.slane %v1356, 0
        %v1360 = vadd.f32 %v1353, %v1358
        %v1361 = vadd.f32 %v1354, %v1358
        %v1362 = vadd.f32 %v1355, %v1358
        %v1363 = vld [vmem:[%s12] sm:$0x1]
        %v1364 = vld [vmem:[%s13] sm:$0x1]
        %v1365 = vsel %vm808, %v1360, 0.0
        %1366 = vadd.xlane.f32.xlu0 %v1365
        %v1367 = vpop.xlane.xlu0 %1366
        %v1368 = vsel %vm808, %v1361, 0.0
        %1369 = vadd.xlane.f32.xlu0 %v1368
        %v1370 = vpop.xlane.xlu0 %1369
        %v1371 = vsel %vm815, %v1362, 0.0
        %1372 = vadd.xlane.f32.xlu0 %v1371
        %v1373 = vpop.xlane.xlu0 %1372
        %v1374 = vmul.f32 %v1367, %v825
        %v1375 = vmul.f32 %v1370, %v825
        %v1376 = vmul.f32 %v1373, %v825
        %v1377 = vsub.f32 %v1360, %v1374
        %v1378 = vsub.f32 %v1361, %v1375
        %v1379 = vsub.f32 %v1362, %v1376
        %v1380 = vmul.f32 %v1377, %v1377
        %v1381 = vmul.f32 %v1378, %v1378
        %v1382 = vmul.f32 %v1379, %v1379
        %v1383 = vsel %vm808, %v1380, 0.0
        %1384 = vadd.xlane.f32.xlu0 %v1383
        %v1385 = vpop.xlane.xlu0 %1384
        %v1386 = vsel %vm808, %v1381, 0.0
        %1387 = vadd.xlane.f32.xlu0 %v1386
        %v1388 = vpop.xlane.xlu0 %1387
        %v1389 = vsel %vm815, %v1382, 0.0
        %1390 = vadd.xlane.f32.xlu0 %v1389
        %v1391 = vpop.xlane.xlu0 %1390
        %v1392 = vmul.f32 %v1385, %v825
        %v1393 = vmul.f32 %v1388, %v825
        %v1394 = vmul.f32 %v1391, %v825
        %v1395 = vadd.f32 %v1392, 1e-06
        %v1396 = vadd.f32 %v1393, 1e-06
        %v1397 = vadd.f32 %v1394, 1e-06
        %v1398 = vrsqrt.pop %v1395
        %v1399 = vmul.f32 %v1398, %v1395
        %v1400 = vmul.f32 %v1399, %v1398
        %v1401 = vmul.f32 0.5, %v1400
        %v1402 = vsub.f32 1.5, %v1401
        %v1403 = vmul.f32 %v1398, %v1402
        %vm1404 = vweird.f32 %v1395
        %vm1405 = vweird.f32 %v1398
        %vm1406 = vmor %vm1404, %vm1405
        %v1407 = vsel %vm1406, %v1398, %v1403
        %v1408 = vrsqrt.pop %v1396
        %v1409 = vmul.f32 %v1408, %v1396
        %v1410 = vmul.f32 %v1409, %v1408
        %v1411 = vmul.f32 0.5, %v1410
        %v1412 = vsub.f32 1.5, %v1411
        %v1413 = vmul.f32 %v1408, %v1412
        %vm1414 = vweird.f32 %v1396
        %vm1415 = vweird.f32 %v1408
        %vm1416 = vmor %vm1414, %vm1415
        %v1417 = vsel %vm1416, %v1408, %v1413
        %v1418 = vrsqrt.pop %v1397
        %v1419 = vmul.f32 %v1418, %v1397
        %v1420 = vmul.f32 %v1419, %v1418
        %v1421 = vmul.f32 0.5, %v1420
        %v1422 = vsub.f32 1.5, %v1421
        %v1423 = vmul.f32 %v1418, %v1422
        %vm1424 = vweird.f32 %v1397
        %vm1425 = vweird.f32 %v1418
        %vm1426 = vmor %vm1424, %vm1425
        %v1427 = vsel %vm1426, %v1418, %v1423
        %v1428 = vmul.f32 %v1377, %v1407
        %v1429 = vmul.f32 %v1378, %v1417
        %v1430 = vmul.f32 %v1379, %v1427
        %v1432 = vperm.slane %v1363, 0
        %v1434 = vmul.f32 %v1428, %v1432
        %v1435 = vmul.f32 %v1429, %v1432
        %v1436 = vmul.f32 %v1430, %v1432
        %v1438 = vperm.slane %v1364, 0
        %v1440 = vadd.f32 %v1434, %v1438
        %v1441 = vadd.f32 %v1435, %v1438
        %v1442 = vadd.f32 %v1436, %v1438
        %v1443 = vld [vmem:[%s14] sm:$0xff]
        %v1444 = vld [vmem:[%s14 + $0x8] sm:$0xff]
        %v1445 = vld [vmem:[%s14 + $0x10] sm:$0xff]
        %v1446 = vld [vmem:[%s14 + $0x18] sm:$0xff]
        %v1447 = vld [vmem:[%s15] sm:$0x1]
        %v1449 = vperm.slane %v1447, 0
        %v1452 = vsel %vm808, %v1440, 0
        %v1455 = vsel %vm808, %v1441, 0
        %v1458 = vsel %vm808, %v1442, 0
        %1460 = vmatpush.msra.mxu0 0.0
        %1461 = vmatpush.msra.mxu0 0.0
        %1462 = vmatpush.msra.mxu0 0.0
        %1463 = vmatpush.msra.mxu0 0.0
        %1464 = vmatpush.msra.mxu0 0.0
        %1465 = vmatpush.msra.mxu0 0.0
        %1466 = vmatpush.msra.mxu0 0.0
        %1467 = vmatpush.msra.mxu0 0.0
        %1468 = vmatpush.msra.mxu0 0.0
        %1469 = vmatpush.msra.mxu0 0.0
        %1470 = vmatpush.msra.mxu0 0.0
        %1471 = vmatpush.msra.mxu0 0.0
        %1472 = vmatpush.msra.mxu0 %v1446
        %1473 = vmatpush.msra.mxu0 %v1445
        %1474 = vmatpush.msra.mxu0 %v1444
        %1475 = vmatpush.msra.mxu0 %v1443
        %1476 = vmatmul.f32.gmra.mxu0 %v1452
        %v1477 = vpop.f32.mrf.mxu0
        %v1478 = vadd.f32 %v1449, %v1477
        %1479 = vmatmul.f32.gmra.mxu0 %v1455
        %v1480 = vpop.f32.mrf.mxu0
        %v1481 = vadd.f32 %v1449, %v1480
        %1482 = vmatmul.f32.gmra.mxu0 %v1458
        %v1483 = vpop.f32.mrf.mxu0
        %v1484 = vadd.f32 %v1449, %v1483
        %1485 = vdwg.mxu0
        %v1486 = vmul.f32 %v1478, 0.5
        %v1487 = vmul.f32 %v1481, 0.5
        %v1488 = vmul.f32 %v1484, 0.5
        %v1489 = vmul.f32 %v1478, 0.70710677
        %v1490 = vmul.f32 %v1481, 0.70710677
        %v1491 = vmul.f32 %v1484, 0.70710677
        %v1492 = vmul.f32 %v1489, %v1489
        %v1493 = vmin.f32 16.0, %v1492
        %v1494 = vmul.f32 %v1493, 2.1237322e-06
        %v1495 = vadd.f32 %v1494, 0.00028619796
        %v1496 = vmul.f32 %v1493, %v1495
        %v1497 = vadd.f32 %v1496, 0.0036580483
        %v1498 = vmul.f32 %v1493, %v1497
        %v1499 = vadd.f32 %v1498, 0.05243302
        %v1500 = vmul.f32 %v1493, %v1499
        %v1501 = vadd.f32 %v1500, 0.18741608
        %v1502 = vmul.f32 %v1493, %v1501
        %v1503 = vadd.f32 %v1502, 1.1283791
        %v1504 = vmul.f32 %v1489, %v1503
        %v1505 = vmul.f32 %v1493, 3.8918573e-05
        %v1506 = vadd.f32 %v1505, 0.001143296
        %v1507 = vmul.f32 %v1493, %v1506
        %v1508 = vadd.f32 %v1507, 0.014752088
        %v1509 = vmul.f32 %v1493, %v1508
        %v1510 = vadd.f32 %v1509, 0.112945676
        %v1511 = vmul.f32 %v1493, %v1510
        %v1512 = vadd.f32 %v1511, 0.4994258
        %v1513 = vmul.f32 %v1493, %v1512
        %v1514 = vadd.f32 %v1513, 1.0
        %v1515 = vrcp.pop %v1514
        %v1516 = vmul.f32 %v1514, %v1515
        %v1517 = vsub.f32 1.0, %v1516
        %v1518 = vmul.f32 %v1515, %v1517
        %v1519 = vadd.f32 %v1515, %v1518
        %vm1520 = vweird.f32 %v1514
        %vm1521 = vweird.f32 %v1515
        %vm1522 = vmor %vm1520, %vm1521
        %v1523 = vsel %vm1522, %v1515, %v1519
        %v1524 = vand.u32 2147483647, %v1514
        %vm1525 = vcmp.eq.f32.partialorder %v1524, 8.507059e+37
        %v1526 = vand.u32 %v1514, 2147483648
        %v1527 = vor.u32 1.1754944e-38, %v1526
        %v1528 = vsel %vm1525, %v1527, %v1523
        %v1529 = vmul.f32 %v1504, %v1528
        %v1530 = vmin.f32 %v1529, 1.0
        %v1531 = vmax.f32 %v1530, -1.0
        %v1532 = vmul.f32 %v1490, %v1490
        %v1533 = vmin.f32 16.0, %v1532
        %v1534 = vmul.f32 %v1533, 2.1237322e-06
        %v1535 = vadd.f32 %v1534, 0.00028619796
        %v1536 = vmul.f32 %v1533, %v1535
        %v1537 = vadd.f32 %v1536, 0.0036580483
        %v1538 = vmul.f32 %v1533, %v1537
        %v1539 = vadd.f32 %v1538, 0.05243302
        %v1540 = vmul.f32 %v1533, %v1539
        %v1541 = vadd.f32 %v1540, 0.18741608
        %v1542 = vmul.f32 %v1533, %v1541
        %v1543 = vadd.f32 %v1542, 1.1283791
        %v1544 = vmul.f32 %v1490, %v1543
        %v1545 = vmul.f32 %v1533, 3.8918573e-05
        %v1546 = vadd.f32 %v1545, 0.001143296
        %v1547 = vmul.f32 %v1533, %v1546
        %v1548 = vadd.f32 %v1547, 0.014752088
        %v1549 = vmul.f32 %v1533, %v1548
        %v1550 = vadd.f32 %v1549, 0.112945676
        %v1551 = vmul.f32 %v1533, %v1550
        %v1552 = vadd.f32 %v1551, 0.4994258
        %v1553 = vmul.f32 %v1533, %v1552
        %v1554 = vadd.f32 %v1553, 1.0
        %v1555 = vrcp.pop %v1554
        %v1556 = vmul.f32 %v1554, %v1555
        %v1557 = vsub.f32 1.0, %v1556
        %v1558 = vmul.f32 %v1555, %v1557
        %v1559 = vadd.f32 %v1555, %v1558
        %vm1560 = vweird.f32 %v1554
        %vm1561 = vweird.f32 %v1555
        %vm1562 = vmor %vm1560, %vm1561
        %v1563 = vsel %vm1562, %v1555, %v1559
        %v1564 = vand.u32 2147483647, %v1554
        %vm1565 = vcmp.eq.f32.partialorder %v1564, 8.507059e+37
        %v1566 = vand.u32 %v1554, 2147483648
        %v1567 = vor.u32 1.1754944e-38, %v1566
        %v1568 = vsel %vm1565, %v1567, %v1563
        %v1569 = vmul.f32 %v1544, %v1568
        %v1570 = vmin.f32 %v1569, 1.0
        %v1571 = vmax.f32 %v1570, -1.0
        %v1572 = vmul.f32 %v1491, %v1491
        %v1573 = vmin.f32 16.0, %v1572
        %v1574 = vmul.f32 %v1573, 2.1237322e-06
        %v1575 = vadd.f32 %v1574, 0.00028619796
        %v1576 = vmul.f32 %v1573, %v1575
        %v1577 = vadd.f32 %v1576, 0.0036580483
        %v1578 = vmul.f32 %v1573, %v1577
        %v1579 = vadd.f32 %v1578, 0.05243302
        %v1580 = vmul.f32 %v1573, %v1579
        %v1581 = vadd.f32 %v1580, 0.18741608
        %v1582 = vmul.f32 %v1573, %v1581
        %v1583 = vadd.f32 %v1582, 1.1283791
        %v1584 = vmul.f32 %v1491, %v1583
        %v1585 = vmul.f32 %v1573, 3.8918573e-05
        %v1586 = vadd.f32 %v1585, 0.001143296
        %v1587 = vmul.f32 %v1573, %v1586
        %v1588 = vadd.f32 %v1587, 0.014752088
        %v1589 = vmul.f32 %v1573, %v1588
        %v1590 = vadd.f32 %v1589, 0.112945676
        %v1591 = vmul.f32 %v1573, %v1590
        %v1592 = vadd.f32 %v1591, 0.4994258
        %v1593 = vmul.f32 %v1573, %v1592
        %v1594 = vadd.f32 %v1593, 1.0
        %v1595 = vrcp.pop %v1594
        %v1596 = vmul.f32 %v1594, %v1595
        %v1597 = vsub.f32 1.0, %v1596
        %v1598 = vmul.f32 %v1595, %v1597
        %v1599 = vadd.f32 %v1595, %v1598
        %vm1600 = vweird.f32 %v1594
        %vm1601 = vweird.f32 %v1595
        %vm1602 = vmor %vm1600, %vm1601
        %v1603 = vsel %vm1602, %v1595, %v1599
        %v1604 = vand.u32 2147483647, %v1594
        %vm1605 = vcmp.eq.f32.partialorder %v1604, 8.507059e+37
        %v1606 = vand.u32 %v1594, 2147483648
        %v1607 = vor.u32 1.1754944e-38, %v1606
        %v1608 = vsel %vm1605, %v1607, %v1603
        %v1609 = vmul.f32 %v1584, %v1608
        %v1610 = vmin.f32 %v1609, 1.0
        %v1611 = vmax.f32 %v1610, -1.0
        %v1612 = vadd.f32 %v1531, 1.0
        %v1613 = vadd.f32 %v1571, 1.0
        %v1614 = vadd.f32 %v1611, 1.0
        %v1615 = vmul.f32 %v1486, %v1612
        %v1616 = vmul.f32 %v1487, %v1613
        %v1617 = vmul.f32 %v1488, %v1614
        %v1618 = vld [vmem:[%s16] sm:$0xff]
        %v1619 = vld [vmem:[%s16 + $0x8] sm:$0xff]
        %v1620 = vld [vmem:[%s16 + $0x10] sm:$0xff]
        %v1621 = vld [vmem:[%s16 + $0x18] sm:$0xff]
        %v1622 = vld [vmem:[%s16 + $0x20] sm:$0xff]
        %v1623 = vld [vmem:[%s16 + $0x28] sm:$0xff]
        %v1624 = vld [vmem:[%s16 + $0x30] sm:$0xff]
        %v1625 = vld [vmem:[%s16 + $0x38] sm:$0xff]
        %v1626 = vld [vmem:[%s17] sm:$0x1]
        %v1628 = vperm.slane %v1626, 0
        %vm1630 = vcmask 523264
        %v1632 = vsel %vm1630, %v1615, 0
        %v1635 = vsel %vm1630, %v1616, 0
        %v1638 = vsel %vm1630, %v1617, 0
        %1640 = vmatpush.msra.mxu0 0.0
        %1641 = vmatpush.msra.mxu0 0.0
        %1642 = vmatpush.msra.mxu0 0.0
        %1643 = vmatpush.msra.mxu0 0.0
        %1644 = vmatpush.msra.mxu0 0.0
        %1645 = vmatpush.msra.mxu0 0.0
        %1646 = vmatpush.msra.mxu0 0.0
        %1647 = vmatpush.msra.mxu0 0.0
        %1648 = vmatpush.msra.mxu0 %v1625
        %1649 = vmatpush.msra.mxu0 %v1624
        %1650 = vmatpush.msra.mxu0 %v1623
        %1651 = vmatpush.msra.mxu0 %v1622
        %1652 = vmatpush.msra.mxu0 %v1621
        %1653 = vmatpush.msra.mxu0 %v1620
        %1654 = vmatpush.msra.mxu0 %v1619
        %1655 = vmatpush.msra.mxu0 %v1618
        %1656 = vmatmul.f32.gmra.mxu0 %v1632
        %v1657 = vpop.f32.mrf.mxu0
        %v1658 = vadd.f32 %v1628, %v1657
        %1659 = vmatmul.f32.gmra.mxu0 %v1635
        %v1660 = vpop.f32.mrf.mxu0
        %v1661 = vadd.f32 %v1628, %v1660
        %1662 = vmatmul.f32.gmra.mxu0 %v1638
        %v1663 = vpop.f32.mrf.mxu0
        %v1664 = vadd.f32 %v1628, %v1663
        %1665 = vdwg.mxu0
        %v1666 = vadd.f32 %v1360, %v1658
        %v1667 = vadd.f32 %v1361, %v1661
        %v1668 = vadd.f32 %v1362, %v1664
        %s1669 = scalar_lea.vmem %s6, 1
        %v1670 = vld [vmem:[%s1669] sm:$0x1]
        %s1671 = scalar_lea.vmem %s7, 1
        %v1672 = vld [vmem:[%s1671] sm:$0x1]
        %v1673 = vsel %vm808, %v1666, 0.0
        %1674 = vadd.xlane.f32.xlu0 %v1673
        %v1675 = vpop.xlane.xlu0 %1674
        %v1676 = vsel %vm808, %v1667, 0.0
        %1677 = vadd.xlane.f32.xlu0 %v1676
        %v1678 = vpop.xlane.xlu0 %1677
        %v1679 = vsel %vm815, %v1668, 0.0
        %1680 = vadd.xlane.f32.xlu0 %v1679
        %v1681 = vpop.xlane.xlu0 %1680
        %v1682 = vmul.f32 %v1675, %v825
        %v1683 = vmul.f32 %v1678, %v825
        %v1684 = vmul.f32 %v1681, %v825
        %v1685 = vsub.f32 %v1666, %v1682
        %v1686 = vsub.f32 %v1667, %v1683
        %v1687 = vsub.f32 %v1668, %v1684
        %v1688 = vmul.f32 %v1685, %v1685
        %v1689 = vmul.f32 %v1686, %v1686
        %v1690 = vmul.f32 %v1687, %v1687
        %v1691 = vsel %vm808, %v1688, 0.0
        %1692 = vadd.xlane.f32.xlu0 %v1691
        %v1693 = vpop.xlane.xlu0 %1692
        %v1694 = vsel %vm808, %v1689, 0.0
        %1695 = vadd.xlane.f32.xlu0 %v1694
        %v1696 = vpop.xlane.xlu0 %1695
        %v1697 = vsel %vm815, %v1690, 0.0
        %1698 = vadd.xlane.f32.xlu0 %v1697
        %v1699 = vpop.xlane.xlu0 %1698
        %v1700 = vmul.f32 %v1693, %v825
        %v1701 = vmul.f32 %v1696, %v825
        %v1702 = vmul.f32 %v1699, %v825
        %v1703 = vadd.f32 %v1700, 1e-06
        %v1704 = vadd.f32 %v1701, 1e-06
        %v1705 = vadd.f32 %v1702, 1e-06
        %v1706 = vrsqrt.pop %v1703
        %v1707 = vmul.f32 %v1706, %v1703
        %v1708 = vmul.f32 %v1707, %v1706
        %v1709 = vmul.f32 0.5, %v1708
        %v1710 = vsub.f32 1.5, %v1709
        %v1711 = vmul.f32 %v1706, %v1710
        %vm1712 = vweird.f32 %v1703
        %vm1713 = vweird.f32 %v1706
        %vm1714 = vmor %vm1712, %vm1713
        %v1715 = vsel %vm1714, %v1706, %v1711
        %v1716 = vrsqrt.pop %v1704
        %v1717 = vmul.f32 %v1716, %v1704
        %v1718 = vmul.f32 %v1717, %v1716
        %v1719 = vmul.f32 0.5, %v1718
        %v1720 = vsub.f32 1.5, %v1719
        %v1721 = vmul.f32 %v1716, %v1720
        %vm1722 = vweird.f32 %v1704
        %vm1723 = vweird.f32 %v1716
        %vm1724 = vmor %vm1722, %vm1723
        %v1725 = vsel %vm1724, %v1716, %v1721
        %v1726 = vrsqrt.pop %v1705
        %v1727 = vmul.f32 %v1726, %v1705
        %v1728 = vmul.f32 %v1727, %v1726
        %v1729 = vmul.f32 0.5, %v1728
        %v1730 = vsub.f32 1.5, %v1729
        %v1731 = vmul.f32 %v1726, %v1730
        %vm1732 = vweird.f32 %v1705
        %vm1733 = vweird.f32 %v1726
        %vm1734 = vmor %vm1732, %vm1733
        %v1735 = vsel %vm1734, %v1726, %v1731
        %v1736 = vmul.f32 %v1685, %v1715
        %v1737 = vmul.f32 %v1686, %v1725
        %v1738 = vmul.f32 %v1687, %v1735
        %v1740 = vperm.slane %v1670, 0
        %v1742 = vmul.f32 %v1736, %v1740
        %v1743 = vmul.f32 %v1737, %v1740
        %v1744 = vmul.f32 %v1738, %v1740
        %v1746 = vperm.slane %v1672, 0
        %v1748 = vadd.f32 %v1742, %v1746
        %v1749 = vadd.f32 %v1743, %v1746
        %v1750 = vadd.f32 %v1744, %v1746
        %s1751 = scalar_lea.vmem %s8, 32
        %v1752 = vld [vmem:[%s1751] sm:$0xff]
        %v1753 = vld [vmem:[%s1751 + $0x8] sm:$0xff]
        %v1754 = vld [vmem:[%s1751 + $0x10] sm:$0xff]
        %v1755 = vld [vmem:[%s1751 + $0x18] sm:$0xff]
        %s1756 = scalar_lea.vmem %s9, 1
        %v1757 = vld [vmem:[%s1756] sm:$0x1]
        %v1759 = vperm.slane %v1757, 0
        %v1762 = vsel %vm808, %v1748, 0
        %v1765 = vsel %vm808, %v1749, 0
        %v1768 = vsel %vm808, %v1750, 0
        %1770 = vmatpush.msra.mxu0 0.0
        %1771 = vmatpush.msra.mxu0 0.0
        %1772 = vmatpush.msra.mxu0 0.0
        %1773 = vmatpush.msra.mxu0 0.0
        %1774 = vmatpush.msra.mxu0 0.0
        %1775 = vmatpush.msra.mxu0 0.0
        %1776 = vmatpush.msra.mxu0 0.0
        %1777 = vmatpush.msra.mxu0 0.0
        %1778 = vmatpush.msra.mxu0 0.0
        %1779 = vmatpush.msra.mxu0 0.0
        %1780 = vmatpush.msra.mxu0 0.0
        %1781 = vmatpush.msra.mxu0 0.0
        %1782 = vmatpush.msra.mxu0 %v1755
        %1783 = vmatpush.msra.mxu0 %v1754
        %1784 = vmatpush.msra.mxu0 %v1753
        %1785 = vmatpush.msra.mxu0 %v1752
        %1786 = vmatmul.f32.gmra.mxu0 %v1762
        %v1787 = vpop.f32.mrf.mxu0
        %v1788 = vadd.f32 %v1759, %v1787
        %1789 = vmatmul.f32.gmra.mxu0 %v1765
        %v1790 = vpop.f32.mrf.mxu0
        %v1791 = vadd.f32 %v1759, %v1790
        %1792 = vmatmul.f32.gmra.mxu0 %v1768
        %v1793 = vpop.f32.mrf.mxu0
        %v1794 = vadd.f32 %v1759, %v1793
        %1795 = vdwg.mxu0
        %s1796 = scalar_lea.vmem %s10, 32
        %v1797 = vld [vmem:[%s1796] sm:$0xff]
        %v1798 = vld [vmem:[%s1796 + $0x8] sm:$0xff]
        %v1799 = vld [vmem:[%s1796 + $0x10] sm:$0xff]
        %v1800 = vld [vmem:[%s1796 + $0x18] sm:$0xff]
        %1804 = vrot.lane.b32.xlu0 %v1788, 96
        %v1805 = vpop.permute.xlu0 %1804
        %1806 = vrot.lane.b32.xlu0 %v1791, 96
        %v1807 = vpop.permute.xlu0 %1806
        %1808 = vrot.lane.b32.xlu0 %v1794, 96
        %v1809 = vpop.permute.xlu0 %1808
        %v1810 = vsel %vm951, %v1788, 0
        %v1812 = vsel %vm951, %v1791, 0
        %v1814 = vsel %vm951, %v1794, 0
        %v1816 = vsel %vm951, %v1805, 0
        %v1818 = vsel %vm951, %v1807, 0
        %v1820 = vsel %vm951, %v1809, 0
        %1822 = vmatpush.xpose.msra.mxu0 0.0
        %1823 = vmatpush.xpose.msra.mxu0 0.0
        %1824 = vmatpush.xpose.msra.mxu0 0.0
        %1825 = vmatpush.xpose.msra.mxu0 0.0
        %1826 = vmatpush.xpose.msra.mxu0 0.0
        %1827 = vmatpush.xpose.msra.mxu0 0.0
        %1828 = vmatpush.xpose.msra.mxu0 0.0
        %1829 = vmatpush.xpose.msra.mxu0 0.0
        %1830 = vmatpush.xpose.msra.mxu0 0.0
        %1831 = vmatpush.xpose.msra.mxu0 0.0
        %1832 = vmatpush.xpose.msra.mxu0 0.0
        %1833 = vmatpush.xpose.msra.mxu0 0.0
        %1834 = vmatpush.xpose.msra.mxu0 0.0
        %1835 = vmatpush.xpose.msra.mxu0 %v1820
        %1836 = vmatpush.xpose.msra.mxu0 %v1818
        %1837 = vmatpush.xpose.msra.mxu0 %v1816
        %1838 = vmatmul.f32.gmra.mxu0 %v1810
        %v1839 = vpop.f32.mrf.mxu0
        %v1840 = vadd.f32 0.0, %v1839
        %1841 = vmatmul.f32.gmra.mxu0 %v1812
        %v1842 = vpop.f32.mrf.mxu0
        %v1843 = vadd.f32 0.0, %v1842
        %1844 = vmatmul.f32.gmra.mxu0 %v1814
        %v1845 = vpop.f32.mrf.mxu0
        %v1846 = vadd.f32 0.0, %v1845
        %1847 = vdwg.mxu0
        %v1848 = vmul.f32 %v1840, 0.25
        %v1849 = vmul.f32 %v1843, 0.25
        %v1850 = vmul.f32 %v1846, 0.25
        %v1851 = vsel %vm993, %v1848, -inf
        %1852 = vmax.xlane.f32.xlu0 %v1851
        %v1853 = vpop.xlane.xlu0 %1852
        %v1854 = vsel %vm993, %v1849, -inf
        %1855 = vmax.xlane.f32.xlu0 %v1854
        %v1856 = vpop.xlane.xlu0 %1855
        %v1857 = vsel %vm1000, %v1850, -inf
        %1858 = vmax.xlane.f32.xlu0 %v1857
        %v1859 = vpop.xlane.xlu0 %1858
        %v1860 = vsub.f32 %v1848, %v1853
        %v1861 = vsub.f32 %v1849, %v1856
        %v1862 = vsub.f32 %v1850, %v1859
        %v1863 = vmul.f32 %v1860, 1.442695
        %v1864 = vpow.pop %v1863
        %v1865 = vmul.f32 %v1861, 1.442695
        %v1866 = vpow.pop %v1865
        %v1867 = vmul.f32 %v1862, 1.442695
        %v1868 = vpow.pop %v1867
        %v1869 = vsel %vm993, %v1864, 0.0
        %1870 = vadd.xlane.f32.xlu0 %v1869
        %v1871 = vpop.xlane.xlu0 %1870
        %v1872 = vsel %vm993, %v1866, 0.0
        %1873 = vadd.xlane.f32.xlu0 %v1872
        %v1874 = vpop.xlane.xlu0 %1873
        %v1875 = vsel %vm1000, %v1868, 0.0
        %1876 = vadd.xlane.f32.xlu0 %v1875
        %v1877 = vpop.xlane.xlu0 %1876
        %v1878 = vrcp.pop %v1871
        %v1879 = vmul.f32 %v1871, %v1878
        %v1880 = vsub.f32 1.0, %v1879
        %v1881 = vmul.f32 %v1878, %v1880
        %v1882 = vadd.f32 %v1878, %v1881
        %vm1883 = vweird.f32 %v1871
        %vm1884 = vweird.f32 %v1878
        %vm1885 = vmor %vm1883, %vm1884
        %v1886 = vsel %vm1885, %v1878, %v1882
        %v1887 = vand.u32 2147483647, %v1871
        %vm1888 = vcmp.eq.f32.partialorder %v1887, 8.507059e+37
        %v1889 = vand.u32 %v1871, 2147483648
        %v1890 = vor.u32 1.1754944e-38, %v1889
        %v1891 = vsel %vm1888, %v1890, %v1886
        %v1892 = vmul.f32 %v1864, %v1891
        %v1893 = vrcp.pop %v1874
        %v1894 = vmul.f32 %v1874, %v1893
        %v1895 = vsub.f32 1.0, %v1894
        %v1896 = vmul.f32 %v1893, %v1895
        %v1897 = vadd.f32 %v1893, %v1896
        %vm1898 = vweird.f32 %v1874
        %vm1899 = vweird.f32 %v1893
        %vm1900 = vmor %vm1898, %vm1899
        %v1901 = vsel %vm1900, %v1893, %v1897
        %v1902 = vand.u32 2147483647, %v1874
        %vm1903 = vcmp.eq.f32.partialorder %v1902, 8.507059e+37
        %v1904 = vand.u32 %v1874, 2147483648
        %v1905 = vor.u32 1.1754944e-38, %v1904
        %v1906 = vsel %vm1903, %v1905, %v1901
        %v1907 = vmul.f32 %v1866, %v1906
        %v1908 = vrcp.pop %v1877
        %v1909 = vmul.f32 %v1877, %v1908
        %v1910 = vsub.f32 1.0, %v1909
        %v1911 = vmul.f32 %v1908, %v1910
        %v1912 = vadd.f32 %v1908, %v1911
        %vm1913 = vweird.f32 %v1877
        %vm1914 = vweird.f32 %v1908
        %vm1915 = vmor %vm1913, %vm1914
        %v1916 = vsel %vm1915, %v1908, %v1912
        %v1917 = vand.u32 2147483647, %v1877
        %vm1918 = vcmp.eq.f32.partialorder %v1917, 8.507059e+37
        %v1919 = vand.u32 %v1877, 2147483648
        %v1920 = vor.u32 1.1754944e-38, %v1919
        %v1921 = vsel %vm1918, %v1920, %v1916
        %v1922 = vmul.f32 %v1868, %v1921
        %1923 = vrot.lane.b32.xlu0 %v1788, 64
        %v1924 = vpop.permute.xlu0 %1923
        %1925 = vrot.lane.b32.xlu0 %v1791, 64
        %v1926 = vpop.permute.xlu0 %1925
        %1927 = vrot.lane.b32.xlu0 %v1794, 64
        %v1928 = vpop.permute.xlu0 %1927
        %v1932 = vsel %vm993, %v1892, 0
        %v1935 = vsel %vm993, %v1907, 0
        %v1938 = vsel %vm993, %v1922, 0
        %v1940 = vsel %vm1084, %v1928, 0
        %1942 = vmatpush.msra.mxu0 0.0
        %1943 = vmatpush.msra.mxu0 0.0
        %1944 = vmatpush.msra.mxu0 0.0
        %1945 = vmatpush.msra.mxu0 0.0
        %1946 = vmatpush.msra.mxu0 0.0
        %1947 = vmatpush.msra.mxu0 0.0
        %1948 = vmatpush.msra.mxu0 0.0
        %1949 = vmatpush.msra.mxu0 0.0
        %1950 = vmatpush.msra.mxu0 0.0
        %1951 = vmatpush.msra.mxu0 0.0
        %1952 = vmatpush.msra.mxu0 0.0
        %1953 = vmatpush.msra.mxu0 0.0
        %1954 = vmatpush.msra.mxu0 0.0
        %1955 = vmatpush.msra.mxu0 %v1940
        %1956 = vmatpush.msra.mxu0 %v1926
        %1957 = vmatpush.msra.mxu0 %v1924
        %1958 = vmatmul.f32.gmra.mxu0 %v1932
        %v1959 = vpop.f32.mrf.mxu0
        %v1960 = vadd.f32 0.0, %v1959
        %1961 = vmatmul.f32.gmra.mxu0 %v1935
        %v1962 = vpop.f32.mrf.mxu0
        %v1963 = vadd.f32 0.0, %v1962
        %1964 = vmatmul.f32.gmra.mxu0 %v1938
        %v1965 = vpop.f32.mrf.mxu0
        %v1966 = vadd.f32 0.0, %v1965
        %1967 = vdwg.mxu0
        %1968 = vrot.lane.b32.xlu0 %v1788, 112
        %v1969 = vpop.permute.xlu0 %1968
        %1970 = vrot.lane.b32.xlu0 %v1791, 112
        %v1971 = vpop.permute.xlu0 %1970
        %1972 = vrot.lane.b32.xlu0 %v1794, 112
        %v1973 = vpop.permute.xlu0 %1972
        %1974 = vrot.lane.b32.xlu0 %v1788, 80
        %v1975 = vpop.permute.xlu0 %1974
        %1976 = vrot.lane.b32.xlu0 %v1791, 80
        %v1977 = vpop.permute.xlu0 %1976
        %1978 = vrot.lane.b32.xlu0 %v1794, 80
        %v1979 = vpop.permute.xlu0 %1978
        %v1980 = vsel %vm951, %v1969, 0
        %v1982 = vsel %vm951, %v1971, 0
        %v1984 = vsel %vm951, %v1973, 0
        %v1986 = vsel %vm951, %v1975, 0
        %v1988 = vsel %vm951, %v1977, 0
        %v1990 = vsel %vm951, %v1979, 0
        %1992 = vmatpush.xpose.msra.mxu0 0.0
        %1993 = vmatpush.xpose.msra.mxu0 0.0
        %1994 = vmatpush.xpose.msra.mxu0 0.0
        %1995 = vmatpush.xpose.msra.mxu0 0.0
        %1996 = vmatpush.xpose.msra.mxu0 0.0
        %1997 = vmatpush.xpose.msra.mxu0 0.0
        %1998 = vmatpush.xpose.msra.mxu0 0.0
        %1999 = vmatpush.xpose.msra.mxu0 0.0
        %2000 = vmatpush.xpose.msra.mxu0 0.0
        %2001 = vmatpush.xpose.msra.mxu0 0.0
        %2002 = vmatpush.xpose.msra.mxu0 0.0
        %2003 = vmatpush.xpose.msra.mxu0 0.0
        %2004 = vmatpush.xpose.msra.mxu0 0.0
        %2005 = vmatpush.xpose.msra.mxu0 %v1990
        %2006 = vmatpush.xpose.msra.mxu0 %v1988
        %2007 = vmatpush.xpose.msra.mxu0 %v1986
        %2008 = vmatmul.f32.gmra.mxu0 %v1980
        %v2009 = vpop.f32.mrf.mxu0
        %v2010 = vadd.f32 0.0, %v2009
        %2011 = vmatmul.f32.gmra.mxu0 %v1982
        %v2012 = vpop.f32.mrf.mxu0
        %v2013 = vadd.f32 0.0, %v2012
        %2014 = vmatmul.f32.gmra.mxu0 %v1984
        %v2015 = vpop.f32.mrf.mxu0
        %v2016 = vadd.f32 0.0, %v2015
        %2017 = vdwg.mxu0
        %v2018 = vmul.f32 %v2010, 0.25
        %v2019 = vmul.f32 %v2013, 0.25
        %v2020 = vmul.f32 %v2016, 0.25
        %v2021 = vsel %vm993, %v2018, -inf
        %2022 = vmax.xlane.f32.xlu0 %v2021
        %v2023 = vpop.xlane.xlu0 %2022
        %v2024 = vsel %vm993, %v2019, -inf
        %2025 = vmax.xlane.f32.xlu0 %v2024
        %v2026 = vpop.xlane.xlu0 %2025
        %v2027 = vsel %vm1000, %v2020, -inf
        %2028 = vmax.xlane.f32.xlu0 %v2027
        %v2029 = vpop.xlane.xlu0 %2028
        %v2030 = vsub.f32 %v2018, %v2023
        %v2031 = vsub.f32 %v2019, %v2026
        %v2032 = vsub.f32 %v2020, %v2029
        %v2033 = vmul.f32 %v2030, 1.442695
        %v2034 = vpow.pop %v2033
        %v2035 = vmul.f32 %v2031, 1.442695
        %v2036 = vpow.pop %v2035
        %v2037 = vmul.f32 %v2032, 1.442695
        %v2038 = vpow.pop %v2037
        %v2039 = vsel %vm993, %v2034, 0.0
        %2040 = vadd.xlane.f32.xlu0 %v2039
        %v2041 = vpop.xlane.xlu0 %2040
        %v2042 = vsel %vm993, %v2036, 0.0
        %2043 = vadd.xlane.f32.xlu0 %v2042
        %v2044 = vpop.xlane.xlu0 %2043
        %v2045 = vsel %vm1000, %v2038, 0.0
        %2046 = vadd.xlane.f32.xlu0 %v2045
        %v2047 = vpop.xlane.xlu0 %2046
        %v2048 = vrcp.pop %v2041
        %v2049 = vmul.f32 %v2041, %v2048
        %v2050 = vsub.f32 1.0, %v2049
        %v2051 = vmul.f32 %v2048, %v2050
        %v2052 = vadd.f32 %v2048, %v2051
        %vm2053 = vweird.f32 %v2041
        %vm2054 = vweird.f32 %v2048
        %vm2055 = vmor %vm2053, %vm2054
        %v2056 = vsel %vm2055, %v2048, %v2052
        %v2057 = vand.u32 2147483647, %v2041
        %vm2058 = vcmp.eq.f32.partialorder %v2057, 8.507059e+37
        %v2059 = vand.u32 %v2041, 2147483648
        %v2060 = vor.u32 1.1754944e-38, %v2059
        %v2061 = vsel %vm2058, %v2060, %v2056
        %v2062 = vmul.f32 %v2034, %v2061
        %v2063 = vrcp.pop %v2044
        %v2064 = vmul.f32 %v2044, %v2063
        %v2065 = vsub.f32 1.0, %v2064
        %v2066 = vmul.f32 %v2063, %v2065
        %v2067 = vadd.f32 %v2063, %v2066
        %vm2068 = vweird.f32 %v2044
        %vm2069 = vweird.f32 %v2063
        %vm2070 = vmor %vm2068, %vm2069
        %v2071 = vsel %vm2070, %v2063, %v2067
        %v2072 = vand.u32 2147483647, %v2044
        %vm2073 = vcmp.eq.f32.partialorder %v2072, 8.507059e+37
        %v2074 = vand.u32 %v2044, 2147483648
        %v2075 = vor.u32 1.1754944e-38, %v2074
        %v2076 = vsel %vm2073, %v2075, %v2071
        %v2077 = vmul.f32 %v2036, %v2076
        %v2078 = vrcp.pop %v2047
        %v2079 = vmul.f32 %v2047, %v2078
        %v2080 = vsub.f32 1.0, %v2079
        %v2081 = vmul.f32 %v2078, %v2080
        %v2082 = vadd.f32 %v2078, %v2081
        %vm2083 = vweird.f32 %v2047
        %vm2084 = vweird.f32 %v2078
        %vm2085 = vmor %vm2083, %vm2084
        %v2086 = vsel %vm2085, %v2078, %v2082
        %v2087 = vand.u32 2147483647, %v2047
        %vm2088 = vcmp.eq.f32.partialorder %v2087, 8.507059e+37
        %v2089 = vand.u32 %v2047, 2147483648
        %v2090 = vor.u32 1.1754944e-38, %v2089
        %v2091 = vsel %vm2088, %v2090, %v2086
        %v2092 = vmul.f32 %v2038, %v2091
        %2093 = vrot.lane.b32.xlu0 %v1788, 48
        %v2094 = vpop.permute.xlu0 %2093
        %2095 = vrot.lane.b32.xlu0 %v1791, 48
        %v2096 = vpop.permute.xlu0 %2095
        %2097 = vrot.lane.b32.xlu0 %v1794, 48
        %v2098 = vpop.permute.xlu0 %2097
        %v2102 = vsel %vm993, %v2062, 0
        %v2105 = vsel %vm993, %v2077, 0
        %v2108 = vsel %vm993, %v2092, 0
        %v2110 = vsel %vm1084, %v2098, 0
        %2112 = vmatpush.msra.mxu0 0.0
        %2113 = vmatpush.msra.mxu0 0.0
        %2114 = vmatpush.msra.mxu0 0.0
        %2115 = vmatpush.msra.mxu0 0.0
        %2116 = vmatpush.msra.mxu0 0.0
        %2117 = vmatpush.msra.mxu0 0.0
        %2118 = vmatpush.msra.mxu0 0.0
        %2119 = vmatpush.msra.mxu0 0.0
        %2120 = vmatpush.msra.mxu0 0.0
        %2121 = vmatpush.msra.mxu0 0.0
        %2122 = vmatpush.msra.mxu0 0.0
        %2123 = vmatpush.msra.mxu0 0.0
        %2124 = vmatpush.msra.mxu0 0.0
        %2125 = vmatpush.msra.mxu0 %v2110
        %2126 = vmatpush.msra.mxu0 %v2096
        %2127 = vmatpush.msra.mxu0 %v2094
        %2128 = vmatmul.f32.gmra.mxu0 %v2102
        %v2129 = vpop.f32.mrf.mxu0
        %v2130 = vadd.f32 0.0, %v2129
        %2131 = vmatmul.f32.gmra.mxu0 %v2105
        %v2132 = vpop.f32.mrf.mxu0
        %v2133 = vadd.f32 0.0, %v2132
        %2134 = vmatmul.f32.gmra.mxu0 %v2108
        %v2135 = vpop.f32.mrf.mxu0
        %v2136 = vadd.f32 0.0, %v2135
        %2137 = vdwg.mxu0
        %v2139 = vsel %vm951, %v2130, 0
        %v2142 = vsel %vm951, %v2133, 0
        %v2145 = vsel %vm951, %v2136, 0
        %2147 = vmatpush.msra.mxu0 0.0
        %2148 = vmatpush.msra.mxu0 0.0
        %2149 = vmatpush.msra.mxu0 0.0
        %2150 = vmatpush.msra.mxu0 0.0
        %2151 = vmatpush.msra.mxu0 0.0
        %2152 = vmatpush.msra.mxu0 0.0
        %2153 = vmatpush.msra.mxu0 0.0
        %2154 = vmatpush.msra.mxu0 0.0
        %2155 = vmatpush.msra.mxu0 0.0
        %2156 = vmatpush.msra.mxu0 0.0
        %2157 = vmatpush.msra.mxu0 0.0
        %2158 = vmatpush.msra.mxu0 0.0
        %2159 = vmatpush.msra.mxu0 0.0
        %2160 = vmatpush.msra.mxu0 0.0
        %2161 = vmatpush.msra.mxu0 %v1800
        %2162 = vmatpush.msra.mxu0 %v1799
        %2163 = vmatmul.f32.gmra.mxu0 %v2139
        %v2164 = vpop.f32.mrf.mxu0
        %v2165 = vadd.f32 0.0, %v2164
        %2166 = vmatmul.f32.gmra.mxu0 %v2142
        %v2167 = vpop.f32.mrf.mxu0
        %v2168 = vadd.f32 0.0, %v2167
        %2169 = vmatmul.f32.gmra.mxu0 %v2145
        %v2170 = vpop.f32.mrf.mxu0
        %v2171 = vadd.f32 0.0, %v2170
        %2172 = vdwg.mxu0
        %v2174 = vsel %vm951, %v1960, 0
        %v2177 = vsel %vm951, %v1963, 0
        %v2180 = vsel %vm951, %v1966, 0
        %2182 = vmatpush.msra.mxu0 0.0
        %2183 = vmatpush.msra.mxu0 0.0
        %2184 = vmatpush.msra.mxu0 0.0
        %2185 = vmatpush.msra.mxu0 0.0
        %2186 = vmatpush.msra.mxu0 0.0
        %2187 = vmatpush.msra.mxu0 0.0
        %2188 = vmatpush.msra.mxu0 0.0
        %2189 = vmatpush.msra.mxu0 0.0
        %2190 = vmatpush.msra.mxu0 0.0
        %2191 = vmatpush.msra.mxu0 0.0
        %2192 = vmatpush.msra.mxu0 0.0
        %2193 = vmatpush.msra.mxu0 0.0
        %2194 = vmatpush.msra.mxu0 0.0
        %2195 = vmatpush.msra.mxu0 0.0
        %2196 = vmatpush.msra.mxu0 %v1798
        %2197 = vmatpush.msra.mxu0 %v1797
        %2198 = vmatmul.f32.gmra.mxu0 %v2174
        %v2199 = vpop.f32.mrf.mxu0
        %v2200 = vadd.f32 %v2165, %v2199
        %2201 = vmatmul.f32.gmra.mxu0 %v2177
        %v2202 = vpop.f32.mrf.mxu0
        %v2203 = vadd.f32 %v2168, %v2202
        %2204 = vmatmul.f32.gmra.mxu0 %v2180
        %v2205 = vpop.f32.mrf.mxu0
        %v2206 = vadd.f32 %v2171, %v2205
        %2207 = vdwg.mxu0
        %v2208 = vadd.f32 %v1666, %v2200
        %v2209 = vadd.f32 %v1667, %v2203
        %v2210 = vadd.f32 %v1668, %v2206
        %s2211 = scalar_lea.vmem %s11, 1
        %v2212 = vld [vmem:[%s2211] sm:$0x1]
        %v2214 = vperm.slane %v2212, 0
        %v2216 = vadd.f32 %v2208, %v2214
        %v2217 = vadd.f32 %v2209, %v2214
        %v2218 = vadd.f32 %v2210, %v2214
        %s2219 = scalar_lea.vmem %s12, 1
        %v2220 = vld [vmem:[%s2219] sm:$0x1]
        %s2221 = scalar_lea.vmem %s13, 1
        %v2222 = vld [vmem:[%s2221] sm:$0x1]
        %v2223 = vsel %vm808, %v2216, 0.0
        %2224 = vadd.xlane.f32.xlu0 %v2223
        %v2225 = vpop.xlane.xlu0 %2224
        %v2226 = vsel %vm808, %v2217, 0.0
        %2227 = vadd.xlane.f32.xlu0 %v2226
        %v2228 = vpop.xlane.xlu0 %2227
        %v2229 = vsel %vm815, %v2218, 0.0
        %2230 = vadd.xlane.f32.xlu0 %v2229
        %v2231 = vpop.xlane.xlu0 %2230
        %v2232 = vmul.f32 %v2225, %v825
        %v2233 = vmul.f32 %v2228, %v825
        %v2234 = vmul.f32 %v2231, %v825
        %v2235 = vsub.f32 %v2216, %v2232
        %v2236 = vsub.f32 %v2217, %v2233
        %v2237 = vsub.f32 %v2218, %v2234
        %v2238 = vmul.f32 %v2235, %v2235
        %v2239 = vmul.f32 %v2236, %v2236
        %v2240 = vmul.f32 %v2237, %v2237
        %v2241 = vsel %vm808, %v2238, 0.0
        %2242 = vadd.xlane.f32.xlu0 %v2241
        %v2243 = vpop.xlane.xlu0 %2242
        %v2244 = vsel %vm808, %v2239, 0.0
        %2245 = vadd.xlane.f32.xlu0 %v2244
        %v2246 = vpop.xlane.xlu0 %2245
        %v2247 = vsel %vm815, %v2240, 0.0
        %2248 = vadd.xlane.f32.xlu0 %v2247
        %v2249 = vpop.xlane.xlu0 %2248
        %v2250 = vmul.f32 %v2243, %v825
        %v2251 = vmul.f32 %v2246, %v825
        %v2252 = vmul.f32 %v2249, %v825
        %v2253 = vadd.f32 %v2250, 1e-06
        %v2254 = vadd.f32 %v2251, 1e-06
        %v2255 = vadd.f32 %v2252, 1e-06
        %v2256 = vrsqrt.pop %v2253
        %v2257 = vmul.f32 %v2256, %v2253
        %v2258 = vmul.f32 %v2257, %v2256
        %v2259 = vmul.f32 0.5, %v2258
        %v2260 = vsub.f32 1.5, %v2259
        %v2261 = vmul.f32 %v2256, %v2260
        %vm2262 = vweird.f32 %v2253
        %vm2263 = vweird.f32 %v2256
        %vm2264 = vmor %vm2262, %vm2263
        %v2265 = vsel %vm2264, %v2256, %v2261
        %v2266 = vrsqrt.pop %v2254
        %v2267 = vmul.f32 %v2266, %v2254
        %v2268 = vmul.f32 %v2267, %v2266
        %v2269 = vmul.f32 0.5, %v2268
        %v2270 = vsub.f32 1.5, %v2269
        %v2271 = vmul.f32 %v2266, %v2270
        %vm2272 = vweird.f32 %v2254
        %vm2273 = vweird.f32 %v2266
        %vm2274 = vmor %vm2272, %vm2273
        %v2275 = vsel %vm2274, %v2266, %v2271
        %v2276 = vrsqrt.pop %v2255
        %v2277 = vmul.f32 %v2276, %v2255
        %v2278 = vmul.f32 %v2277, %v2276
        %v2279 = vmul.f32 0.5, %v2278
        %v2280 = vsub.f32 1.5, %v2279
        %v2281 = vmul.f32 %v2276, %v2280
        %vm2282 = vweird.f32 %v2255
        %vm2283 = vweird.f32 %v2276
        %vm2284 = vmor %vm2282, %vm2283
        %v2285 = vsel %vm2284, %v2276, %v2281
        %v2286 = vmul.f32 %v2235, %v2265
        %v2287 = vmul.f32 %v2236, %v2275
        %v2288 = vmul.f32 %v2237, %v2285
        %v2290 = vperm.slane %v2220, 0
        %v2292 = vmul.f32 %v2286, %v2290
        %v2293 = vmul.f32 %v2287, %v2290
        %v2294 = vmul.f32 %v2288, %v2290
        %v2296 = vperm.slane %v2222, 0
        %v2298 = vadd.f32 %v2292, %v2296
        %v2299 = vadd.f32 %v2293, %v2296
        %v2300 = vadd.f32 %v2294, %v2296
        %s2301 = scalar_lea.vmem %s14, 32
        %v2302 = vld [vmem:[%s2301] sm:$0xff]
        %v2303 = vld [vmem:[%s2301 + $0x8] sm:$0xff]
        %v2304 = vld [vmem:[%s2301 + $0x10] sm:$0xff]
        %v2305 = vld [vmem:[%s2301 + $0x18] sm:$0xff]
        %s2306 = scalar_lea.vmem %s15, 1
        %v2307 = vld [vmem:[%s2306] sm:$0x1]
        %v2309 = vperm.slane %v2307, 0
        %v2312 = vsel %vm808, %v2298, 0
        %v2315 = vsel %vm808, %v2299, 0
        %v2318 = vsel %vm808, %v2300, 0
        %2320 = vmatpush.msra.mxu0 0.0
        %2321 = vmatpush.msra.mxu0 0.0
        %2322 = vmatpush.msra.mxu0 0.0
        %2323 = vmatpush.msra.mxu0 0.0
        %2324 = vmatpush.msra.mxu0 0.0
        %2325 = vmatpush.msra.mxu0 0.0
        %2326 = vmatpush.msra.mxu0 0.0
        %2327 = vmatpush.msra.mxu0 0.0
        %2328 = vmatpush.msra.mxu0 0.0
        %2329 = vmatpush.msra.mxu0 0.0
        %2330 = vmatpush.msra.mxu0 0.0
        %2331 = vmatpush.msra.mxu0 0.0
        %2332 = vmatpush.msra.mxu0 %v2305
        %2333 = vmatpush.msra.mxu0 %v2304
        %2334 = vmatpush.msra.mxu0 %v2303
        %2335 = vmatpush.msra.mxu0 %v2302
        %2336 = vmatmul.f32.gmra.mxu0 %v2312
        %v2337 = vpop.f32.mrf.mxu0
        %v2338 = vadd.f32 %v2309, %v2337
        %2339 = vmatmul.f32.gmra.mxu0 %v2315
        %v2340 = vpop.f32.mrf.mxu0
        %v2341 = vadd.f32 %v2309, %v2340
        %2342 = vmatmul.f32.gmra.mxu0 %v2318
        %v2343 = vpop.f32.mrf.mxu0
        %v2344 = vadd.f32 %v2309, %v2343
        %2345 = vdwg.mxu0
        %v2346 = vmul.f32 %v2338, 0.5
        %v2347 = vmul.f32 %v2341, 0.5
        %v2348 = vmul.f32 %v2344, 0.5
        %v2349 = vmul.f32 %v2338, 0.70710677
        %v2350 = vmul.f32 %v2341, 0.70710677
        %v2351 = vmul.f32 %v2344, 0.70710677
        %v2352 = vmul.f32 %v2349, %v2349
        %v2353 = vmin.f32 16.0, %v2352
        %v2354 = vmul.f32 %v2353, 2.1237322e-06
        %v2355 = vadd.f32 %v2354, 0.00028619796
        %v2356 = vmul.f32 %v2353, %v2355
        %v2357 = vadd.f32 %v2356, 0.0036580483
        %v2358 = vmul.f32 %v2353, %v2357
        %v2359 = vadd.f32 %v2358, 0.05243302
        %v2360 = vmul.f32 %v2353, %v2359
        %v2361 = vadd.f32 %v2360, 0.18741608
        %v2362 = vmul.f32 %v2353, %v2361
        %v2363 = vadd.f32 %v2362, 1.1283791
        %v2364 = vmul.f32 %v2349, %v2363
        %v2365 = vmul.f32 %v2353, 3.8918573e-05
        %v2366 = vadd.f32 %v2365, 0.001143296
        %v2367 = vmul.f32 %v2353, %v2366
        %v2368 = vadd.f32 %v2367, 0.014752088
        %v2369 = vmul.f32 %v2353, %v2368
        %v2370 = vadd.f32 %v2369, 0.112945676
        %v2371 = vmul.f32 %v2353, %v2370
        %v2372 = vadd.f32 %v2371, 0.4994258
        %v2373 = vmul.f32 %v2353, %v2372
        %v2374 = vadd.f32 %v2373, 1.0
        %v2375 = vrcp.pop %v2374
        %v2376 = vmul.f32 %v2374, %v2375
        %v2377 = vsub.f32 1.0, %v2376
        %v2378 = vmul.f32 %v2375, %v2377
        %v2379 = vadd.f32 %v2375, %v2378
        %vm2380 = vweird.f32 %v2374
        %vm2381 = vweird.f32 %v2375
        %vm2382 = vmor %vm2380, %vm2381
        %v2383 = vsel %vm2382, %v2375, %v2379
        %v2384 = vand.u32 2147483647, %v2374
        %vm2385 = vcmp.eq.f32.partialorder %v2384, 8.507059e+37
        %v2386 = vand.u32 %v2374, 2147483648
        %v2387 = vor.u32 1.1754944e-38, %v2386
        %v2388 = vsel %vm2385, %v2387, %v2383
        %v2389 = vmul.f32 %v2364, %v2388
        %v2390 = vmin.f32 %v2389, 1.0
        %v2391 = vmax.f32 %v2390, -1.0
        %v2392 = vmul.f32 %v2350, %v2350
        %v2393 = vmin.f32 16.0, %v2392
        %v2394 = vmul.f32 %v2393, 2.1237322e-06
        %v2395 = vadd.f32 %v2394, 0.00028619796
        %v2396 = vmul.f32 %v2393, %v2395
        %v2397 = vadd.f32 %v2396, 0.0036580483
        %v2398 = vmul.f32 %v2393, %v2397
        %v2399 = vadd.f32 %v2398, 0.05243302
        %v2400 = vmul.f32 %v2393, %v2399
        %v2401 = vadd.f32 %v2400, 0.18741608
        %v2402 = vmul.f32 %v2393, %v2401
        %v2403 = vadd.f32 %v2402, 1.1283791
        %v2404 = vmul.f32 %v2350, %v2403
        %v2405 = vmul.f32 %v2393, 3.8918573e-05
        %v2406 = vadd.f32 %v2405, 0.001143296
        %v2407 = vmul.f32 %v2393, %v2406
        %v2408 = vadd.f32 %v2407, 0.014752088
        %v2409 = vmul.f32 %v2393, %v2408
        %v2410 = vadd.f32 %v2409, 0.112945676
        %v2411 = vmul.f32 %v2393, %v2410
        %v2412 = vadd.f32 %v2411, 0.4994258
        %v2413 = vmul.f32 %v2393, %v2412
        %v2414 = vadd.f32 %v2413, 1.0
        %v2415 = vrcp.pop %v2414
        %v2416 = vmul.f32 %v2414, %v2415
        %v2417 = vsub.f32 1.0, %v2416
        %v2418 = vmul.f32 %v2415, %v2417
        %v2419 = vadd.f32 %v2415, %v2418
        %vm2420 = vweird.f32 %v2414
        %vm2421 = vweird.f32 %v2415
        %vm2422 = vmor %vm2420, %vm2421
        %v2423 = vsel %vm2422, %v2415, %v2419
        %v2424 = vand.u32 2147483647, %v2414
        %vm2425 = vcmp.eq.f32.partialorder %v2424, 8.507059e+37
        %v2426 = vand.u32 %v2414, 2147483648
        %v2427 = vor.u32 1.1754944e-38, %v2426
        %v2428 = vsel %vm2425, %v2427, %v2423
        %v2429 = vmul.f32 %v2404, %v2428
        %v2430 = vmin.f32 %v2429, 1.0
        %v2431 = vmax.f32 %v2430, -1.0
        %v2432 = vmul.f32 %v2351, %v2351
        %v2433 = vmin.f32 16.0, %v2432
        %v2434 = vmul.f32 %v2433, 2.1237322e-06
        %v2435 = vadd.f32 %v2434, 0.00028619796
        %v2436 = vmul.f32 %v2433, %v2435
        %v2437 = vadd.f32 %v2436, 0.0036580483
        %v2438 = vmul.f32 %v2433, %v2437
        %v2439 = vadd.f32 %v2438, 0.05243302
        %v2440 = vmul.f32 %v2433, %v2439
        %v2441 = vadd.f32 %v2440, 0.18741608
        %v2442 = vmul.f32 %v2433, %v2441
        %v2443 = vadd.f32 %v2442, 1.1283791
        %v2444 = vmul.f32 %v2351, %v2443
        %v2445 = vmul.f32 %v2433, 3.8918573e-05
        %v2446 = vadd.f32 %v2445, 0.001143296
        %v2447 = vmul.f32 %v2433, %v2446
        %v2448 = vadd.f32 %v2447, 0.014752088
        %v2449 = vmul.f32 %v2433, %v2448
        %v2450 = vadd.f32 %v2449, 0.112945676
        %v2451 = vmul.f32 %v2433, %v2450
        %v2452 = vadd.f32 %v2451, 0.4994258
        %v2453 = vmul.f32 %v2433, %v2452
        %v2454 = vadd.f32 %v2453, 1.0
        %v2455 = vrcp.pop %v2454
        %v2456 = vmul.f32 %v2454, %v2455
        %v2457 = vsub.f32 1.0, %v2456
        %v2458 = vmul.f32 %v2455, %v2457
        %v2459 = vadd.f32 %v2455, %v2458
        %vm2460 = vweird.f32 %v2454
        %vm2461 = vweird.f32 %v2455
        %vm2462 = vmor %vm2460, %vm2461
        %v2463 = vsel %vm2462, %v2455, %v2459
        %v2464 = vand.u32 2147483647, %v2454
        %vm2465 = vcmp.eq.f32.partialorder %v2464, 8.507059e+37
        %v2466 = vand.u32 %v2454, 2147483648
        %v2467 = vor.u32 1.1754944e-38, %v2466
        %v2468 = vsel %vm2465, %v2467, %v2463
        %v2469 = vmul.f32 %v2444, %v2468
        %v2470 = vmin.f32 %v2469, 1.0
        %v2471 = vmax.f32 %v2470, -1.0
        %v2472 = vadd.f32 %v2391, 1.0
        %v2473 = vadd.f32 %v2431, 1.0
        %v2474 = vadd.f32 %v2471, 1.0
        %v2475 = vmul.f32 %v2346, %v2472
        %v2476 = vmul.f32 %v2347, %v2473
        %v2477 = vmul.f32 %v2348, %v2474
        %s2478 = scalar_lea.vmem %s16, 64
        %v2479 = vld [vmem:[%s2478] sm:$0xff]
        %v2480 = vld [vmem:[%s2478 + $0x8] sm:$0xff]
        %v2481 = vld [vmem:[%s2478 + $0x10] sm:$0xff]
        %v2482 = vld [vmem:[%s2478 + $0x18] sm:$0xff]
        %v2483 = vld [vmem:[%s2478 + $0x20] sm:$0xff]
        %v2484 = vld [vmem:[%s2478 + $0x28] sm:$0xff]
        %v2485 = vld [vmem:[%s2478 + $0x30] sm:$0xff]
        %v2486 = vld [vmem:[%s2478 + $0x38] sm:$0xff]
        %s2487 = scalar_lea.vmem %s17, 1
        %v2488 = vld [vmem:[%s2487] sm:$0x1]
        %v2490 = vperm.slane %v2488, 0
        %v2493 = vsel %vm1630, %v2475, 0
        %v2496 = vsel %vm1630, %v2476, 0
        %v2499 = vsel %vm1630, %v2477, 0
        %2501 = vmatpush.msra.mxu0 0.0
        %2502 = vmatpush.msra.mxu0 0.0
        %2503 = vmatpush.msra.mxu0 0.0
        %2504 = vmatpush.msra.mxu0 0.0
        %2505 = vmatpush.msra.mxu0 0.0
        %2506 = vmatpush.msra.mxu0 0.0
        %2507 = vmatpush.msra.mxu0 0.0
        %2508 = vmatpush.msra.mxu0 0.0
        %2509 = vmatpush.msra.mxu0 %v2486
        %2510 = vmatpush.msra.mxu0 %v2485
        %2511 = vmatpush.msra.mxu0 %v2484
        %2512 = vmatpush.msra.mxu0 %v2483
        %2513 = vmatpush.msra.mxu0 %v2482
        %2514 = vmatpush.msra.mxu0 %v2481
        %2515 = vmatpush.msra.mxu0 %v2480
        %2516 = vmatpush.msra.mxu0 %v2479
        %2517 = vmatmul.f32.gmra.mxu0 %v2493
        %v2518 = vpop.f32.mrf.mxu0
        %v2519 = vadd.f32 %v2490, %v2518
        %2520 = vmatmul.f32.gmra.mxu0 %v2496
        %v2521 = vpop.f32.mrf.mxu0
        %2522 = vmatmul.f32.gmra.mxu0 %v2499
        %v2523 = vpop.f32.mrf.mxu0
        %2524 = vdwg.mxu0
        %v2525 = vadd.f32 %v2216, %v2519
        %v2526 = vld [vmem:[%s18] sm:$0x1]
        %v2527 = vld [vmem:[%s19] sm:$0x1]
        %v2528 = vsel %vm808, %v2525, 0.0
        %2529 = vadd.xlane.f32.xlu0 %v2528
        %v2530 = vpop.xlane.xlu0 %2529
        %v2531 = vmul.f32 %v2530, %v825
        %v2532 = vsub.f32 %v2525, %v2531
        %v2533 = vmul.f32 %v2532, %v2532
        %v2534 = vsel %vm808, %v2533, 0.0
        %2535 = vadd.xlane.f32.xlu0 %v2534
        %v2536 = vpop.xlane.xlu0 %2535
        %v2537 = vmul.f32 %v2536, %v825
        %v2538 = vadd.f32 %v2537, 1e-06
        %v2539 = vrsqrt.pop %v2538
        %v2540 = vmul.f32 %v2539, %v2538
        %v2541 = vmul.f32 %v2540, %v2539
        %v2542 = vmul.f32 0.5, %v2541
        %v2543 = vsub.f32 1.5, %v2542
        %v2544 = vmul.f32 %v2539, %v2543
        %vm2545 = vweird.f32 %v2538
        %vm2546 = vweird.f32 %v2539
        %vm2547 = vmor %vm2545, %vm2546
        %v2548 = vsel %vm2547, %v2539, %v2544
        %v2549 = vmul.f32 %v2532, %v2548
        %v2551 = vperm.slane %v2526, 0
        %v2553 = vmul.f32 %v2549, %v2551
        %v2555 = vperm.slane %v2527, 0
        %v2557 = vadd.f32 %v2553, %v2555
        %v2558 = vld [vmem:[%s20] sm:$0xff]
        %v2559 = vld [vmem:[%s20 + $0x8] sm:$0xff]
        %v2560 = vld [vmem:[%s20 + $0x10] sm:$0xff]
        %v2561 = vld [vmem:[%s20 + $0x18] sm:$0xff]
        %v2562 = vld [vmem:[%s21] sm:$0x1]
        %v2564 = vsel %vm808, %v2557, 0
        %2566 = vmatpush.msra.mxu0 0.0
        %2567 = vmatpush.msra.mxu0 0.0
        %2568 = vmatpush.msra.mxu0 0.0
        %2569 = vmatpush.msra.mxu0 0.0
        %2570 = vmatpush.msra.mxu0 0.0
        %2571 = vmatpush.msra.mxu0 0.0
        %2572 = vmatpush.msra.mxu0 0.0
        %2573 = vmatpush.msra.mxu0 0.0
        %2574 = vmatpush.msra.mxu0 0.0
        %2575 = vmatpush.msra.mxu0 0.0
        %2576 = vmatpush.msra.mxu0 0.0
        %2577 = vmatpush.msra.mxu0 0.0
        %2578 = vmatpush.msra.mxu0 %v2561
        %2579 = vmatpush.msra.mxu0 %v2560
        %2580 = vmatpush.msra.mxu0 %v2559
        %2581 = vmatpush.msra.mxu0 %v2558
        %2582 = vmatmul.f32.gmra.mxu0 %v2564
        %v2583 = vpop.f32.mrf.mxu0
        %v2584 = vadd.f32 %v2562, %v2583
        %2585 = vdwg.mxu0
        %vm2586 = vcmask 516096
        %2587 = vst.msk [vmem:[%s715] sm:$0x1] %vm2586, %v2584
        %v2588 = vmul.f32 %v2584, %v2584
        %v2589 = vsel %vm2586, %v2588, 0.0
        %2590 = vadd.xlane.f32.xlu0 %v2589
        %v2591 = vpop.xlane.xlu0 %2590
        %v2592 = vrsqrt.pop %v2591
        %v2593 = vmul.f32 %v2592, %v2591
        %v2594 = vmul.f32 %v2593, %v2592
        %v2595 = vmul.f32 0.5, %v2594
        %v2596 = vsub.f32 1.5, %v2595
        %v2597 = vmul.f32 %v2592, %v2596
        %v2598 = vmul.f32 %v2591, %v2597
        %vm2599 = vcmp.eq.f32.partialorder %v2591, inf
        %v2600 = vsel %vm2599, %v2591, %v2598
        %vm2601 = vcmp.eq.f32.partialorder %v2591, 0.0
        %v2602 = vand.u32 %v2591, 2147483648
        %v2603 = vsel %vm2601, %v2602, %v2600
        %v2604 = vmax.f32 %v2603, 1e-12
        %v2605 = vrcp.pop %v2604
        %v2606 = vmul.f32 %v2604, %v2605
        %v2607 = vsub.f32 1.0, %v2606
        %v2608 = vmul.f32 %v2605, %v2607
        %v2609 = vadd.f32 %v2605, %v2608
        %vm2610 = vweird.f32 %v2604
        %vm2611 = vweird.f32 %v2605
        %vm2612 = vmor %vm2610, %vm2611
        %v2613 = vsel %vm2612, %v2605, %v2609
        %v2614 = vand.u32 2147483647, %v2604
        %vm2615 = vcmp.eq.f32.partialorder %v2614, 8.507059e+37
        %v2616 = vand.u32 %v2604, 2147483648
        %v2617 = vor.u32 1.1754944e-38, %v2616
        %v2618 = vsel %vm2615, %v2617, %v2613
        %v2619 = vmul.f32 %v2584, %v2618
        %v2620 = vld [vmem:[%s22] sm:$0xff]
        %v2621 = vld [vmem:[%s22 + $0x8] sm:$0xff]
        %v2622 = vld [vmem:[%s22 + $0x10] sm:$0xff]
        %v2623 = vld [vmem:[%s22 + $0x18] sm:$0xff]
        %v2624 = vld [vmem:[%s22 + $0x20] sm:$0xff]
        %v2625 = vld [vmem:[%s22 + $0x28] sm:$0xff]
        %v2626 = vld [vmem:[%s22 + $0x30] sm:$0xff]
        %v2627 = vld [vmem:[%s22 + $0x38] sm:$0xff]
        %v2628 = vmul.f32 %v2620, %v2620
        %v2629 = vmul.f32 %v2621, %v2621
        %v2630 = vmul.f32 %v2622, %v2622
        %v2631 = vmul.f32 %v2623, %v2623
        %v2632 = vmul.f32 %v2624, %v2624
        %v2633 = vmul.f32 %v2625, %v2625
        %v2634 = vmul.f32 %v2626, %v2626
        %v2635 = vmul.f32 %v2627, %v2627
        %vm2636 = vcmask 80896
        %v2637 = vsel %vm2636, %v2628, 0.0
        %v2638 = vsel %vm2636, %v2629, 0.0
        %v2639 = vadd.f32 %v2637, %v2638
        %v2640 = vsel %vm2636, %v2630, 0.0
        %v2641 = vadd.f32 %v2639, %v2640
        %v2642 = vsel %vm2636, %v2631, 0.0
        %v2643 = vadd.f32 %v2641, %v2642
        %v2644 = vsel %vm2636, %v2632, 0.0
        %v2645 = vadd.f32 %v2643, %v2644
        %v2646 = vsel %vm2636, %v2633, 0.0
        %v2647 = vadd.f32 %v2645, %v2646
        %v2648 = vsel %vm2636, %v2634, 0.0
        %v2649 = vadd.f32 %v2647, %v2648
        %v2650 = vsel %vm2636, %v2635, 0.0
        %v2651 = vadd.f32 %v2649, %v2650
        %v2652 = vrot.slane %v2651, 4
        %v2653 = vadd.f32 %v2651, %v2652
        %v2654 = vrot.slane %v2653, 2
        %v2655 = vadd.f32 %v2653, %v2654
        %v2656 = vrot.slane %v2655, 1
        %v2657 = vadd.f32 %v2655, %v2656
        %v2658 = vrsqrt.pop %v2657
        %v2659 = vmul.f32 %v2658, %v2657
        %v2660 = vmul.f32 %v2659, %v2658
        %v2661 = vmul.f32 0.5, %v2660
        %v2662 = vsub.f32 1.5, %v2661
        %v2663 = vmul.f32 %v2658, %v2662
        %v2664 = vmul.f32 %v2657, %v2663
        %vm2665 = vcmp.eq.f32.partialorder %v2657, inf
        %v2666 = vsel %vm2665, %v2657, %v2664
        %vm2667 = vcmp.eq.f32.partialorder %v2657, 0.0
        %v2668 = vand.u32 %v2657, 2147483648
        %v2669 = vsel %vm2667, %v2668, %v2666
        %v2670 = vmax.f32 %v2669, 1e-12
        %v2671 = vrcp.pop %v2670
        %v2672 = vmul.f32 %v2670, %v2671
        %v2673 = vsub.f32 1.0, %v2672
        %v2674 = vmul.f32 %v2671, %v2673
        %v2675 = vadd.f32 %v2671, %v2674
        %vm2676 = vweird.f32 %v2670
        %vm2677 = vweird.f32 %v2671
        %vm2678 = vmor %vm2676, %vm2677
        %v2679 = vsel %vm2678, %v2671, %v2675
        %v2680 = vand.u32 2147483647, %v2670
        %vm2681 = vcmp.eq.f32.partialorder %v2680, 8.507059e+37
        %v2682 = vand.u32 %v2670, 2147483648
        %v2683 = vor.u32 1.1754944e-38, %v2682
        %v2684 = vsel %vm2681, %v2683, %v2679
        %v2685 = vmul.f32 %v2620, %v2684
        %v2686 = vmul.f32 %v2621, %v2684
        %v2687 = vmul.f32 %v2622, %v2684
        %v2688 = vmul.f32 %v2623, %v2684
        %v2689 = vmul.f32 %v2624, %v2684
        %v2690 = vmul.f32 %v2625, %v2684
        %v2691 = vmul.f32 %v2626, %v2684
        %v2692 = vmul.f32 %v2627, %v2684
        %v2694 = vsel %vm1630, %v2619, 0
        %2696 = vmatpush.msra.mxu0 0.0
        %2697 = vmatpush.msra.mxu0 0.0
        %2698 = vmatpush.msra.mxu0 0.0
        %2699 = vmatpush.msra.mxu0 0.0
        %2700 = vmatpush.msra.mxu0 0.0
        %2701 = vmatpush.msra.mxu0 0.0
        %2702 = vmatpush.msra.mxu0 0.0
        %2703 = vmatpush.msra.mxu0 0.0
        %2704 = vmatpush.msra.mxu0 %v2692
        %2705 = vmatpush.msra.mxu0 %v2691
        %2706 = vmatpush.msra.mxu0 %v2690
        %2707 = vmatpush.msra.mxu0 %v2689
        %2708 = vmatpush.msra.mxu0 %v2688
        %2709 = vmatpush.msra.mxu0 %v2687
        %2710 = vmatpush.msra.mxu0 %v2686
        %2711 = vmatpush.msra.mxu0 %v2685
        %2712 = vmatmul.f32.gmra.mxu0 %v2694
        %v2713 = vpop.f32.mrf.mxu0
        %v2714 = vadd.f32 0.0, %v2713
        %2715 = vdwg.mxu0
        %v2716 = vmul.f32 %v2714, %v2714
        %v2717 = vsub.f32 1.0, %v2716
        %v2718 = vmax.f32 %v2717, 0.0
        %v2719 = vrsqrt.pop %v2718
        %v2720 = vmul.f32 %v2719, %v2718
        %v2721 = vmul.f32 %v2720, %v2719
        %v2722 = vmul.f32 0.5, %v2721
        %v2723 = vsub.f32 1.5, %v2722
        %v2724 = vmul.f32 %v2719, %v2723
        %v2725 = vmul.f32 %v2718, %v2724
        %vm2726 = vcmp.eq.f32.partialorder %v2718, inf
        %v2727 = vsel %vm2726, %v2718, %v2725
        %vm2728 = vcmp.eq.f32.partialorder %v2718, 0.0
        %v2729 = vand.u32 %v2718, 2147483648
        %v2730 = vsel %vm2728, %v2729, %v2727
        %v2731 = vmul.f32 %v2714, 0.9887711
        %v2732 = vmul.f32 %v2730, 0.14943813
        %v2733 = vsub.f32 %v2731, %v2732
        %vm2734 = vcmp.gt.f32.partialorder %v2714, -0.9887711
        %v2735 = vsub.f32 %v2714, 0.02241572
        %v2736 = vsel %vm2734, %v2733, %v2735
        %s2737 = sld [smem:[#allocation3 + %s50]]
        %v2738 = vlaneseq
        %v2739 = vand.u32 %v2738, 127
        %v2740 = vstv %s2737
        %vm2741 = vcmp.eq.s32.totalorder %v2739, %v2740
        %v2742 = vsel %vm2741, 1, 0
        %v2743 = vcvt.s32.f32 %v2742
        %v2744 = vmul.f32 %v2743, %v2736
        %v2745 = vsub.f32 1.0, %v2743
        %v2746 = vmul.f32 %v2745, %v2714
        %v2747 = vadd.f32 %v2744, %v2746
        %v2748 = vmul.f32 %v2747, 30.0
        %vm2749 = vcmask 73728
        %2750 = vst.msk [vmem:[%s721] sm:$0x1] %vm2749, %v2748
        %s2751 = sand.u32 %s525, 1
        %s2752 = scalar_lea.sflag [#allocation5], %s2751
        %s2753 = sand.u32 %s525, 1
        %s2754 = scalar_lea.vmem [#allocation4], %s2753
        %s2755 = sand.u32 %s551, 1
        %s2756 = scalar_lea.sflag [#allocation7], %s2755
        %s2757 = sand.u32 %s551, 1
        %s2758 = scalar_lea.vmem [#allocation6], %s2757
        // Predicated region
        $region109: #{transformer_large_forward.1} parent=107 // pred_check
          %p2759 = pneg %p535
        $region110: #{transformer_large_forward.1} parent=107 // pred_check_branch
          %2761 = sbr.rel (%p2759) target = $region112
        $region111: #{transformer_large_forward.1} parent=107 // pred_region
          %2763 = vsyncadd %s2752, 0
          %s2764 = scalar_lea.hbm %s23, %s50
          %s2766 = sshll.u32 %s2754, 4
          %s2767 = int_to_ptr.vmem [resolvable:$true] %s2766
          %s2768 = sshll.u32 %s2764, 4
          %s2769 = int_to_ptr.hbm [resolvable:$true] %s2768
          %2771 = dma.vmem_to_hbm [thread:$0]  %s2767, 16, %s2769, %s2752
        $region112: #{transformer_large_forward.1} parent=107 // pred_fallthru
          _
        // Predicated region
        $region113: #{transformer_large_forward.1} parent=107 // pred_check
          %p2772 = pneg %p561
        $region114: #{transformer_large_forward.1} parent=107 // pred_check_branch
          %2774 = sbr.rel (%p2772) target = $region116
        $region115: #{transformer_large_forward.1} parent=107 // pred_region
          %2776 = vsyncadd %s2756, 0
          %s2777 = scalar_lea.hbm %s24, %s50
          %s2779 = sshll.u32 %s2758, 4
          %s2780 = int_to_ptr.vmem [resolvable:$true] %s2779
          %s2781 = sshll.u32 %s2777, 4
          %s2782 = int_to_ptr.hbm [resolvable:$true] %s2781
          %2784 = dma.vmem_to_hbm [thread:$0]  %s2780, 16, %s2782, %s2756
        $region116: #{transformer_large_forward.1} parent=107 // pred_fallthru
          _
      $region108: #{transformer_large_forward.1} parent=5 // pred_fallthru
        _
      %p2785 = scmp.le.s32.totalorder 2, %s45
      // Predicated region
      $region117: #{transformer_large_forward.1} parent=5 // pred_check
        %p2786 = pneg %p2785
      $region118: #{transformer_large_forward.1} parent=5 // pred_check_branch
        %2788 = sbr.rel (%p2786) target = $region120
      $region119: #{transformer_large_forward.1} parent=5 // pred_region
        %s2789 = ssub.s32 %s45, 2
        // Predicated region
        $region121: #{transformer_large_forward.1} parent=119 // pred_check
          %p2790 = pneg %p541
        $region122: #{transformer_large_forward.1} parent=119 // pred_check_branch
          %2792 = sbr.rel (%p2790) target = $region124
        $region123: #{transformer_large_forward.1} parent=119 // pred_region
          %s2793 = sand.u32 %s526, 1
          %s2794 = scalar_lea.sflag [#allocation5], %s2793
          %s2795 = sand.u32 %s526, 1
          %s2796 = scalar_lea.vmem [#allocation4], %s2795
          %2798 = dma.done %s2794, 16
        $region124: #{transformer_large_forward.1} parent=119 // pred_fallthru
          _
        // Predicated region
        $region125: #{transformer_large_forward.1} parent=119 // pred_check
          %p2799 = pneg %p567
        $region126: #{transformer_large_forward.1} parent=119 // pred_check_branch
          %2801 = sbr.rel (%p2799) target = $region128
        $region127: #{transformer_large_forward.1} parent=119 // pred_region
          %s2802 = sand.u32 %s552, 1
          %s2803 = scalar_lea.sflag [#allocation7], %s2802
          %s2804 = sand.u32 %s552, 1
          %s2805 = scalar_lea.vmem [#allocation6], %s2804
          %2807 = dma.done %s2803, 16
        $region128: #{transformer_large_forward.1} parent=119 // pred_fallthru
          _
      $region120: #{transformer_large_forward.1} parent=5 // pred_fallthru
        _
    $region6: #{transformer_large_forward.1} parent=1 // loop_footer
      %s49 = sadd.s32 1, %s45
    $region7: #{transformer_large_forward.1} parent=1 // loop_footer_branch
      %44 = sbr.rel target = $region3
    $region8: #{transformer_large_forward.1} parent=1 // loop_exit
      _
    %2808 = vsyncpa [#allocation5], 1
    %s2809 = scalar_lea.sflag [#allocation5], 1
    %2810 = vsyncpa %s2809, 1
    %2811 = vsyncpa [#allocation7], 1
    %s2812 = scalar_lea.sflag [#allocation7], 1
    %2813 = vsyncpa %s2812, 1

</llo_original>
